<compile_context>
chip_gen: v5e
topology: v5e:2x2
jax: 0.10.0
libtpu: 0.0.40
codegen_flags: <defaults>
</compile_context>

<pallas_src>
import math
import functools

import jax
import jax.numpy as jnp
import numpy as np
from jax import lax
from jax.experimental import pallas as pl
from jax.experimental.pallas import tpu as pltpu


# ----------------------------------------------------------------------------
# Kernel bodies
# ----------------------------------------------------------------------------
def _attention_tail(q_proj, k_proj, v_proj, wo_ref, bo_ref,
                    cos_ref, sinl_ref, sinr_ref, o_ref, acc_ref,
                    *, num_heads, mxu_dtype, approx_recip):
    """Rotary + per-(batch, head) attention + output projection.

    q_proj/k_proj/v_proj: (B*T, D) f32 (softmax scale already folded into q).
    o_ref / acc_ref     : (B, T, D)   output block / lane-dense scratch slab.
    """
    B, T, D = o_ref.shape
    rows = B * T
    H = num_heads
    hd = D // H
    half = hd // 2

    cos = cos_ref[...]        # (T, D) cos tiled across heads
    sin_l = sinl_ref[...]     # -sin on first-half lanes of every head, 0 elsewhere
    sin_r = sinr_ref[...]     # +sin on second-half lanes of every head, 0 elsewhere

    def rope(x_flat):
        # rotate_half partner fetched with two full-width lane rolls (XLU slot);
        # sign and first/second-half masking are pre-baked into sin_l / sin_r.
        x_l = pltpu.roll(x_flat, shift=D - half, axis=1)   # x[:, (d + half) % D]
        x_r = pltpu.roll(x_flat, shift=half, axis=1)       # x[:, (d - half) % D]
        return (x_flat.reshape(B, T, D) * cos
                + x_l.reshape(B, T, D) * sin_l
                + x_r.reshape(B, T, D) * sin_r)

    q_rot = rope(q_proj)               # (B, T, D) f32
    k_rot = rope(k_proj)
    v3 = v_proj.reshape(B, T, D)

    # Per-(batch, head) scaled-dot-product attention into the lane-dense slab.
    # With head_dim == 128 every lane slice is a full 128-lane group.
    # TODO(synk): flash-style KV-block loop (online softmax) before scaling T,
    # and a fori_loop / block-diagonal grouped-heads variant when B*H grows
    # large or head_dim < 128.
    for b in range(B):
        for h in range(H):
            sl = slice(h * hd, (h + 1) * hd)
            qh = q_rot[b, :, sl].astype(mxu_dtype)
            kh = k_rot[b, :, sl].astype(mxu_dtype)
            vh = v3[b, :, sl].astype(mxu_dtype)

            # q @ k^T contracting last dims (no explicit transpose).
            s = lax.dot_general(qh, kh, (((1,), (1,)), ((), ())),
                                preferred_element_type=jnp.float32)   # (T, T)
            s = s - jnp.max(s, axis=-1, keepdims=True)
            e = jnp.exp(s)
            denom = jnp.sum(e, axis=-1, keepdims=True)
            if approx_recip:
                p = e * pl.reciprocal(denom, approx=True)   # EUP slot
            else:
                p = e / denom                               # exact (f32 parity)
            pv = jnp.dot(p.astype(mxu_dtype), vh,
                         preferred_element_type=jnp.float32)
            acc_ref[b, :, sl] = pv.astype(acc_ref.dtype)

    # Output projection on the lane-dense (rows, D) slab.
    attn = acc_ref[...].reshape(rows, D)
    out = jnp.dot(attn, wo_ref[...], preferred_element_type=jnp.float32) + bo_ref[...]
    o_ref[...] = out.reshape(B, T, D).astype(o_ref.dtype)


def _mha_self_kernel(x_ref, wqkv_ref, bqkv_ref, wo_ref, bo_ref,
                     cos_ref, sinl_ref, sinr_ref, o_ref, acc_ref,
                     *, num_heads, mxu_dtype, approx_recip):
    """Self-attention (query is key is value): one fused (rows,D)x(D,3D) matmul."""
    B, T, D = x_ref.shape
    x = x_ref[...].reshape(B * T, D).astype(mxu_dtype)
    qkv = jnp.dot(x, wqkv_ref[...], preferred_element_type=jnp.float32)
    qkv = qkv + bqkv_ref[...]                       # (rows, 3D) f32
    _attention_tail(qkv[:, :D], qkv[:, D:2 * D], qkv[:, 2 * D:],
                    wo_ref, bo_ref, cos_ref, sinl_ref, sinr_ref, o_ref, acc_ref,
                    num_heads=num_heads, mxu_dtype=mxu_dtype,
                    approx_recip=approx_recip)


def _mha_cross_kernel(q_ref, k_ref, v_ref, wqkv_ref, bqkv_ref, wo_ref, bo_ref,
                      cos_ref, sinl_ref, sinr_ref, o_ref, acc_ref,
                      *, num_heads, mxu_dtype, approx_recip):
    """General path: distinct query / key / value inputs."""
    B, T, D = q_ref.shape

    def proj(x_ref, lo):
        x = x_ref[...].reshape(B * T, D).astype(mxu_dtype)
        return (jnp.dot(x, wqkv_ref[:, lo:lo + D],
                        preferred_element_type=jnp.float32)
                + bqkv_ref[:, lo:lo + D])

    _attention_tail(proj(q_ref, 0), proj(k_ref, D), proj(v_ref, 2 * D),
                    wo_ref, bo_ref, cos_ref, sinl_ref, sinr_ref, o_ref, acc_ref,
                    num_heads=num_heads, mxu_dtype=mxu_dtype,
                    approx_recip=approx_recip)


# ----------------------------------------------------------------------------
# Wrapper-side helpers
# ----------------------------------------------------------------------------
def rotary_cos_sin(seq_len, head_dim, base=10000.0):
    """LlamaRotaryEmbedding tables gathered at position_ids = arange(seq_len)."""
    inv_freq = 1.0 / (base ** (jnp.arange(0, head_dim, 2, dtype=jnp.float32) / head_dim))
    t = jnp.arange(seq_len, dtype=jnp.float32)
    freqs = jnp.einsum("i,j->ij", t, inv_freq)           # (T, hd/2)
    emb = jnp.concatenate([freqs, freqs], axis=-1)       # (T, hd)
    return jnp.cos(emb), jnp.sin(emb)


def _rotary_tables_full(seq_len, embed_dim, num_heads, dtype=jnp.float32):
    """Full-width (T, D) rotary tables for the kernel.

    cos_full : cos tiled across heads.
    sin_l    : -sin on first-half lanes of every head, 0 elsewhere
               (multiplies the d+hd/2 partner fetched by the long roll).
    sin_r    : +sin on second-half lanes of every head, 0 elsewhere
               (multiplies the d-hd/2 partner fetched by the short roll).
    """
    hd = embed_dim // num_heads
    cos, sin = rotary_cos_sin(seq_len, hd)
    cos_full = jnp.tile(cos, (1, num_heads))             # (T, D)
    sin_full = jnp.tile(sin, (1, num_heads))
    first = (np.arange(embed_dim) % hd) < (hd // 2)
    first = jnp.asarray(first, dtype=jnp.float32)[None, :]
    sin_l = -sin_full * first
    sin_r = sin_full * (1.0 - first)
    return cos_full.astype(dtype), sin_l.astype(dtype), sin_r.astype(dtype)


def _pick_batch_block(bs, T, D, n_act, row_target=256, budget_bytes=24 << 20):
    """Smallest divisor of bs giving >= row_target MXU rows, subject to a VMEM
    budget for the double-buffered activation blocks + scratch slab."""
    best = 1
    for cand in range(1, bs + 1):
        if bs % cand:
            continue
        blk = cand * T * D * 4
        need = (n_act + 1) * 2 * blk + blk
        if cand > 1 and need > budget_bytes:
            break
        best = cand
        if cand * T >= row_target:
            break
    return best


def x_multihead_attention(query, key, value, params, num_heads,
                          mxu_dtype=jnp.bfloat16, batch_first=False,
                          approx_recip=None):
    """Forward pass of xMultiheadAttention (fallback path, no mask, dropout=0).

    query/key/value: (T, bs, D) if batch_first=False (module default), else
    (bs, T, D).  Returns the attention output in the same layout.  The module's
    second return value (attn_output_weights) is always None (need_weights is
    asserted False in the reference module), so only the output is returned.
    """
    if approx_recip is None:
        approx_recip = (mxu_dtype != jnp.float32)

    self_attn = (key is query) and (value is query)

    if batch_first:
        bs, T, D = query.shape
    else:
        T, bs, D = query.shape

    assert key.shape == query.shape == value.shape, \
        "query/key/value must share the same shape"
    assert D % num_heads == 0, "embed_dim must be divisible by num_heads"
    hd = D // num_heads
    assert hd % 2 == 0, "head_dim must be even for rotary embedding"
    # TODO(synk): support general T (the in-kernel (B,T,D)<->(B*T,D) reshape is
    # layout-free only when T is sublane-aligned).
    assert T % 8 == 0, "seq_len must be a multiple of 8"

    if batch_first:
        q_b, k_b, v_b = query, key, value
    else:
        # TODO(synk): consume the native (T, bs, D) layout in-kernel (or take
        # batch-first inputs end-to-end) to avoid these HBM layout shuffles;
        # at memory-bound sizes they can cost as much as the kernel itself.
        q_b = jnp.transpose(query, (1, 0, 2))
        k_b = q_b if key is query else jnp.transpose(key, (1, 0, 2))
        v_b = q_b if value is query else (
            k_b if value is key else jnp.transpose(value, (1, 0, 2)))

    dtype = query.dtype
    scale = 1.0 / math.sqrt(hd)

    # One-time parameter prep (HBM side): fused, pre-transposed QKV weight with
    # the softmax scale folded into the Q columns/bias; bf16 at the MXU.
    wqkv = params["in_proj_weight"]                       # (3D, D)
    bqkv = params.get("in_proj_bias")
    if bqkv is None:
        bqkv = jnp.zeros((3 * D,), jnp.float32)
    w_fused = jnp.concatenate(
        [wqkv[:D].T * scale, wqkv[D:2 * D].T, wqkv[2 * D:].T],
        axis=1).astype(mxu_dtype)                         # (D, 3D)
    b_fused = jnp.concatenate(
        [bqkv[:D] * scale, bqkv[D:2 * D], bqkv[2 * D:]]
    ).reshape(1, 3 * D).astype(jnp.float32)
    wo_t = params["out_proj_weight"].T.astype(mxu_dtype)  # (D, D)
    bo_p = params.get("out_proj_bias")
    if bo_p is None:
        bo_p = jnp.zeros((D,), jnp.float32)
    bo = bo_p.reshape(1, D).astype(jnp.float32)

    # Rotary tables at (T, D) full width.
    # TODO(synk): bf16 tables / single-buffered constant operands (pl.Buffered(1))
    # to cut resident VMEM further for large D (matters on v7x's 64 MiB).
    cos_f, sin_l, sin_r = _rotary_tables_full(T, D, num_heads)

    n_act = 1 if self_attn else 3
    b_blk = _pick_batch_block(bs, T, D, n_act)
    grid = (bs // b_blk,)

    # VMEM budget: actual footprint (double-buffered) + 2x margin, capped below
    # v7x's 64 MiB physical per-TC VMEM.
    w_bytes = np.dtype(mxu_dtype).itemsize
    blk_elems = b_blk * T * D
    est = (n_act + 1) * 2 * blk_elems * 4                 # activations in/out
    est += 2 * 4 * D * D * w_bytes                        # fused Wqkv + Wo
    est += 2 * 3 * T * D * 4 + 2 * 4 * 4 * D              # rotary tables + biases
    est += blk_elems * w_bytes                            # scratch slab
    vmem_limit = int(min(max(2 * est, 8 << 20), 48 << 20))

    act_spec = pl.BlockSpec((b_blk, T, D), lambda i: (i, 0, 0))
    rep = lambda i: (0, 0)
    const_specs = [
        pl.BlockSpec((D, 3 * D), rep),   # fused Wqkv^T (scale folded into Q cols)
        pl.BlockSpec((1, 3 * D), rep),   # fused q/k/v bias (q pre-scaled)
        pl.BlockSpec((D, D), rep),       # Wo^T
        pl.BlockSpec((1, D), rep),       # out-proj bias
        pl.BlockSpec((T, D), rep),       # rotary cos (full width)
        pl.BlockSpec((T, D), rep),       # rotary sin (first-half, signed)
        pl.BlockSpec((T, D), rep),       # rotary sin (second-half)
    ]
    consts = (w_fused, b_fused, wo_t, bo, cos_f, sin_l, sin_r)

    if self_attn:
        kernel = functools.partial(_mha_self_kernel, num_heads=num_heads,
                                   mxu_dtype=mxu_dtype, approx_recip=approx_recip)
        in_specs = [act_spec] + const_specs
        operands = (q_b,) + consts
    else:
        kernel = functools.partial(_mha_cross_kernel, num_heads=num_heads,
                                   mxu_dtype=mxu_dtype, approx_recip=approx_recip)
        in_specs = [act_spec, act_spec, act_spec] + const_specs
        operands = (q_b, k_b, v_b) + consts

    out_b = pl.pallas_call(
        kernel,
        out_shape=jax.ShapeDtypeStruct((bs, T, D), dtype),
        grid_spec=pltpu.PrefetchScalarGridSpec(
            num_scalar_prefetch=0,
            grid=grid,
            in_specs=in_specs,
            out_specs=act_spec,
            scratch_shapes=[pltpu.VMEM((b_blk, T, D), mxu_dtype)],
        ),
        compiler_params=pltpu.CompilerParams(
            # TODO(synk): add a second parallel axis (q-row / head tiles) so v7x
            # megacore still splits work when the batch grid collapses to (1,).
            dimension_semantics=("parallel",),
            vmem_limit_bytes=vmem_limit,
        ),
    )(*operands)

    if batch_first:
        return out_b
    return jnp.transpose(out_b, (1, 0, 2))


# ----------------------------------------------------------------------------
# Pure-JAX reference (mirrors the PyTorch fallback path) for validation
# ----------------------------------------------------------------------------
def reference(query, key, value, params, num_heads):
    P = lax.Precision.HIGHEST
    T, bs, D = query.shape
    hd = D // num_heads
    wqkv = params["in_proj_weight"]
    bqkv = params["in_proj_bias"]
    wo = params["out_proj_weight"]
    bo = params["out_proj_bias"]
    wq, wk, wv = wqkv[:D], wqkv[D:2 * D], wqkv[2 * D:]
    bq, bk, bv = bqkv[:D], bqkv[D:2 * D], bqkv[2 * D:]

    q = jnp.transpose(query, (1, 0, 2))
    k = jnp.transpose(key, (1, 0, 2))
    v = jnp.transpose(value, (1, 0, 2))

    def proj(x, w, b):
        y = jnp.dot(x, w.T, precision=P) + b
        return y.reshape(bs, T, num_heads, hd).transpose(0, 2, 1, 3)  # (bs,H,T,hd)

    q, k, v = proj(q, wq, bq), proj(k, wk, bk), proj(v, wv, bv)

    cos, sin = rotary_cos_sin(T, hd)
    cos = cos[None, None]
    sin = sin[None, None]

    def rot_half(x):
        return jnp.concatenate([-x[..., hd // 2:], x[..., :hd // 2]], axis=-1)

    q = q * cos + rot_half(q) * sin
    k = k * cos + rot_half(k) * sin

    s = jnp.einsum("bhtd,bhsd->bhts", q, k, precision=P) / math.sqrt(hd)
    p = jax.nn.softmax(s.astype(jnp.float32), axis=-1).astype(q.dtype)
    o = jnp.einsum("bhts,bhsd->bhtd", p, v, precision=P)
    o = o.transpose(0, 2, 1, 3).reshape(bs, T, D)
    o = jnp.dot(o, wo.T, precision=P) + bo
    return jnp.transpose(o, (1, 0, 2))


# ----------------------------------------------------------------------------
if __name__ == "__main__":
    # Small shapes consistent with the module: seq 64, batch 8, embed 256,
    # 2 heads (head_dim = 128 -> per-head lane slices are full 128-lane groups).
    T, bs, D, H = 64, 8, 256, 2

    key0 = jax.random.PRNGKey(0)
    k_x, k_k, k_v, k_w, k_b, k_wo, k_bo = jax.random.split(key0, 7)

    x = jax.random.normal(k_x, (T, bs, D), dtype=jnp.float32)

    xav = math.sqrt(6.0 / (D + 3 * D))
    lin = 1.0 / math.sqrt(D)
    params = dict(
        in_proj_weight=jax.random.uniform(k_w, (3 * D, D), jnp.float32, -xav, xav),
        in_proj_bias=jax.random.uniform(k_b, (3 * D,), jnp.float32, -0.1, 0.1),
        out_proj_weight=jax.random.uniform(k_wo, (D, D), jnp.float32, -lin, lin),
        out_proj_bias=jax.random.uniform(k_bo, (D,), jnp.float32, -0.1, 0.1),
    )

    # --- self-attention (fused QKV path), bf16-at-MXU default ---------------
    ref_self = reference(x, x, x, params, num_heads=H)
    out_bf16 = jax.block_until_ready(
        x_multihead_attention(x, x, x, params, num_heads=H))
    np.testing.assert_allclose(np.asarray(out_bf16), np.asarray(ref_self),
                               rtol=5e-2, atol=5e-2)

    # --- self-attention, f32-at-MXU parity path (exact softmax division) ----
    out_f32 = jax.block_until_ready(
        x_multihead_attention(x, x, x, params, num_heads=H,
                              mxu_dtype=jnp.float32))
    np.testing.assert_allclose(np.asarray(out_f32), np.asarray(ref_self),
                               rtol=1e-2, atol=1e-2)

    # --- cross-attention path (distinct key / value) -------------------------
    key_in = jax.random.normal(k_k, (T, bs, D), dtype=jnp.float32)
    value_in = jax.random.normal(k_v, (T, bs, D), dtype=jnp.float32)
    ref_x = reference(x, key_in, value_in, params, num_heads=H)
    out_x = jax.block_until_ready(
        x_multihead_attention(x, key_in, value_in, params, num_heads=H))
    np.testing.assert_allclose(np.asarray(out_x), np.asarray(ref_x),
                               rtol=5e-2, atol=5e-2)

    print("KERNEL_OK")
</pallas_src>

<mosaic_0001>
module attributes {stable_mosaic.version = 11 : i64} {
  func.func @_mha_self_kernel(%arg0: i32, %arg1: memref<4x64x256xf32, #tpu.memory_space<vmem>>, %arg2: memref<256x768xbf16, #tpu.memory_space<vmem>>, %arg3: memref<1x768xf32, #tpu.memory_space<vmem>>, %arg4: memref<256x256xbf16, #tpu.memory_space<vmem>>, %arg5: memref<1x256xf32, #tpu.memory_space<vmem>>, %arg6: memref<64x256xf32, #tpu.memory_space<vmem>>, %arg7: memref<64x256xf32, #tpu.memory_space<vmem>>, %arg8: memref<64x256xf32, #tpu.memory_space<vmem>>, %arg9: memref<4x64x256xf32, #tpu.memory_space<vmem>>, %arg10: memref<4x64x256xbf16, #tpu.memory_space<vmem>>) attributes {dimension_semantics = [#tpu.dimension_semantics<parallel>], iteration_bounds = array<i64: 2>, scalar_prefetch = 0 : i64, scratch_operands = 1 : i64, tpu.core_type = #tpu.core_type<tc>, window_params = [{transform_indices = @transform_0, window_bounds = array<i64: 4, 64, 256>}, {pipeline_mode = #tpu.pipeline_mode<synchronous>, transform_indices = @transform_1, window_bounds = array<i64: 256, 768>}, {pipeline_mode = #tpu.pipeline_mode<synchronous>, transform_indices = @transform_2, window_bounds = array<i64: 1, 768>}, {pipeline_mode = #tpu.pipeline_mode<synchronous>, transform_indices = @transform_3, window_bounds = array<i64: 256, 256>}, {pipeline_mode = #tpu.pipeline_mode<synchronous>, transform_indices = @transform_4, window_bounds = array<i64: 1, 256>}, {pipeline_mode = #tpu.pipeline_mode<synchronous>, transform_indices = @transform_5, window_bounds = array<i64: 64, 256>}, {pipeline_mode = #tpu.pipeline_mode<synchronous>, transform_indices = @transform_6, window_bounds = array<i64: 64, 256>}, {pipeline_mode = #tpu.pipeline_mode<synchronous>, transform_indices = @transform_7, window_bounds = array<i64: 64, 256>}, {transform_indices = @transform_8, window_bounds = array<i64: 4, 64, 256>}]} {
    %c0 = arith.constant 0 : index
    %c0_0 = arith.constant 0 : index
    %c0_1 = arith.constant 0 : index
    %0 = vector.load %arg1[%c0, %c0_0, %c0_1] : memref<4x64x256xf32, #tpu.memory_space<vmem>>, vector<4x64x256xf32>
    %1 = vector.shape_cast %0 : vector<4x64x256xf32> to vector<256x256xf32>
    %2 = arith.truncf %1 : vector<256x256xf32> to vector<256x256xbf16>
    %c0_2 = arith.constant 0 : index
    %c0_3 = arith.constant 0 : index
    %3 = vector.load %arg2[%c0_2, %c0_3] : memref<256x768xbf16, #tpu.memory_space<vmem>>, vector<256x768xbf16>
    %cst = arith.constant dense<0.000000e+00> : vector<256x768xf32>
    %4 = tpu.matmul %2, %3, %cst {dimension_numbers = #tpu.dot_dimension_numbers<[1], [0], [0], [1], [0, 0, 1, 1], [], []>} : vector<256x256xbf16>, vector<256x768xbf16>, vector<256x768xf32> -> vector<256x768xf32>
    %c0_4 = arith.constant 0 : index
    %c0_5 = arith.constant 0 : index
    %5 = vector.load %arg3[%c0_4, %c0_5] : memref<1x768xf32, #tpu.memory_space<vmem>>, vector<1x768xf32>
    %6 = vector.broadcast %5 : vector<1x768xf32> to vector<256x768xf32>
    %7 = arith.addf %4, %6 : vector<256x768xf32>
    %8 = vector.extract_strided_slice %7 {offsets = [0, 0], sizes = [256, 256], strides = [1, 1]} : vector<256x768xf32> to vector<256x256xf32>
    %9 = vector.extract_strided_slice %7 {offsets = [0, 256], sizes = [256, 256], strides = [1, 1]} : vector<256x768xf32> to vector<256x256xf32>
    %10 = vector.extract_strided_slice %7 {offsets = [0, 512], sizes = [256, 256], strides = [1, 1]} : vector<256x768xf32> to vector<256x256xf32>
    %c0_6 = arith.constant 0 : index
    %c0_7 = arith.constant 0 : index
    %11 = vector.load %arg6[%c0_6, %c0_7] : memref<64x256xf32, #tpu.memory_space<vmem>>, vector<64x256xf32>
    %c0_8 = arith.constant 0 : index
    %c0_9 = arith.constant 0 : index
    %12 = vector.load %arg7[%c0_8, %c0_9] : memref<64x256xf32, #tpu.memory_space<vmem>>, vector<64x256xf32>
    %c0_10 = arith.constant 0 : index
    %c0_11 = arith.constant 0 : index
    %13 = vector.load %arg8[%c0_10, %c0_11] : memref<64x256xf32, #tpu.memory_space<vmem>>, vector<64x256xf32>
    %c192_i32 = arith.constant 192 : i32
    %14 = tpu.dynamic_rotate %8 by %c192_i32 dim 1 : vector<256x256xf32>, i32 -> vector<256x256xf32>
    %c64_i32 = arith.constant 64 : i32
    %15 = tpu.dynamic_rotate %8 by %c64_i32 dim 1 : vector<256x256xf32>, i32 -> vector<256x256xf32>
    %16 = vector.shape_cast %8 : vector<256x256xf32> to vector<4x64x256xf32>
    %17 = vector.shape_cast %11 : vector<64x256xf32> to vector<1x64x256xf32>
    %18 = vector.broadcast %17 : vector<1x64x256xf32> to vector<4x64x256xf32>
    %19 = arith.mulf %16, %18 : vector<4x64x256xf32>
    %20 = vector.shape_cast %14 : vector<256x256xf32> to vector<4x64x256xf32>
    %21 = vector.shape_cast %12 : vector<64x256xf32> to vector<1x64x256xf32>
    %22 = vector.broadcast %21 : vector<1x64x256xf32> to vector<4x64x256xf32>
    %23 = arith.mulf %20, %22 : vector<4x64x256xf32>
    %24 = arith.addf %19, %23 : vector<4x64x256xf32>
    %25 = vector.shape_cast %15 : vector<256x256xf32> to vector<4x64x256xf32>
    %26 = vector.shape_cast %13 : vector<64x256xf32> to vector<1x64x256xf32>
    %27 = vector.broadcast %26 : vector<1x64x256xf32> to vector<4x64x256xf32>
    %28 = arith.mulf %25, %27 : vector<4x64x256xf32>
    %29 = arith.addf %24, %28 : vector<4x64x256xf32>
    %c192_i32_12 = arith.constant 192 : i32
    %30 = tpu.dynamic_rotate %9 by %c192_i32_12 dim 1 : vector<256x256xf32>, i32 -> vector<256x256xf32>
    %c64_i32_13 = arith.constant 64 : i32
    %31 = tpu.dynamic_rotate %9 by %c64_i32_13 dim 1 : vector<256x256xf32>, i32 -> vector<256x256xf32>
    %32 = vector.shape_cast %9 : vector<256x256xf32> to vector<4x64x256xf32>
    %33 = vector.shape_cast %11 : vector<64x256xf32> to vector<1x64x256xf32>
    %34 = vector.broadcast %33 : vector<1x64x256xf32> to vector<4x64x256xf32>
    %35 = arith.mulf %32, %34 : vector<4x64x256xf32>
    %36 = vector.shape_cast %30 : vector<256x256xf32> to vector<4x64x256xf32>
    %37 = vector.shape_cast %12 : vector<64x256xf32> to vector<1x64x256xf32>
    %38 = vector.broadcast %37 : vector<1x64x256xf32> to vector<4x64x256xf32>
    %39 = arith.mulf %36, %38 : vector<4x64x256xf32>
    %40 = arith.addf %35, %39 : vector<4x64x256xf32>
    %41 = vector.shape_cast %31 : vector<256x256xf32> to vector<4x64x256xf32>
    %42 = vector.shape_cast %13 : vector<64x256xf32> to vector<1x64x256xf32>
    %43 = vector.broadcast %42 : vector<1x64x256xf32> to vector<4x64x256xf32>
    %44 = arith.mulf %41, %43 : vector<4x64x256xf32>
    %45 = arith.addf %40, %44 : vector<4x64x256xf32>
    %46 = vector.shape_cast %10 : vector<256x256xf32> to vector<4x64x256xf32>
    %47 = vector.extract_strided_slice %29 {offsets = [0, 0, 0], sizes = [1, 64, 128], strides = [1, 1, 1]} : vector<4x64x256xf32> to vector<1x64x128xf32>
    %48 = vector.shape_cast %47 : vector<1x64x128xf32> to vector<64x128xf32>
    %49 = arith.truncf %48 : vector<64x128xf32> to vector<64x128xbf16>
    %50 = vector.extract_strided_slice %45 {offsets = [0, 0, 0], sizes = [1, 64, 128], strides = [1, 1, 1]} : vector<4x64x256xf32> to vector<1x64x128xf32>
    %51 = vector.shape_cast %50 : vector<1x64x128xf32> to vector<64x128xf32>
    %52 = arith.truncf %51 : vector<64x128xf32> to vector<64x128xbf16>
    %53 = vector.extract_strided_slice %46 {offsets = [0, 0, 0], sizes = [1, 64, 128], strides = [1, 1, 1]} : vector<4x64x256xf32> to vector<1x64x128xf32>
    %54 = vector.shape_cast %53 : vector<1x64x128xf32> to vector<64x128xf32>
    %55 = arith.truncf %54 : vector<64x128xf32> to vector<64x128xbf16>
    %cst_14 = arith.constant dense<0.000000e+00> : vector<64x64xf32>
    %56 = tpu.matmul %49, %52, %cst_14 {dimension_numbers = #tpu.dot_dimension_numbers<[1], [1], [0], [0], [0, 0, 1, 0], [], []>} : vector<64x128xbf16>, vector<64x128xbf16>, vector<64x64xf32> -> vector<64x64xf32>
    %cst_15 = arith.constant dense<0xFF800000> : vector<64xf32>
    %57 = vector.multi_reduction <maximumf>, %56, %cst_15 [1] : vector<64x64xf32> to vector<64xf32>
    %58 = vector.shape_cast %57 : vector<64xf32> to vector<64x1xf32>
    %59 = vector.broadcast %58 : vector<64x1xf32> to vector<64x64xf32>
    %60 = arith.subf %56, %59 : vector<64x64xf32>
    %61 = math.exp %60 : vector<64x64xf32>
    %cst_16 = arith.constant dense<0.000000e+00> : vector<64xf32>
    %62 = vector.multi_reduction <add>, %61, %cst_16 [1] : vector<64x64xf32> to vector<64xf32>
    %63 = vector.shape_cast %62 : vector<64xf32> to vector<64x1xf32>
    %64 = tpu.reciprocal %63 {approx = true} : vector<64x1xf32> -> vector<64x1xf32>
    %65 = vector.broadcast %64 : vector<64x1xf32> to vector<64x64xf32>
    %66 = arith.mulf %61, %65 : vector<64x64xf32>
    %67 = arith.truncf %66 : vector<64x64xf32> to vector<64x64xbf16>
    %cst_17 = arith.constant dense<0.000000e+00> : vector<64x128xf32>
    %68 = tpu.matmul %67, %55, %cst_17 {dimension_numbers = #tpu.dot_dimension_numbers<[1], [0], [0], [1], [0, 0, 1, 1], [], []>} : vector<64x64xbf16>, vector<64x128xbf16>, vector<64x128xf32> -> vector<64x128xf32>
    %69 = arith.truncf %68 : vector<64x128xf32> to vector<64x128xbf16>
    %c0_18 = arith.constant 0 : index
    %c0_19 = arith.constant 0 : index
    %c0_20 = arith.constant 0 : index
    %70 = vector.load %arg10[%c0_18, %c0_19, %c0_20] : memref<4x64x256xbf16, #tpu.memory_space<vmem>>, vector<1x64x128xbf16>
    %71 = vector.shape_cast %70 : vector<1x64x128xbf16> to vector<64x128xbf16>
    %72 = vector.shape_cast %69 : vector<64x128xbf16> to vector<1x64x128xbf16>
    tpu.vector_store %arg10[%c0_18, %c0_19, %c0_20], %72 {strides = array<i32>} : memref<4x64x256xbf16, #tpu.memory_space<vmem>>, vector<1x64x128xbf16>,
    %73 = vector.extract_strided_slice %29 {offsets = [0, 0, 128], sizes = [1, 64, 128], strides = [1, 1, 1]} : vector<4x64x256xf32> to vector<1x64x128xf32>
    %74 = vector.shape_cast %73 : vector<1x64x128xf32> to vector<64x128xf32>
    %75 = arith.truncf %74 : vector<64x128xf32> to vector<64x128xbf16>
    %76 = vector.extract_strided_slice %45 {offsets = [0, 0, 128], sizes = [1, 64, 128], strides = [1, 1, 1]} : vector<4x64x256xf32> to vector<1x64x128xf32>
    %77 = vector.shape_cast %76 : vector<1x64x128xf32> to vector<64x128xf32>
    %78 = arith.truncf %77 : vector<64x128xf32> to vector<64x128xbf16>
    %79 = vector.extract_strided_slice %46 {offsets = [0, 0, 128], sizes = [1, 64, 128], strides = [1, 1, 1]} : vector<4x64x256xf32> to vector<1x64x128xf32>
    %80 = vector.shape_cast %79 : vector<1x64x128xf32> to vector<64x128xf32>
    %81 = arith.truncf %80 : vector<64x128xf32> to vector<64x128xbf16>
    %cst_21 = arith.constant dense<0.000000e+00> : vector<64x64xf32>
    %82 = tpu.matmul %75, %78, %cst_21 {dimension_numbers = #tpu.dot_dimension_numbers<[1], [1], [0], [0], [0, 0, 1, 0], [], []>} : vector<64x128xbf16>, vector<64x128xbf16>, vector<64x64xf32> -> vector<64x64xf32>
    %cst_22 = arith.constant dense<0xFF800000> : vector<64xf32>
    %83 = vector.multi_reduction <maximumf>, %82, %cst_22 [1] : vector<64x64xf32> to vector<64xf32>
    %84 = vector.shape_cast %83 : vector<64xf32> to vector<64x1xf32>
    %85 = vector.broadcast %84 : vector<64x1xf32> to vector<64x64xf32>
    %86 = arith.subf %82, %85 : vector<64x64xf32>
    %87 = math.exp %86 : vector<64x64xf32>
    %cst_23 = arith.constant dense<0.000000e+00> : vector<64xf32>
    %88 = vector.multi_reduction <add>, %87, %cst_23 [1] : vector<64x64xf32> to vector<64xf32>
    %89 = vector.shape_cast %88 : vector<64xf32> to vector<64x1xf32>
    %90 = tpu.reciprocal %89 {approx = true} : vector<64x1xf32> -> vector<64x1xf32>
    %91 = vector.broadcast %90 : vector<64x1xf32> to vector<64x64xf32>
    %92 = arith.mulf %87, %91 : vector<64x64xf32>
    %93 = arith.truncf %92 : vector<64x64xf32> to vector<64x64xbf16>
    %cst_24 = arith.constant dense<0.000000e+00> : vector<64x128xf32>
    %94 = tpu.matmul %93, %81, %cst_24 {dimension_numbers = #tpu.dot_dimension_numbers<[1], [0], [0], [1], [0, 0, 1, 1], [], []>} : vector<64x64xbf16>, vector<64x128xbf16>, vector<64x128xf32> -> vector<64x128xf32>
    %95 = arith.truncf %94 : vector<64x128xf32> to vector<64x128xbf16>
    %c0_25 = arith.constant 0 : index
    %c0_26 = arith.constant 0 : index
    %c128 = arith.constant 128 : index
    %96 = vector.load %arg10[%c0_25, %c0_26, %c128] : memref<4x64x256xbf16, #tpu.memory_space<vmem>>, vector<1x64x128xbf16>
    %97 = vector.shape_cast %96 : vector<1x64x128xbf16> to vector<64x128xbf16>
    %98 = vector.shape_cast %95 : vector<64x128xbf16> to vector<1x64x128xbf16>
    tpu.vector_store %arg10[%c0_25, %c0_26, %c128], %98 {strides = array<i32>} : memref<4x64x256xbf16, #tpu.memory_space<vmem>>, vector<1x64x128xbf16>,
    %99 = vector.extract_strided_slice %29 {offsets = [1, 0, 0], sizes = [1, 64, 128], strides = [1, 1, 1]} : vector<4x64x256xf32> to vector<1x64x128xf32>
    %100 = vector.shape_cast %99 : vector<1x64x128xf32> to vector<64x128xf32>
    %101 = arith.truncf %100 : vector<64x128xf32> to vector<64x128xbf16>
    %102 = vector.extract_strided_slice %45 {offsets = [1, 0, 0], sizes = [1, 64, 128], strides = [1, 1, 1]} : vector<4x64x256xf32> to vector<1x64x128xf32>
    %103 = vector.shape_cast %102 : vector<1x64x128xf32> to vector<64x128xf32>
    %104 = arith.truncf %103 : vector<64x128xf32> to vector<64x128xbf16>
    %105 = vector.extract_strided_slice %46 {offsets = [1, 0, 0], sizes = [1, 64, 128], strides = [1, 1, 1]} : vector<4x64x256xf32> to vector<1x64x128xf32>
    %106 = vector.shape_cast %105 : vector<1x64x128xf32> to vector<64x128xf32>
    %107 = arith.truncf %106 : vector<64x128xf32> to vector<64x128xbf16>
    %cst_27 = arith.constant dense<0.000000e+00> : vector<64x64xf32>
    %108 = tpu.matmul %101, %104, %cst_27 {dimension_numbers = #tpu.dot_dimension_numbers<[1], [1], [0], [0], [0, 0, 1, 0], [], []>} : vector<64x128xbf16>, vector<64x128xbf16>, vector<64x64xf32> -> vector<64x64xf32>
    %cst_28 = arith.constant dense<0xFF800000> : vector<64xf32>
    %109 = vector.multi_reduction <maximumf>, %108, %cst_28 [1] : vector<64x64xf32> to vector<64xf32>
    %110 = vector.shape_cast %109 : vector<64xf32> to vector<64x1xf32>
    %111 = vector.broadcast %110 : vector<64x1xf32> to vector<64x64xf32>
    %112 = arith.subf %108, %111 : vector<64x64xf32>
    %113 = math.exp %112 : vector<64x64xf32>
    %cst_29 = arith.constant dense<0.000000e+00> : vector<64xf32>
    %114 = vector.multi_reduction <add>, %113, %cst_29 [1] : vector<64x64xf32> to vector<64xf32>
    %115 = vector.shape_cast %114 : vector<64xf32> to vector<64x1xf32>
    %116 = tpu.reciprocal %115 {approx = true} : vector<64x1xf32> -> vector<64x1xf32>
    %117 = vector.broadcast %116 : vector<64x1xf32> to vector<64x64xf32>
    %118 = arith.mulf %113, %117 : vector<64x64xf32>
    %119 = arith.truncf %118 : vector<64x64xf32> to vector<64x64xbf16>
    %cst_30 = arith.constant dense<0.000000e+00> : vector<64x128xf32>
    %120 = tpu.matmul %119, %107, %cst_30 {dimension_numbers = #tpu.dot_dimension_numbers<[1], [0], [0], [1], [0, 0, 1, 1], [], []>} : vector<64x64xbf16>, vector<64x128xbf16>, vector<64x128xf32> -> vector<64x128xf32>
    %121 = arith.truncf %120 : vector<64x128xf32> to vector<64x128xbf16>
    %c1 = arith.constant 1 : index
    %c0_31 = arith.constant 0 : index
    %c0_32 = arith.constant 0 : index
    %122 = vector.load %arg10[%c1, %c0_31, %c0_32] : memref<4x64x256xbf16, #tpu.memory_space<vmem>>, vector<1x64x128xbf16>
    %123 = vector.shape_cast %122 : vector<1x64x128xbf16> to vector<64x128xbf16>
    %124 = vector.shape_cast %121 : vector<64x128xbf16> to vector<1x64x128xbf16>
    tpu.vector_store %arg10[%c1, %c0_31, %c0_32], %124 {strides = array<i32>} : memref<4x64x256xbf16, #tpu.memory_space<vmem>>, vector<1x64x128xbf16>,
    %125 = vector.extract_strided_slice %29 {offsets = [1, 0, 128], sizes = [1, 64, 128], strides = [1, 1, 1]} : vector<4x64x256xf32> to vector<1x64x128xf32>
    %126 = vector.shape_cast %125 : vector<1x64x128xf32> to vector<64x128xf32>
    %127 = arith.truncf %126 : vector<64x128xf32> to vector<64x128xbf16>
    %128 = vector.extract_strided_slice %45 {offsets = [1, 0, 128], sizes = [1, 64, 128], strides = [1, 1, 1]} : vector<4x64x256xf32> to vector<1x64x128xf32>
    %129 = vector.shape_cast %128 : vector<1x64x128xf32> to vector<64x128xf32>
    %130 = arith.truncf %129 : vector<64x128xf32> to vector<64x128xbf16>
    %131 = vector.extract_strided_slice %46 {offsets = [1, 0, 128], sizes = [1, 64, 128], strides = [1, 1, 1]} : vector<4x64x256xf32> to vector<1x64x128xf32>
    %132 = vector.shape_cast %131 : vector<1x64x128xf32> to vector<64x128xf32>
    %133 = arith.truncf %132 : vector<64x128xf32> to vector<64x128xbf16>
    %cst_33 = arith.constant dense<0.000000e+00> : vector<64x64xf32>
    %134 = tpu.matmul %127, %130, %cst_33 {dimension_numbers = #tpu.dot_dimension_numbers<[1], [1], [0], [0], [0, 0, 1, 0], [], []>} : vector<64x128xbf16>, vector<64x128xbf16>, vector<64x64xf32> -> vector<64x64xf32>
    %cst_34 = arith.constant dense<0xFF800000> : vector<64xf32>
    %135 = vector.multi_reduction <maximumf>, %134, %cst_34 [1] : vector<64x64xf32> to vector<64xf32>
    %136 = vector.shape_cast %135 : vector<64xf32> to vector<64x1xf32>
    %137 = vector.broadcast %136 : vector<64x1xf32> to vector<64x64xf32>
    %138 = arith.subf %134, %137 : vector<64x64xf32>
    %139 = math.exp %138 : vector<64x64xf32>
    %cst_35 = arith.constant dense<0.000000e+00> : vector<64xf32>
    %140 = vector.multi_reduction <add>, %139, %cst_35 [1] : vector<64x64xf32> to vector<64xf32>
    %141 = vector.shape_cast %140 : vector<64xf32> to vector<64x1xf32>
    %142 = tpu.reciprocal %141 {approx = true} : vector<64x1xf32> -> vector<64x1xf32>
    %143 = vector.broadcast %142 : vector<64x1xf32> to vector<64x64xf32>
    %144 = arith.mulf %139, %143 : vector<64x64xf32>
    %145 = arith.truncf %144 : vector<64x64xf32> to vector<64x64xbf16>
    %cst_36 = arith.constant dense<0.000000e+00> : vector<64x128xf32>
    %146 = tpu.matmul %145, %133, %cst_36 {dimension_numbers = #tpu.dot_dimension_numbers<[1], [0], [0], [1], [0, 0, 1, 1], [], []>} : vector<64x64xbf16>, vector<64x128xbf16>, vector<64x128xf32> -> vector<64x128xf32>
    %147 = arith.truncf %146 : vector<64x128xf32> to vector<64x128xbf16>
    %c1_37 = arith.constant 1 : index
    %c0_38 = arith.constant 0 : index
    %c128_39 = arith.constant 128 : index
    %148 = vector.load %arg10[%c1_37, %c0_38, %c128_39] : memref<4x64x256xbf16, #tpu.memory_space<vmem>>, vector<1x64x128xbf16>
    %149 = vector.shape_cast %148 : vector<1x64x128xbf16> to vector<64x128xbf16>
    %150 = vector.shape_cast %147 : vector<64x128xbf16> to vector<1x64x128xbf16>
    tpu.vector_store %arg10[%c1_37, %c0_38, %c128_39], %150 {strides = array<i32>} : memref<4x64x256xbf16, #tpu.memory_space<vmem>>, vector<1x64x128xbf16>,
    %151 = vector.extract_strided_slice %29 {offsets = [2, 0, 0], sizes = [1, 64, 128], strides = [1, 1, 1]} : vector<4x64x256xf32> to vector<1x64x128xf32>
    %152 = vector.shape_cast %151 : vector<1x64x128xf32> to vector<64x128xf32>
    %153 = arith.truncf %152 : vector<64x128xf32> to vector<64x128xbf16>
    %154 = vector.extract_strided_slice %45 {offsets = [2, 0, 0], sizes = [1, 64, 128], strides = [1, 1, 1]} : vector<4x64x256xf32> to vector<1x64x128xf32>
    %155 = vector.shape_cast %154 : vector<1x64x128xf32> to vector<64x128xf32>
    %156 = arith.truncf %155 : vector<64x128xf32> to vector<64x128xbf16>
    %157 = vector.extract_strided_slice %46 {offsets = [2, 0, 0], sizes = [1, 64, 128], strides = [1, 1, 1]} : vector<4x64x256xf32> to vector<1x64x128xf32>
    %158 = vector.shape_cast %157 : vector<1x64x128xf32> to vector<64x128xf32>
    %159 = arith.truncf %158 : vector<64x128xf32> to vector<64x128xbf16>
    %cst_40 = arith.constant dense<0.000000e+00> : vector<64x64xf32>
    %160 = tpu.matmul %153, %156, %cst_40 {dimension_numbers = #tpu.dot_dimension_numbers<[1], [1], [0], [0], [0, 0, 1, 0], [], []>} : vector<64x128xbf16>, vector<64x128xbf16>, vector<64x64xf32> -> vector<64x64xf32>
    %cst_41 = arith.constant dense<0xFF800000> : vector<64xf32>
    %161 = vector.multi_reduction <maximumf>, %160, %cst_41 [1] : vector<64x64xf32> to vector<64xf32>
    %162 = vector.shape_cast %161 : vector<64xf32> to vector<64x1xf32>
    %163 = vector.broadcast %162 : vector<64x1xf32> to vector<64x64xf32>
    %164 = arith.subf %160, %163 : vector<64x64xf32>
    %165 = math.exp %164 : vector<64x64xf32>
    %cst_42 = arith.constant dense<0.000000e+00> : vector<64xf32>
    %166 = vector.multi_reduction <add>, %165, %cst_42 [1] : vector<64x64xf32> to vector<64xf32>
    %167 = vector.shape_cast %166 : vector<64xf32> to vector<64x1xf32>
    %168 = tpu.reciprocal %167 {approx = true} : vector<64x1xf32> -> vector<64x1xf32>
    %169 = vector.broadcast %168 : vector<64x1xf32> to vector<64x64xf32>
    %170 = arith.mulf %165, %169 : vector<64x64xf32>
    %171 = arith.truncf %170 : vector<64x64xf32> to vector<64x64xbf16>
    %cst_43 = arith.constant dense<0.000000e+00> : vector<64x128xf32>
    %172 = tpu.matmul %171, %159, %cst_43 {dimension_numbers = #tpu.dot_dimension_numbers<[1], [0], [0], [1], [0, 0, 1, 1], [], []>} : vector<64x64xbf16>, vector<64x128xbf16>, vector<64x128xf32> -> vector<64x128xf32>
    %173 = arith.truncf %172 : vector<64x128xf32> to vector<64x128xbf16>
    %c2 = arith.constant 2 : index
    %c0_44 = arith.constant 0 : index
    %c0_45 = arith.constant 0 : index
    %174 = vector.load %arg10[%c2, %c0_44, %c0_45] : memref<4x64x256xbf16, #tpu.memory_space<vmem>>, vector<1x64x128xbf16>
    %175 = vector.shape_cast %174 : vector<1x64x128xbf16> to vector<64x128xbf16>
    %176 = vector.shape_cast %173 : vector<64x128xbf16> to vector<1x64x128xbf16>
    tpu.vector_store %arg10[%c2, %c0_44, %c0_45], %176 {strides = array<i32>} : memref<4x64x256xbf16, #tpu.memory_space<vmem>>, vector<1x64x128xbf16>,
    %177 = vector.extract_strided_slice %29 {offsets = [2, 0, 128], sizes = [1, 64, 128], strides = [1, 1, 1]} : vector<4x64x256xf32> to vector<1x64x128xf32>
    %178 = vector.shape_cast %177 : vector<1x64x128xf32> to vector<64x128xf32>
    %179 = arith.truncf %178 : vector<64x128xf32> to vector<64x128xbf16>
    %180 = vector.extract_strided_slice %45 {offsets = [2, 0, 128], sizes = [1, 64, 128], strides = [1, 1, 1]} : vector<4x64x256xf32> to vector<1x64x128xf32>
    %181 = vector.shape_cast %180 : vector<1x64x128xf32> to vector<64x128xf32>
    %182 = arith.truncf %181 : vector<64x128xf32> to vector<64x128xbf16>
    %183 = vector.extract_strided_slice %46 {offsets = [2, 0, 128], sizes = [1, 64, 128], strides = [1, 1, 1]} : vector<4x64x256xf32> to vector<1x64x128xf32>
    %184 = vector.shape_cast %183 : vector<1x64x128xf32> to vector<64x128xf32>
    %185 = arith.truncf %184 : vector<64x128xf32> to vector<64x128xbf16>
    %cst_46 = arith.constant dense<0.000000e+00> : vector<64x64xf32>
    %186 = tpu.matmul %179, %182, %cst_46 {dimension_numbers = #tpu.dot_dimension_numbers<[1], [1], [0], [0], [0, 0, 1, 0], [], []>} : vector<64x128xbf16>, vector<64x128xbf16>, vector<64x64xf32> -> vector<64x64xf32>
    %cst_47 = arith.constant dense<0xFF800000> : vector<64xf32>
    %187 = vector.multi_reduction <maximumf>, %186, %cst_47 [1] : vector<64x64xf32> to vector<64xf32>
    %188 = vector.shape_cast %187 : vector<64xf32> to vector<64x1xf32>
    %189 = vector.broadcast %188 : vector<64x1xf32> to vector<64x64xf32>
    %190 = arith.subf %186, %189 : vector<64x64xf32>
    %191 = math.exp %190 : vector<64x64xf32>
    %cst_48 = arith.constant dense<0.000000e+00> : vector<64xf32>
    %192 = vector.multi_reduction <add>, %191, %cst_48 [1] : vector<64x64xf32> to vector<64xf32>
    %193 = vector.shape_cast %192 : vector<64xf32> to vector<64x1xf32>
    %194 = tpu.reciprocal %193 {approx = true} : vector<64x1xf32> -> vector<64x1xf32>
    %195 = vector.broadcast %194 : vector<64x1xf32> to vector<64x64xf32>
    %196 = arith.mulf %191, %195 : vector<64x64xf32>
    %197 = arith.truncf %196 : vector<64x64xf32> to vector<64x64xbf16>
    %cst_49 = arith.constant dense<0.000000e+00> : vector<64x128xf32>
    %198 = tpu.matmul %197, %185, %cst_49 {dimension_numbers = #tpu.dot_dimension_numbers<[1], [0], [0], [1], [0, 0, 1, 1], [], []>} : vector<64x64xbf16>, vector<64x128xbf16>, vector<64x128xf32> -> vector<64x128xf32>
    %199 = arith.truncf %198 : vector<64x128xf32> to vector<64x128xbf16>
    %c2_50 = arith.constant 2 : index
    %c0_51 = arith.constant 0 : index
    %c128_52 = arith.constant 128 : index
    %200 = vector.load %arg10[%c2_50, %c0_51, %c128_52] : memref<4x64x256xbf16, #tpu.memory_space<vmem>>, vector<1x64x128xbf16>
    %201 = vector.shape_cast %200 : vector<1x64x128xbf16> to vector<64x128xbf16>
    %202 = vector.shape_cast %199 : vector<64x128xbf16> to vector<1x64x128xbf16>
    tpu.vector_store %arg10[%c2_50, %c0_51, %c128_52], %202 {strides = array<i32>} : memref<4x64x256xbf16, #tpu.memory_space<vmem>>, vector<1x64x128xbf16>,
    %203 = vector.extract_strided_slice %29 {offsets = [3, 0, 0], sizes = [1, 64, 128], strides = [1, 1, 1]} : vector<4x64x256xf32> to vector<1x64x128xf32>
    %204 = vector.shape_cast %203 : vector<1x64x128xf32> to vector<64x128xf32>
    %205 = arith.truncf %204 : vector<64x128xf32> to vector<64x128xbf16>
    %206 = vector.extract_strided_slice %45 {offsets = [3, 0, 0], sizes = [1, 64, 128], strides = [1, 1, 1]} : vector<4x64x256xf32> to vector<1x64x128xf32>
    %207 = vector.shape_cast %206 : vector<1x64x128xf32> to vector<64x128xf32>
    %208 = arith.truncf %207 : vector<64x128xf32> to vector<64x128xbf16>
    %209 = vector.extract_strided_slice %46 {offsets = [3, 0, 0], sizes = [1, 64, 128], strides = [1, 1, 1]} : vector<4x64x256xf32> to vector<1x64x128xf32>
    %210 = vector.shape_cast %209 : vector<1x64x128xf32> to vector<64x128xf32>
    %211 = arith.truncf %210 : vector<64x128xf32> to vector<64x128xbf16>
    %cst_53 = arith.constant dense<0.000000e+00> : vector<64x64xf32>
    %212 = tpu.matmul %205, %208, %cst_53 {dimension_numbers = #tpu.dot_dimension_numbers<[1], [1], [0], [0], [0, 0, 1, 0], [], []>} : vector<64x128xbf16>, vector<64x128xbf16>, vector<64x64xf32> -> vector<64x64xf32>
    %cst_54 = arith.constant dense<0xFF800000> : vector<64xf32>
    %213 = vector.multi_reduction <maximumf>, %212, %cst_54 [1] : vector<64x64xf32> to vector<64xf32>
    %214 = vector.shape_cast %213 : vector<64xf32> to vector<64x1xf32>
    %215 = vector.broadcast %214 : vector<64x1xf32> to vector<64x64xf32>
    %216 = arith.subf %212, %215 : vector<64x64xf32>
    %217 = math.exp %216 : vector<64x64xf32>
    %cst_55 = arith.constant dense<0.000000e+00> : vector<64xf32>
    %218 = vector.multi_reduction <add>, %217, %cst_55 [1] : vector<64x64xf32> to vector<64xf32>
    %219 = vector.shape_cast %218 : vector<64xf32> to vector<64x1xf32>
    %220 = tpu.reciprocal %219 {approx = true} : vector<64x1xf32> -> vector<64x1xf32>
    %221 = vector.broadcast %220 : vector<64x1xf32> to vector<64x64xf32>
    %222 = arith.mulf %217, %221 : vector<64x64xf32>
    %223 = arith.truncf %222 : vector<64x64xf32> to vector<64x64xbf16>
    %cst_56 = arith.constant dense<0.000000e+00> : vector<64x128xf32>
    %224 = tpu.matmul %223, %211, %cst_56 {dimension_numbers = #tpu.dot_dimension_numbers<[1], [0], [0], [1], [0, 0, 1, 1], [], []>} : vector<64x64xbf16>, vector<64x128xbf16>, vector<64x128xf32> -> vector<64x128xf32>
    %225 = arith.truncf %224 : vector<64x128xf32> to vector<64x128xbf16>
    %c3 = arith.constant 3 : index
    %c0_57 = arith.constant 0 : index
    %c0_58 = arith.constant 0 : index
    %226 = vector.load %arg10[%c3, %c0_57, %c0_58] : memref<4x64x256xbf16, #tpu.memory_space<vmem>>, vector<1x64x128xbf16>
    %227 = vector.shape_cast %226 : vector<1x64x128xbf16> to vector<64x128xbf16>
    %228 = vector.shape_cast %225 : vector<64x128xbf16> to vector<1x64x128xbf16>
    tpu.vector_store %arg10[%c3, %c0_57, %c0_58], %228 {strides = array<i32>} : memref<4x64x256xbf16, #tpu.memory_space<vmem>>, vector<1x64x128xbf16>,
    %229 = vector.extract_strided_slice %29 {offsets = [3, 0, 128], sizes = [1, 64, 128], strides = [1, 1, 1]} : vector<4x64x256xf32> to vector<1x64x128xf32>
    %230 = vector.shape_cast %229 : vector<1x64x128xf32> to vector<64x128xf32>
    %231 = arith.truncf %230 : vector<64x128xf32> to vector<64x128xbf16>
    %232 = vector.extract_strided_slice %45 {offsets = [3, 0, 128], sizes = [1, 64, 128], strides = [1, 1, 1]} : vector<4x64x256xf32> to vector<1x64x128xf32>
    %233 = vector.shape_cast %232 : vector<1x64x128xf32> to vector<64x128xf32>
    %234 = arith.truncf %233 : vector<64x128xf32> to vector<64x128xbf16>
    %235 = vector.extract_strided_slice %46 {offsets = [3, 0, 128], sizes = [1, 64, 128], strides = [1, 1, 1]} : vector<4x64x256xf32> to vector<1x64x128xf32>
    %236 = vector.shape_cast %235 : vector<1x64x128xf32> to vector<64x128xf32>
    %237 = arith.truncf %236 : vector<64x128xf32> to vector<64x128xbf16>
    %cst_59 = arith.constant dense<0.000000e+00> : vector<64x64xf32>
    %238 = tpu.matmul %231, %234, %cst_59 {dimension_numbers = #tpu.dot_dimension_numbers<[1], [1], [0], [0], [0, 0, 1, 0], [], []>} : vector<64x128xbf16>, vector<64x128xbf16>, vector<64x64xf32> -> vector<64x64xf32>
    %cst_60 = arith.constant dense<0xFF800000> : vector<64xf32>
    %239 = vector.multi_reduction <maximumf>, %238, %cst_60 [1] : vector<64x64xf32> to vector<64xf32>
    %240 = vector.shape_cast %239 : vector<64xf32> to vector<64x1xf32>
    %241 = vector.broadcast %240 : vector<64x1xf32> to vector<64x64xf32>
    %242 = arith.subf %238, %241 : vector<64x64xf32>
    %243 = math.exp %242 : vector<64x64xf32>
    %cst_61 = arith.constant dense<0.000000e+00> : vector<64xf32>
    %244 = vector.multi_reduction <add>, %243, %cst_61 [1] : vector<64x64xf32> to vector<64xf32>
    %245 = vector.shape_cast %244 : vector<64xf32> to vector<64x1xf32>
    %246 = tpu.reciprocal %245 {approx = true} : vector<64x1xf32> -> vector<64x1xf32>
    %247 = vector.broadcast %246 : vector<64x1xf32> to vector<64x64xf32>
    %248 = arith.mulf %243, %247 : vector<64x64xf32>
    %249 = arith.truncf %248 : vector<64x64xf32> to vector<64x64xbf16>
    %cst_62 = arith.constant dense<0.000000e+00> : vector<64x128xf32>
    %250 = tpu.matmul %249, %237, %cst_62 {dimension_numbers = #tpu.dot_dimension_numbers<[1], [0], [0], [1], [0, 0, 1, 1], [], []>} : vector<64x64xbf16>, vector<64x128xbf16>, vector<64x128xf32> -> vector<64x128xf32>
    %251 = arith.truncf %250 : vector<64x128xf32> to vector<64x128xbf16>
    %c3_63 = arith.constant 3 : index
    %c0_64 = arith.constant 0 : index
    %c128_65 = arith.constant 128 : index
    %252 = vector.load %arg10[%c3_63, %c0_64, %c128_65] : memref<4x64x256xbf16, #tpu.memory_space<vmem>>, vector<1x64x128xbf16>
    %253 = vector.shape_cast %252 : vector<1x64x128xbf16> to vector<64x128xbf16>
    %254 = vector.shape_cast %251 : vector<64x128xbf16> to vector<1x64x128xbf16>
    tpu.vector_store %arg10[%c3_63, %c0_64, %c128_65], %254 {strides = array<i32>} : memref<4x64x256xbf16, #tpu.memory_space<vmem>>, vector<1x64x128xbf16>,
    %c0_66 = arith.constant 0 : index
    %c0_67 = arith.constant 0 : index
    %c0_68 = arith.constant 0 : index
    %255 = vector.load %arg10[%c0_66, %c0_67, %c0_68] : memref<4x64x256xbf16, #tpu.memory_space<vmem>>, vector<4x64x256xbf16>
    %256 = vector.shape_cast %255 : vector<4x64x256xbf16> to vector<256x256xbf16>
    %c0_69 = arith.constant 0 : index
    %c0_70 = arith.constant 0 : index
    %257 = vector.load %arg4[%c0_69, %c0_70] : memref<256x256xbf16, #tpu.memory_space<vmem>>, vector<256x256xbf16>
    %cst_71 = arith.constant dense<0.000000e+00> : vector<256x256xf32>
    %258 = tpu.matmul %256, %257, %cst_71 {dimension_numbers = #tpu.dot_dimension_numbers<[1], [0], [0], [1], [0, 0, 1, 1], [], []>} : vector<256x256xbf16>, vector<256x256xbf16>, vector<256x256xf32> -> vector<256x256xf32>
    %c0_72 = arith.constant 0 : index
    %c0_73 = arith.constant 0 : index
    %259 = vector.load %arg5[%c0_72, %c0_73] : memref<1x256xf32, #tpu.memory_space<vmem>>, vector<1x256xf32>
    %260 = vector.broadcast %259 : vector<1x256xf32> to vector<256x256xf32>
    %261 = arith.addf %258, %260 : vector<256x256xf32>
    %262 = vector.shape_cast %261 : vector<256x256xf32> to vector<4x64x256xf32>
    %c0_74 = arith.constant 0 : index
    %c0_75 = arith.constant 0 : index
    %c0_76 = arith.constant 0 : index
    %263 = vector.load %arg9[%c0_74, %c0_75, %c0_76] : memref<4x64x256xf32, #tpu.memory_space<vmem>>, vector<4x64x256xf32>
    tpu.vector_store %arg9[%c0_74, %c0_75, %c0_76], %262 {strides = array<i32>} : memref<4x64x256xf32, #tpu.memory_space<vmem>>, vector<4x64x256xf32>,
    return
  }
  func.func @transform_0(%arg0: i32) -> (i32, i32, i32) {
    %c0_i32 = arith.constant 0 : i32
    %c0_i32_0 = arith.constant 0 : i32
    %c0_i32_1 = arith.constant 0 : i32
    return %arg0, %c0_i32, %c0_i32_0 : i32, i32, i32
  }
  func.func @transform_1(%arg0: i32) -> (i32, i32) {
    %c0_i32 = arith.constant 0 : i32
    %c0_i32_0 = arith.constant 0 : i32
    %c0_i32_1 = arith.constant 0 : i32
    return %c0_i32, %c0_i32_0 : i32, i32
  }
  func.func @transform_2(%arg0: i32) -> (i32, i32) {
    %c0_i32 = arith.constant 0 : i32
    %c0_i32_0 = arith.constant 0 : i32
    %c0_i32_1 = arith.constant 0 : i32
    return %c0_i32, %c0_i32_0 : i32, i32
  }
  func.func @transform_3(%arg0: i32) -> (i32, i32) {
    %c0_i32 = arith.constant 0 : i32
    %c0_i32_0 = arith.constant 0 : i32
    %c0_i32_1 = arith.constant 0 : i32
    return %c0_i32, %c0_i32_0 : i32, i32
  }
  func.func @transform_4(%arg0: i32) -> (i32, i32) {
    %c0_i32 = arith.constant 0 : i32
    %c0_i32_0 = arith.constant 0 : i32
    %c0_i32_1 = arith.constant 0 : i32
    return %c0_i32, %c0_i32_0 : i32, i32
  }
  func.func @transform_5(%arg0: i32) -> (i32, i32) {
    %c0_i32 = arith.constant 0 : i32
    %c0_i32_0 = arith.constant 0 : i32
    %c0_i32_1 = arith.constant 0 : i32
    return %c0_i32, %c0_i32_0 : i32, i32
  }
  func.func @transform_6(%arg0: i32) -> (i32, i32) {
    %c0_i32 = arith.constant 0 : i32
    %c0_i32_0 = arith.constant 0 : i32
    %c0_i32_1 = arith.constant 0 : i32
    return %c0_i32, %c0_i32_0 : i32, i32
  }
  func.func @transform_7(%arg0: i32) -> (i32, i32) {
    %c0_i32 = arith.constant 0 : i32
    %c0_i32_0 = arith.constant 0 : i32
    %c0_i32_1 = arith.constant 0 : i32
    return %c0_i32, %c0_i32_0 : i32, i32
  }
  func.func @transform_8(%arg0: i32) -> (i32, i32, i32) {
    %c0_i32 = arith.constant 0 : i32
    %c0_i32_0 = arith.constant 0 : i32
    %c0_i32_1 = arith.constant 0 : i32
    return %arg0, %c0_i32, %c0_i32_0 : i32, i32, i32
  }
}

</mosaic_0001>

<llo_original>
// kernel: tpu_custom_call.1
$region0: #{tpu_custom_call.1}
  #allocation0 [shape = 'u32[]', space=smem, size = 0x4, offset = 0x4, fixed_abs, tag = 'smem constant byte address 0x4 - core index']
  #allocation1 [shape = 'u32[72,128]{1,0:T(1,128)}', space=vmem, size = 0x9000, scoped, tag = 'internal scratch']
  #allocation2 [shape = 'bf16[4,64,256]{2,1,0:T(8,128)(2,1)}', space=vmem, size = 0x20000, scoped, tag = 'scratch operand']
  %s0 = inlined_call_operand.hbm [shape: f32[8,64,256], index: 0, kind: input, shape index: {}]
  %s1 = inlined_call_operand.hbm [shape: bf16[256,768], index: 1, kind: input, shape index: {}]
  %s2 = inlined_call_operand.hbm [shape: f32[1,768], index: 2, kind: input, shape index: {}]
  %s3 = inlined_call_operand.hbm [shape: bf16[256,256], index: 3, kind: input, shape index: {}]
  %s4 = inlined_call_operand.vmem [shape: f32[1,256], index: 4, kind: input, shape index: {}]
  %s5 = inlined_call_operand.hbm [shape: f32[64,256], index: 5, kind: input, shape index: {}]
  %s6 = inlined_call_operand.hbm [shape: f32[64,256], index: 6, kind: input, shape index: {}]
  %s7 = inlined_call_operand.hbm [shape: f32[64,256], index: 7, kind: input, shape index: {}]
  %s8 = inlined_call_operand.hbm [shape: f32[8,64,256], index: 8, kind: output, shape index: {}]
  %s9 = sld [smem:[#allocation0]]
  $region93: #{tpu_custom_call.1} parent=0
    _
  %s11 = ssub.s32 1, %s9
  %s12 = scalar_select 0, %s11, %s9
  $region1: #{tpu_custom_call.1} parent=0
    #allocation3 [shape = 'u8[524288]{0}', space=vmem, size = 0x80000, scoped, tag = 'input window, operand 0']
    #allocation4 [shape = 's32[2]{0}', space=sflag, size = 0x8, scoped, tag = 'scoped memory for tpu_custom_call.1']
    #allocation5 [shape = 's32[2]{0}', space=sflag, size = 0x8, scoped, tag = 'scoped memory for tpu_custom_call.1']
    #allocation6 [shape = 'u8[393216]{0}', space=vmem, size = 0x60000, scoped, tag = 'input window, operand 1, single buffered']
    #allocation7 [shape = 's32[1]{0}', space=sflag, size = 0x4, scoped, tag = 'scoped memory for tpu_custom_call.1']
    #allocation8 [shape = 'u8[3072]{0}', space=vmem, size = 0xc00, scoped, tag = 'input window, operand 2, single buffered']
    #allocation9 [shape = 'u8[131072]{0}', space=vmem, size = 0x20000, scoped, tag = 'input window, operand 3, single buffered']
    #allocation10 [shape = 's32[1]{0}', space=sflag, size = 0x4, scoped, tag = 'scoped memory for tpu_custom_call.1']
    #allocation11 [shape = 'u8[65536]{0}', space=vmem, size = 0x10000, scoped, tag = 'input window, operand 5, single buffered']
    #allocation12 [shape = 'u8[65536]{0}', space=vmem, size = 0x10000, scoped, tag = 'input window, operand 6, single buffered']
    #allocation13 [shape = 's32[1]{0}', space=sflag, size = 0x4, scoped, tag = 'scoped memory for tpu_custom_call.1']
    #allocation14 [shape = 'u8[65536]{0}', space=vmem, size = 0x10000, scoped, tag = 'input window, operand 7, single buffered']
    #allocation15 [shape = 'u8[524288]{0}', space=vmem, size = 0x80000, scoped, tag = 'output window, operand 0']
    %13 = vsyncpa [#allocation4], 0
    %s14 = scalar_lea.sflag [#allocation4], 1
    %15 = vsyncpa %s14, 0
    %16 = vsyncpa [#allocation7], 0
    %17 = vsyncpa [#allocation10], 0
    %18 = vsyncpa [#allocation13], 0
    %19 = vsyncpa [#allocation5], 0
    %s20 = scalar_lea.sflag [#allocation5], 1
    %21 = vsyncpa %s20, 0
    loop: start=0, step=1, limit=4
    $region2: #{tpu_custom_call.1} parent=1 // loop_pre_header
      _
    $region3: #{tpu_custom_call.1} parent=1 // loop_header
      %s23 = sphi 0, %s27
      %p24 = scmp.ge.s32.totalorder %s23, 4
      %s33 = sphi 0, %s35
      %s36 = sphi 0, %s33
      %s37 = sphi 0, %s36
      %s53 = sphi 0, %s37
      %s57 = sphi 0, %s57
      %s59 = sphi 0, %s57
      %s60 = sphi 0, %s59
      %s74 = sphi 0, %s60
      %s78 = sphi 0, %s78
      %s80 = sphi 0, %s78
      %s81 = sphi 0, %s80
      %s95 = sphi 0, %s81
      %s99 = sphi 0, %s99
      %s101 = sphi 0, %s99
      %s102 = sphi 0, %s101
      %s116 = sphi 0, %s102
      %s120 = sphi 0, %s120
      %s122 = sphi 0, %s120
      %s123 = sphi 0, %s122
      %s137 = sphi 0, %s123
      %s141 = sphi 0, %s141
      %s143 = sphi 0, %s141
      %s144 = sphi 0, %s143
      %s158 = sphi 0, %s144
      %s162 = sphi 0, %s162
      %s164 = sphi 0, %s162
      %s165 = sphi 0, %s164
      %s179 = sphi 0, %s165
      %s183 = sphi 0, %s183
      %s185 = sphi 0, %s183
      %s186 = sphi 0, %s185
      %s200 = sphi 0, %s186
      %s206 = sphi 0, %s208
      %s209 = sphi 0, %s206
      %s210 = sphi 0, %s209
      %s226 = sphi 0, %s210
    $region4: #{tpu_custom_call.1} parent=1 // loop_header_branch
      %26 = sbr.rel (%p24) target = $region8
    $region5: #{tpu_custom_call.1} parent=1 // loop_body
      %s28 = ssub.s32 %s23, 1
      %s29 = ssub.s32 %s23, 2
      %s30 = sadd.s32 %s23, 1
      %s31 = ssub.s32 %s23, %s30
      %p32 = scmp.eq.s32.totalorder %s31, 0
      %s34 = sadd.s32 %s33, 1
      %s35 = scalar_select %p32, %s33, %s34
      %p38 = pneg %p32
      %p39 = scmp.eq.s32.totalorder %s23, 1
      %p40 = por %p38, %p39
      %p41 = scmp.ne.s32.totalorder %s33, %s36
      %p42 = scmp.eq.s32.totalorder %s23, 0
      %p43 = por %p41, %p42
      %p44 = scmp.ne.s32.totalorder %s33, %s36
      %p45 = scmp.eq.s32.totalorder %s28, 1
      %p46 = por %p44, %p45
      %p47 = scmp.ne.s32.totalorder %s36, %s37
      %p48 = scmp.eq.s32.totalorder %s28, 0
      %p49 = por %p47, %p48
      %p50 = scmp.ne.s32.totalorder %s36, %s37
      %p51 = scmp.eq.s32.totalorder %s29, 1
      %p52 = por %p50, %p51
      %p54 = scmp.ne.s32.totalorder %s37, %s53
      %p55 = scmp.eq.s32.totalorder %s29, 0
      %p56 = por %p54, %p55
      %s58 = sadd.s32 %s57, 1
      %p61 = scmp.eq.s32.totalorder %s23, 1
      %p62 = scmp.ne.s32.totalorder %s57, %s59
      %p63 = scmp.eq.s32.totalorder %s23, 0
      %p64 = por %p62, %p63
      %p65 = scmp.ne.s32.totalorder %s57, %s59
      %p66 = scmp.eq.s32.totalorder %s28, 1
      %p67 = por %p65, %p66
      %p68 = scmp.ne.s32.totalorder %s59, %s60
      %p69 = scmp.eq.s32.totalorder %s28, 0
      %p70 = por %p68, %p69
      %p71 = scmp.ne.s32.totalorder %s59, %s60
      %p72 = scmp.eq.s32.totalorder %s29, 1
      %p73 = por %p71, %p72
      %p75 = scmp.ne.s32.totalorder %s60, %s74
      %p76 = scmp.eq.s32.totalorder %s29, 0
      %p77 = por %p75, %p76
      %s79 = sadd.s32 %s78, 1
      %p82 = scmp.eq.s32.totalorder %s23, 1
      %p83 = scmp.ne.s32.totalorder %s78, %s80
      %p84 = scmp.eq.s32.totalorder %s23, 0
      %p85 = por %p83, %p84
      %p86 = scmp.ne.s32.totalorder %s78, %s80
      %p87 = scmp.eq.s32.totalorder %s28, 1
      %p88 = por %p86, %p87
      %p89 = scmp.ne.s32.totalorder %s80, %s81
      %p90 = scmp.eq.s32.totalorder %s28, 0
      %p91 = por %p89, %p90
      %p92 = scmp.ne.s32.totalorder %s80, %s81
      %p93 = scmp.eq.s32.totalorder %s29, 1
      %p94 = por %p92, %p93
      %p96 = scmp.ne.s32.totalorder %s81, %s95
      %p97 = scmp.eq.s32.totalorder %s29, 0
      %p98 = por %p96, %p97
      %s100 = sadd.s32 %s99, 1
      %p103 = scmp.eq.s32.totalorder %s23, 1
      %p104 = scmp.ne.s32.totalorder %s99, %s101
      %p105 = scmp.eq.s32.totalorder %s23, 0
      %p106 = por %p104, %p105
      %p107 = scmp.ne.s32.totalorder %s99, %s101
      %p108 = scmp.eq.s32.totalorder %s28, 1
      %p109 = por %p107, %p108
      %p110 = scmp.ne.s32.totalorder %s101, %s102
      %p111 = scmp.eq.s32.totalorder %s28, 0
      %p112 = por %p110, %p111
      %p113 = scmp.ne.s32.totalorder %s101, %s102
      %p114 = scmp.eq.s32.totalorder %s29, 1
      %p115 = por %p113, %p114
      %p117 = scmp.ne.s32.totalorder %s102, %s116
      %p118 = scmp.eq.s32.totalorder %s29, 0
      %p119 = por %p117, %p118
      %s121 = sadd.s32 %s120, 1
      %p124 = scmp.eq.s32.totalorder %s23, 1
      %p125 = scmp.ne.s32.totalorder %s120, %s122
      %p126 = scmp.eq.s32.totalorder %s23, 0
      %p127 = por %p125, %p126
      %p128 = scmp.ne.s32.totalorder %s120, %s122
      %p129 = scmp.eq.s32.totalorder %s28, 1
      %p130 = por %p128, %p129
      %p131 = scmp.ne.s32.totalorder %s122, %s123
      %p132 = scmp.eq.s32.totalorder %s28, 0
      %p133 = por %p131, %p132
      %p134 = scmp.ne.s32.totalorder %s122, %s123
      %p135 = scmp.eq.s32.totalorder %s29, 1
      %p136 = por %p134, %p135
      %p138 = scmp.ne.s32.totalorder %s123, %s137
      %p139 = scmp.eq.s32.totalorder %s29, 0
      %p140 = por %p138, %p139
      %s142 = sadd.s32 %s141, 1
      %p145 = scmp.eq.s32.totalorder %s23, 1
      %p146 = scmp.ne.s32.totalorder %s141, %s143
      %p147 = scmp.eq.s32.totalorder %s23, 0
      %p148 = por %p146, %p147
      %p149 = scmp.ne.s32.totalorder %s141, %s143
      %p150 = scmp.eq.s32.totalorder %s28, 1
      %p151 = por %p149, %p150
      %p152 = scmp.ne.s32.totalorder %s143, %s144
      %p153 = scmp.eq.s32.totalorder %s28, 0
      %p154 = por %p152, %p153
      %p155 = scmp.ne.s32.totalorder %s143, %s144
      %p156 = scmp.eq.s32.totalorder %s29, 1
      %p157 = por %p155, %p156
      %p159 = scmp.ne.s32.totalorder %s144, %s158
      %p160 = scmp.eq.s32.totalorder %s29, 0
      %p161 = por %p159, %p160
      %s163 = sadd.s32 %s162, 1
      %p166 = scmp.eq.s32.totalorder %s23, 1
      %p167 = scmp.ne.s32.totalorder %s162, %s164
      %p168 = scmp.eq.s32.totalorder %s23, 0
      %p169 = por %p167, %p168
      %p170 = scmp.ne.s32.totalorder %s162, %s164
      %p171 = scmp.eq.s32.totalorder %s28, 1
      %p172 = por %p170, %p171
      %p173 = scmp.ne.s32.totalorder %s164, %s165
      %p174 = scmp.eq.s32.totalorder %s28, 0
      %p175 = por %p173, %p174
      %p176 = scmp.ne.s32.totalorder %s164, %s165
      %p177 = scmp.eq.s32.totalorder %s29, 1
      %p178 = por %p176, %p177
      %p180 = scmp.ne.s32.totalorder %s165, %s179
      %p181 = scmp.eq.s32.totalorder %s29, 0
      %p182 = por %p180, %p181
      %s184 = sadd.s32 %s183, 1
      %p187 = scmp.eq.s32.totalorder %s23, 1
      %p188 = scmp.ne.s32.totalorder %s183, %s185
      %p189 = scmp.eq.s32.totalorder %s23, 0
      %p190 = por %p188, %p189
      %p191 = scmp.ne.s32.totalorder %s183, %s185
      %p192 = scmp.eq.s32.totalorder %s28, 1
      %p193 = por %p191, %p192
      %p194 = scmp.ne.s32.totalorder %s185, %s186
      %p195 = scmp.eq.s32.totalorder %s28, 0
      %p196 = por %p194, %p195
      %p197 = scmp.ne.s32.totalorder %s185, %s186
      %p198 = scmp.eq.s32.totalorder %s29, 1
      %p199 = por %p197, %p198
      %p201 = scmp.ne.s32.totalorder %s186, %s200
      %p202 = scmp.eq.s32.totalorder %s29, 0
      %p203 = por %p201, %p202
      %s204 = ssub.s32 %s23, %s30
      %p205 = scmp.eq.s32.totalorder %s204, 0
      %s207 = sadd.s32 %s206, 1
      %s208 = scalar_select %p205, %s206, %s207
      %p211 = pneg %p205
      %p212 = scmp.eq.s32.totalorder %s23, 1
      %p213 = por %p211, %p212
      %p214 = scmp.ne.s32.totalorder %s206, %s209
      %p215 = scmp.eq.s32.totalorder %s23, 0
      %p216 = por %p214, %p215
      %p217 = scmp.ne.s32.totalorder %s206, %s209
      %p218 = scmp.eq.s32.totalorder %s28, 1
      %p219 = por %p217, %p218
      %p220 = scmp.ne.s32.totalorder %s209, %s210
      %p221 = scmp.eq.s32.totalorder %s28, 0
      %p222 = por %p220, %p221
      %p223 = scmp.ne.s32.totalorder %s209, %s210
      %p224 = scmp.eq.s32.totalorder %s29, 1
      %p225 = por %p223, %p224
      %p227 = scmp.ne.s32.totalorder %s210, %s226
      %p228 = scmp.eq.s32.totalorder %s29, 0
      %p229 = por %p227, %p228
      %p230 = scmp.le.s32.totalorder 1, %s23
      %p231 = scmp.lt.s32.totalorder %s23, 3
      %p232 = pnand %p230, %p231
      %p233 = pneg %p232
      // Predicated region
      $region9: #{tpu_custom_call.1} parent=5 // pred_check
        _
      $region10: #{tpu_custom_call.1} parent=5 // pred_check_branch
        %235 = sbr.rel (%p232) target = $region12
      $region11: #{tpu_custom_call.1} parent=5 // pred_region
        %s236 = ssub.s32 %s23, 1
        // Predicated region
        $region13: #{tpu_custom_call.1} parent=11 // pred_check
          %p237 = pneg %p70
        $region14: #{tpu_custom_call.1} parent=11 // pred_check_branch
          %239 = sbr.rel (%p237) target = $region16
        $region15: #{tpu_custom_call.1} parent=11 // pred_region
          %241 = vsyncadd [#allocation7], 0
          %s242 = sshll.u32 %s1, 4
          %s243 = int_to_ptr.hbm [resolvable:$true] %s242
          %s244 = sshll.u32 [#allocation6], 4
          %s245 = int_to_ptr.vmem [resolvable:$true] %s244
          %250 = dma.hbm_to_vmem [thread:$0]  %s243, 12288, %s245, [#allocation7], 384, 384, 24
        $region16: #{tpu_custom_call.1} parent=11 // pred_fallthru
          _
        // Predicated region
        $region17: #{tpu_custom_call.1} parent=11 // pred_check
          %p251 = pneg %p91
        $region18: #{tpu_custom_call.1} parent=11 // pred_check_branch
          %253 = sbr.rel (%p251) target = $region20
        $region19: #{tpu_custom_call.1} parent=11 // pred_region
          %255 = vsyncadd [#allocation7], 0
          %s257 = sshll.u32 %s2, 4
          %s258 = int_to_ptr.hbm [resolvable:$true] %s257
          %s259 = sshll.u32 [#allocation8], 4
          %s260 = int_to_ptr.vmem [resolvable:$true] %s259
          %262 = dma.hbm_to_vmem [thread:$0]  %s258, 96, %s260, [#allocation7]
        $region20: #{tpu_custom_call.1} parent=11 // pred_fallthru
          _
        // Predicated region
        $region21: #{tpu_custom_call.1} parent=11 // pred_check
          %p263 = pneg %p112
        $region22: #{tpu_custom_call.1} parent=11 // pred_check_branch
          %265 = sbr.rel (%p263) target = $region24
        $region23: #{tpu_custom_call.1} parent=11 // pred_region
          %267 = vsyncadd [#allocation10], 0
          %s268 = sshll.u32 %s3, 4
          %s269 = int_to_ptr.hbm [resolvable:$true] %s268
          %s270 = sshll.u32 [#allocation9], 4
          %s271 = int_to_ptr.vmem [resolvable:$true] %s270
          %276 = dma.hbm_to_vmem [thread:$0]  %s269, 4096, %s271, [#allocation10], 128, 128, 8
        $region24: #{tpu_custom_call.1} parent=11 // pred_fallthru
          _
        // Predicated region
        $region25: #{tpu_custom_call.1} parent=11 // pred_check
          %p277 = pneg %p133
        $region26: #{tpu_custom_call.1} parent=11 // pred_check_branch
          %279 = sbr.rel (%p277) target = $region28
        $region27: #{tpu_custom_call.1} parent=11 // pred_region
          _
        $region28: #{tpu_custom_call.1} parent=11 // pred_fallthru
          _
        // Predicated region
        $region29: #{tpu_custom_call.1} parent=11 // pred_check
          %p280 = pneg %p154
        $region30: #{tpu_custom_call.1} parent=11 // pred_check_branch
          %282 = sbr.rel (%p280) target = $region32
        $region31: #{tpu_custom_call.1} parent=11 // pred_region
          %284 = vsyncadd [#allocation10], 0
          %s285 = sshll.u32 %s5, 4
          %s286 = int_to_ptr.hbm [resolvable:$true] %s285
          %s287 = sshll.u32 [#allocation11], 4
          %s288 = int_to_ptr.vmem [resolvable:$true] %s287
          %293 = dma.hbm_to_vmem [thread:$0]  %s286, 2048, %s288, [#allocation10], 256, 256, 16
        $region32: #{tpu_custom_call.1} parent=11 // pred_fallthru
          _
        // Predicated region
        $region33: #{tpu_custom_call.1} parent=11 // pred_check
          %p294 = pneg %p175
        $region34: #{tpu_custom_call.1} parent=11 // pred_check_branch
          %296 = sbr.rel (%p294) target = $region36
        $region35: #{tpu_custom_call.1} parent=11 // pred_region
          %298 = vsyncadd [#allocation13], 0
          %s299 = sshll.u32 %s6, 4
          %s300 = int_to_ptr.hbm [resolvable:$true] %s299
          %s301 = sshll.u32 [#allocation12], 4
          %s302 = int_to_ptr.vmem [resolvable:$true] %s301
          %307 = dma.hbm_to_vmem [thread:$0]  %s300, 2048, %s302, [#allocation13], 256, 256, 16
        $region36: #{tpu_custom_call.1} parent=11 // pred_fallthru
          _
        // Predicated region
        $region37: #{tpu_custom_call.1} parent=11 // pred_check
          %p308 = pneg %p196
        $region38: #{tpu_custom_call.1} parent=11 // pred_check_branch
          %310 = sbr.rel (%p308) target = $region40
        $region39: #{tpu_custom_call.1} parent=11 // pred_region
          %312 = vsyncadd [#allocation13], 0
          %s313 = sshll.u32 %s7, 4
          %s314 = int_to_ptr.hbm [resolvable:$true] %s313
          %s315 = sshll.u32 [#allocation14], 4
          %s316 = int_to_ptr.vmem [resolvable:$true] %s315
          %321 = dma.hbm_to_vmem [thread:$0]  %s314, 2048, %s316, [#allocation13], 256, 256, 16
        $region40: #{tpu_custom_call.1} parent=11 // pred_fallthru
          _
      $region12: #{tpu_custom_call.1} parent=5 // pred_fallthru
        _
      %p322 = scmp.lt.s32.totalorder %s23, 2
      // Predicated region
      $region41: #{tpu_custom_call.1} parent=5 // pred_check
        %p323 = pneg %p322
      $region42: #{tpu_custom_call.1} parent=5 // pred_check_branch
        %325 = sbr.rel (%p323) target = $region44
      $region43: #{tpu_custom_call.1} parent=5 // pred_region
        // Predicated region
        $region45: #{tpu_custom_call.1} parent=43 // pred_check
          %p326 = pneg %p43
        $region46: #{tpu_custom_call.1} parent=43 // pred_check_branch
          %328 = sbr.rel (%p326) target = $region48
        $region47: #{tpu_custom_call.1} parent=43 // pred_region
          %s329 = sand.u32 %s33, 1
          %s330 = scalar_lea.sflag [#allocation4], %s329
          %s331 = sand.u32 %s33, 1
          %s332 = smul.addr %s331, 512
          %s333 = scalar_lea.vmem [#allocation3], %s332
          %s334 = smul.u32 4, %s23
          %336 = vsyncadd %s330, 0
          %s337 = smul.addr %s334, 16
          %s338 = smul.addr %s337, 8
          %s339 = scalar_lea.hbm %s0, %s338
          %s340 = sshll.u32 %s339, 4
          %s341 = int_to_ptr.hbm [resolvable:$true] %s340
          %s342 = sshll.u32 %s333, 4
          %s343 = int_to_ptr.vmem [resolvable:$true] %s342
          %348 = dma.hbm_to_vmem [thread:$0]  %s341, 8192, %s343, %s330, 256, 256, 16
        $region48: #{tpu_custom_call.1} parent=43 // pred_fallthru
          _
      $region44: #{tpu_custom_call.1} parent=5 // pred_fallthru
        _
      %p349 = scmp.le.s32.totalorder 1, %s23
      %p350 = scmp.lt.s32.totalorder %s23, 3
      %p351 = pnand %p349, %p350
      %p352 = pneg %p351
      // Predicated region
      $region49: #{tpu_custom_call.1} parent=5 // pred_check
        _
      $region50: #{tpu_custom_call.1} parent=5 // pred_check_branch
        %354 = sbr.rel (%p351) target = $region52
      $region51: #{tpu_custom_call.1} parent=5 // pred_region
        %s355 = ssub.s32 %s23, 1
        %s356 = sand.u32 %s36, 1
        %s357 = scalar_lea.sflag [#allocation4], %s356
        %s358 = sand.u32 %s36, 1
        %s359 = smul.addr %s358, 512
        %s360 = scalar_lea.vmem [#allocation3], %s359
        // Predicated region
        $region53: #{tpu_custom_call.1} parent=51 // pred_check
          %p361 = pneg %p49
        $region54: #{tpu_custom_call.1} parent=51 // pred_check_branch
          %363 = sbr.rel (%p361) target = $region56
        $region55: #{tpu_custom_call.1} parent=51 // pred_region
          %365 = dma.done %s357, 8192
        $region56: #{tpu_custom_call.1} parent=51 // pred_fallthru
          _
        // Predicated region
        $region57: #{tpu_custom_call.1} parent=51 // pred_check
          %p366 = pneg %p70
        $region58: #{tpu_custom_call.1} parent=51 // pred_check_branch
          %368 = sbr.rel (%p366) target = $region60
        $region59: #{tpu_custom_call.1} parent=51 // pred_region
          %370 = dma.done [#allocation7], 12288
        $region60: #{tpu_custom_call.1} parent=51 // pred_fallthru
          _
        // Predicated region
        $region61: #{tpu_custom_call.1} parent=51 // pred_check
          %p371 = pneg %p91
        $region62: #{tpu_custom_call.1} parent=51 // pred_check_branch
          %373 = sbr.rel (%p371) target = $region64
        $region63: #{tpu_custom_call.1} parent=51 // pred_region
          %375 = dma.done [#allocation7], 96
        $region64: #{tpu_custom_call.1} parent=51 // pred_fallthru
          _
        // Predicated region
        $region65: #{tpu_custom_call.1} parent=51 // pred_check
          %p376 = pneg %p112
        $region66: #{tpu_custom_call.1} parent=51 // pred_check_branch
          %378 = sbr.rel (%p376) target = $region68
        $region67: #{tpu_custom_call.1} parent=51 // pred_region
          %380 = dma.done [#allocation10], 4096
        $region68: #{tpu_custom_call.1} parent=51 // pred_fallthru
          _
        // Predicated region
        $region69: #{tpu_custom_call.1} parent=51 // pred_check
          %p381 = pneg %p154
        $region70: #{tpu_custom_call.1} parent=51 // pred_check_branch
          %383 = sbr.rel (%p381) target = $region72
        $region71: #{tpu_custom_call.1} parent=51 // pred_region
          %385 = dma.done [#allocation10], 2048
        $region72: #{tpu_custom_call.1} parent=51 // pred_fallthru
          _
        // Predicated region
        $region73: #{tpu_custom_call.1} parent=51 // pred_check
          %p386 = pneg %p175
        $region74: #{tpu_custom_call.1} parent=51 // pred_check_branch
          %388 = sbr.rel (%p386) target = $region76
        $region75: #{tpu_custom_call.1} parent=51 // pred_region
          %390 = dma.done [#allocation13], 2048
        $region76: #{tpu_custom_call.1} parent=51 // pred_fallthru
          _
        // Predicated region
        $region77: #{tpu_custom_call.1} parent=51 // pred_check
          %p391 = pneg %p196
        $region78: #{tpu_custom_call.1} parent=51 // pred_check_branch
          %393 = sbr.rel (%p391) target = $region80
        $region79: #{tpu_custom_call.1} parent=51 // pred_region
          %395 = dma.done [#allocation13], 2048
        $region80: #{tpu_custom_call.1} parent=51 // pred_fallthru
          _
        %s396 = sand.u32 %s36, 1
        %s397 = scalar_lea.sflag [#allocation4], %s396
        %s398 = sand.u32 %s36, 1
        %s399 = smul.addr %s398, 512
        %s400 = scalar_lea.vmem [#allocation3], %s399
        %p401 = pneg %p49
        %p402 = pneg %p46
        %p403 = pneg %p70
        %p404 = pneg %p67
        %p405 = pneg %p91
        %p406 = pneg %p88
        %p407 = pneg %p112
        %p408 = pneg %p109
        %p409 = pneg %p133
        %p410 = pneg %p130
        %p411 = pneg %p154
        %p412 = pneg %p151
        %p413 = pneg %p175
        %p414 = pneg %p172
        %p415 = pneg %p196
        %p416 = pneg %p193
        %p417 = pneg %p222
        %p418 = pneg %p219
        %s419 = sand.u32 %s209, 1
        %s420 = scalar_lea.sflag [#allocation5], %s419
        %s421 = sand.u32 %s209, 1
        %s422 = smul.addr %s421, 512
        %s423 = scalar_lea.vmem [#allocation15], %s422
        %s424 = smul.u32 4, %s28
        %s425 = smul.u32 4, %s28
        %v427 = vld [vmem:[%s360] sm:$0xff]
        %v428 = vld [vmem:[%s360 + $0x8] sm:$0xff]
        %v429 = vld [vmem:[%s360 + $0x10] sm:$0xff]
        %v430 = vld [vmem:[%s360 + $0x18] sm:$0xff]
        %v431 = vld [vmem:[%s360 + $0x20] sm:$0xff]
        %v432 = vld [vmem:[%s360 + $0x28] sm:$0xff]
        %v433 = vld [vmem:[%s360 + $0x30] sm:$0xff]
        %v434 = vld [vmem:[%s360 + $0x38] sm:$0xff]
        %v435 = vld [vmem:[%s360 + $0x40] sm:$0xff]
        %v436 = vld [vmem:[%s360 + $0x48] sm:$0xff]
        %v437 = vld [vmem:[%s360 + $0x50] sm:$0xff]
        %v438 = vld [vmem:[%s360 + $0x58] sm:$0xff]
        %v439 = vld [vmem:[%s360 + $0x60] sm:$0xff]
        %v440 = vld [vmem:[%s360 + $0x68] sm:$0xff]
        %v441 = vld [vmem:[%s360 + $0x70] sm:$0xff]
        %v442 = vld [vmem:[%s360 + $0x78] sm:$0xff]
        %v443 = vld [vmem:[%s360 + $0x80] sm:$0xff]
        %v444 = vld [vmem:[%s360 + $0x88] sm:$0xff]
        %v445 = vld [vmem:[%s360 + $0x90] sm:$0xff]
        %v446 = vld [vmem:[%s360 + $0x98] sm:$0xff]
        %v447 = vld [vmem:[%s360 + $0xa0] sm:$0xff]
        %v448 = vld [vmem:[%s360 + $0xa8] sm:$0xff]
        %v449 = vld [vmem:[%s360 + $0xb0] sm:$0xff]
        %v450 = vld [vmem:[%s360 + $0xb8] sm:$0xff]
        %v451 = vld [vmem:[%s360 + $0xc0] sm:$0xff]
        %v452 = vld [vmem:[%s360 + $0xc8] sm:$0xff]
        %v453 = vld [vmem:[%s360 + $0xd0] sm:$0xff]
        %v454 = vld [vmem:[%s360 + $0xd8] sm:$0xff]
        %v455 = vld [vmem:[%s360 + $0xe0] sm:$0xff]
        %v456 = vld [vmem:[%s360 + $0xe8] sm:$0xff]
        %v457 = vld [vmem:[%s360 + $0xf0] sm:$0xff]
        %v458 = vld [vmem:[%s360 + $0xf8] sm:$0xff]
        %v459 = vld [vmem:[%s360 + $0x100] sm:$0xff]
        %v460 = vld [vmem:[%s360 + $0x108] sm:$0xff]
        %v461 = vld [vmem:[%s360 + $0x110] sm:$0xff]
        %v462 = vld [vmem:[%s360 + $0x118] sm:$0xff]
        %v463 = vld [vmem:[%s360 + $0x120] sm:$0xff]
        %v464 = vld [vmem:[%s360 + $0x128] sm:$0xff]
        %v465 = vld [vmem:[%s360 + $0x130] sm:$0xff]
        %v466 = vld [vmem:[%s360 + $0x138] sm:$0xff]
        %v467 = vld [vmem:[%s360 + $0x140] sm:$0xff]
        %v468 = vld [vmem:[%s360 + $0x148] sm:$0xff]
        %v469 = vld [vmem:[%s360 + $0x150] sm:$0xff]
        %v470 = vld [vmem:[%s360 + $0x158] sm:$0xff]
        %v471 = vld [vmem:[%s360 + $0x160] sm:$0xff]
        %v472 = vld [vmem:[%s360 + $0x168] sm:$0xff]
        %v473 = vld [vmem:[%s360 + $0x170] sm:$0xff]
        %v474 = vld [vmem:[%s360 + $0x178] sm:$0xff]
        %v475 = vld [vmem:[%s360 + $0x180] sm:$0xff]
        %v476 = vld [vmem:[%s360 + $0x188] sm:$0xff]
        %v477 = vld [vmem:[%s360 + $0x190] sm:$0xff]
        %v478 = vld [vmem:[%s360 + $0x198] sm:$0xff]
        %v479 = vld [vmem:[%s360 + $0x1a0] sm:$0xff]
        %v480 = vld [vmem:[%s360 + $0x1a8] sm:$0xff]
        %v481 = vld [vmem:[%s360 + $0x1b0] sm:$0xff]
        %v482 = vld [vmem:[%s360 + $0x1b8] sm:$0xff]
        %v483 = vld [vmem:[%s360 + $0x1c0] sm:$0xff]
        %v484 = vld [vmem:[%s360 + $0x1c8] sm:$0xff]
        %v485 = vld [vmem:[%s360 + $0x1d0] sm:$0xff]
        %v486 = vld [vmem:[%s360 + $0x1d8] sm:$0xff]
        %v487 = vld [vmem:[%s360 + $0x1e0] sm:$0xff]
        %v488 = vld [vmem:[%s360 + $0x1e8] sm:$0xff]
        %v489 = vld [vmem:[%s360 + $0x1f0] sm:$0xff]
        %v490 = vld [vmem:[%s360 + $0x1f8] sm:$0xff]
        %v491 = vpack.c.bf16 %v429, %v427
        %v492 = vpack.c.bf16 %v430, %v428
        %v493 = vpack.c.bf16 %v433, %v431
        %v494 = vpack.c.bf16 %v434, %v432
        %v495 = vpack.c.bf16 %v437, %v435
        %v496 = vpack.c.bf16 %v438, %v436
        %v497 = vpack.c.bf16 %v441, %v439
        %v498 = vpack.c.bf16 %v442, %v440
        %v499 = vpack.c.bf16 %v445, %v443
        %v500 = vpack.c.bf16 %v446, %v444
        %v501 = vpack.c.bf16 %v449, %v447
        %v502 = vpack.c.bf16 %v450, %v448
        %v503 = vpack.c.bf16 %v453, %v451
        %v504 = vpack.c.bf16 %v454, %v452
        %v505 = vpack.c.bf16 %v457, %v455
        %v506 = vpack.c.bf16 %v458, %v456
        %v507 = vpack.c.bf16 %v461, %v459
        %v508 = vpack.c.bf16 %v462, %v460
        %v509 = vpack.c.bf16 %v465, %v463
        %v510 = vpack.c.bf16 %v466, %v464
        %v511 = vpack.c.bf16 %v469, %v467
        %v512 = vpack.c.bf16 %v470, %v468
        %v513 = vpack.c.bf16 %v473, %v471
        %v514 = vpack.c.bf16 %v474, %v472
        %v515 = vpack.c.bf16 %v477, %v475
        %v516 = vpack.c.bf16 %v478, %v476
        %v517 = vpack.c.bf16 %v481, %v479
        %v518 = vpack.c.bf16 %v482, %v480
        %v519 = vpack.c.bf16 %v485, %v483
        %v520 = vpack.c.bf16 %v486, %v484
        %v521 = vpack.c.bf16 %v489, %v487
        %v522 = vpack.c.bf16 %v490, %v488
        %v523 = vld [vmem:[#allocation6] sm:$0xff]
        %v524 = vld [vmem:[#allocation6 + $0x8] sm:$0xff]
        %v525 = vld [vmem:[#allocation6 + $0x10] sm:$0xff]
        %v526 = vld [vmem:[#allocation6 + $0x18] sm:$0xff]
        %v527 = vld [vmem:[#allocation6 + $0x20] sm:$0xff]
        %v528 = vld [vmem:[#allocation6 + $0x28] sm:$0xff]
        %v529 = vld [vmem:[#allocation6 + $0x30] sm:$0xff]
        %v530 = vld [vmem:[#allocation6 + $0x38] sm:$0xff]
        %v531 = vld [vmem:[#allocation6 + $0x40] sm:$0xff]
        %v532 = vld [vmem:[#allocation6 + $0x48] sm:$0xff]
        %v533 = vld [vmem:[#allocation6 + $0x50] sm:$0xff]
        %v534 = vld [vmem:[#allocation6 + $0x58] sm:$0xff]
        %v535 = vld [vmem:[#allocation6 + $0x60] sm:$0xff]
        %v536 = vld [vmem:[#allocation6 + $0x68] sm:$0xff]
        %v537 = vld [vmem:[#allocation6 + $0x70] sm:$0xff]
        %v538 = vld [vmem:[#allocation6 + $0x78] sm:$0xff]
        %v539 = vld [vmem:[#allocation6 + $0x80] sm:$0xff]
        %v540 = vld [vmem:[#allocation6 + $0x88] sm:$0xff]
        %v541 = vld [vmem:[#allocation6 + $0x90] sm:$0xff]
        %v542 = vld [vmem:[#allocation6 + $0x98] sm:$0xff]
        %v543 = vld [vmem:[#allocation6 + $0xa0] sm:$0xff]
        %v544 = vld [vmem:[#allocation6 + $0xa8] sm:$0xff]
        %v545 = vld [vmem:[#allocation6 + $0xb0] sm:$0xff]
        %v546 = vld [vmem:[#allocation6 + $0xb8] sm:$0xff]
        %v547 = vld [vmem:[#allocation6 + $0xc0] sm:$0xff]
        %v548 = vld [vmem:[#allocation6 + $0xc8] sm:$0xff]
        %v549 = vld [vmem:[#allocation6 + $0xd0] sm:$0xff]
        %v550 = vld [vmem:[#allocation6 + $0xd8] sm:$0xff]
        %v551 = vld [vmem:[#allocation6 + $0xe0] sm:$0xff]
        %v552 = vld [vmem:[#allocation6 + $0xe8] sm:$0xff]
        %v553 = vld [vmem:[#allocation6 + $0xf0] sm:$0xff]
        %v554 = vld [vmem:[#allocation6 + $0xf8] sm:$0xff]
        %v555 = vld [vmem:[#allocation6 + $0x100] sm:$0xff]
        %v556 = vld [vmem:[#allocation6 + $0x108] sm:$0xff]
        %v557 = vld [vmem:[#allocation6 + $0x110] sm:$0xff]
        %v558 = vld [vmem:[#allocation6 + $0x118] sm:$0xff]
        %v559 = vld [vmem:[#allocation6 + $0x120] sm:$0xff]
        %v560 = vld [vmem:[#allocation6 + $0x128] sm:$0xff]
        %v561 = vld [vmem:[#allocation6 + $0x130] sm:$0xff]
        %v562 = vld [vmem:[#allocation6 + $0x138] sm:$0xff]
        %v563 = vld [vmem:[#allocation6 + $0x140] sm:$0xff]
        %v564 = vld [vmem:[#allocation6 + $0x148] sm:$0xff]
        %v565 = vld [vmem:[#allocation6 + $0x150] sm:$0xff]
        %v566 = vld [vmem:[#allocation6 + $0x158] sm:$0xff]
        %v567 = vld [vmem:[#allocation6 + $0x160] sm:$0xff]
        %v568 = vld [vmem:[#allocation6 + $0x168] sm:$0xff]
        %v569 = vld [vmem:[#allocation6 + $0x170] sm:$0xff]
        %v570 = vld [vmem:[#allocation6 + $0x178] sm:$0xff]
        %v571 = vld [vmem:[#allocation6 + $0x180] sm:$0xff]
        %v572 = vld [vmem:[#allocation6 + $0x188] sm:$0xff]
        %v573 = vld [vmem:[#allocation6 + $0x190] sm:$0xff]
        %v574 = vld [vmem:[#allocation6 + $0x198] sm:$0xff]
        %v575 = vld [vmem:[#allocation6 + $0x1a0] sm:$0xff]
        %v576 = vld [vmem:[#allocation6 + $0x1a8] sm:$0xff]
        %v577 = vld [vmem:[#allocation6 + $0x1b0] sm:$0xff]
        %v578 = vld [vmem:[#allocation6 + $0x1b8] sm:$0xff]
        %v579 = vld [vmem:[#allocation6 + $0x1c0] sm:$0xff]
        %v580 = vld [vmem:[#allocation6 + $0x1c8] sm:$0xff]
        %v581 = vld [vmem:[#allocation6 + $0x1d0] sm:$0xff]
        %v582 = vld [vmem:[#allocation6 + $0x1d8] sm:$0xff]
        %v583 = vld [vmem:[#allocation6 + $0x1e0] sm:$0xff]
        %v584 = vld [vmem:[#allocation6 + $0x1e8] sm:$0xff]
        %v585 = vld [vmem:[#allocation6 + $0x1f0] sm:$0xff]
        %v586 = vld [vmem:[#allocation6 + $0x1f8] sm:$0xff]
        %v587 = vld [vmem:[#allocation6 + $0x200] sm:$0xff]
        %v588 = vld [vmem:[#allocation6 + $0x208] sm:$0xff]
        %v589 = vld [vmem:[#allocation6 + $0x210] sm:$0xff]
        %v590 = vld [vmem:[#allocation6 + $0x218] sm:$0xff]
        %v591 = vld [vmem:[#allocation6 + $0x220] sm:$0xff]
        %v592 = vld [vmem:[#allocation6 + $0x228] sm:$0xff]
        %v593 = vld [vmem:[#allocation6 + $0x230] sm:$0xff]
        %v594 = vld [vmem:[#allocation6 + $0x238] sm:$0xff]
        %v595 = vld [vmem:[#allocation6 + $0x240] sm:$0xff]
        %v596 = vld [vmem:[#allocation6 + $0x248] sm:$0xff]
        %v597 = vld [vmem:[#allocation6 + $0x250] sm:$0xff]
        %v598 = vld [vmem:[#allocation6 + $0x258] sm:$0xff]
        %v599 = vld [vmem:[#allocation6 + $0x260] sm:$0xff]
        %v600 = vld [vmem:[#allocation6 + $0x268] sm:$0xff]
        %v601 = vld [vmem:[#allocation6 + $0x270] sm:$0xff]
        %v602 = vld [vmem:[#allocation6 + $0x278] sm:$0xff]
        %v603 = vld [vmem:[#allocation6 + $0x280] sm:$0xff]
        %v604 = vld [vmem:[#allocation6 + $0x288] sm:$0xff]
        %v605 = vld [vmem:[#allocation6 + $0x290] sm:$0xff]
        %v606 = vld [vmem:[#allocation6 + $0x298] sm:$0xff]
        %v607 = vld [vmem:[#allocation6 + $0x2a0] sm:$0xff]
        %v608 = vld [vmem:[#allocation6 + $0x2a8] sm:$0xff]
        %v609 = vld [vmem:[#allocation6 + $0x2b0] sm:$0xff]
        %v610 = vld [vmem:[#allocation6 + $0x2b8] sm:$0xff]
        %v611 = vld [vmem:[#allocation6 + $0x2c0] sm:$0xff]
        %v612 = vld [vmem:[#allocation6 + $0x2c8] sm:$0xff]
        %v613 = vld [vmem:[#allocation6 + $0x2d0] sm:$0xff]
        %v614 = vld [vmem:[#allocation6 + $0x2d8] sm:$0xff]
        %v615 = vld [vmem:[#allocation6 + $0x2e0] sm:$0xff]
        %v616 = vld [vmem:[#allocation6 + $0x2e8] sm:$0xff]
        %v617 = vld [vmem:[#allocation6 + $0x2f0] sm:$0xff]
        %v618 = vld [vmem:[#allocation6 + $0x2f8] sm:$0xff]
        %v619 = vld [vmem:[#allocation8] sm:$0x3f]
        %v621 = vperm.slane %v619, 0
        %v622 = vperm.slane %v619, 1
        %v623 = vperm.slane %v619, 2
        %v624 = vperm.slane %v619, 3
        %v625 = vperm.slane %v619, 4
        %v626 = vperm.slane %v619, 5
        %v729 = vunpack.c.l.b16 %v523
        %v730 = vunpack.c.h.b16 %v523
        %v731 = vunpack.c.l.b16 %v524
        %v732 = vunpack.c.h.b16 %v524
        %v733 = vunpack.c.l.b16 %v525
        %v734 = vunpack.c.h.b16 %v525
        %v735 = vunpack.c.l.b16 %v526
        %v736 = vunpack.c.h.b16 %v526
        %v737 = vunpack.c.l.b16 %v527
        %v738 = vunpack.c.h.b16 %v527
        %v739 = vunpack.c.l.b16 %v528
        %v740 = vunpack.c.h.b16 %v528
        %v741 = vunpack.c.l.b16 %v529
        %v742 = vunpack.c.h.b16 %v529
        %v743 = vunpack.c.l.b16 %v530
        %v744 = vunpack.c.h.b16 %v530
        %v745 = vunpack.c.l.b16 %v531
        %v746 = vunpack.c.h.b16 %v531
        %v747 = vunpack.c.l.b16 %v532
        %v748 = vunpack.c.h.b16 %v532
        %v749 = vunpack.c.l.b16 %v533
        %v750 = vunpack.c.h.b16 %v533
        %v751 = vunpack.c.l.b16 %v534
        %v752 = vunpack.c.h.b16 %v534
        %v753 = vunpack.c.l.b16 %v535
        %v754 = vunpack.c.h.b16 %v535
        %v755 = vunpack.c.l.b16 %v536
        %v756 = vunpack.c.h.b16 %v536
        %v757 = vunpack.c.l.b16 %v537
        %v758 = vunpack.c.h.b16 %v537
        %v759 = vunpack.c.l.b16 %v538
        %v760 = vunpack.c.h.b16 %v538
        %v761 = vunpack.c.l.b16 %v539
        %v762 = vunpack.c.h.b16 %v539
        %v763 = vunpack.c.l.b16 %v540
        %v764 = vunpack.c.h.b16 %v540
        %v765 = vunpack.c.l.b16 %v541
        %v766 = vunpack.c.h.b16 %v541
        %v767 = vunpack.c.l.b16 %v542
        %v768 = vunpack.c.h.b16 %v542
        %v769 = vunpack.c.l.b16 %v543
        %v770 = vunpack.c.h.b16 %v543
        %v771 = vunpack.c.l.b16 %v544
        %v772 = vunpack.c.h.b16 %v544
        %v773 = vunpack.c.l.b16 %v545
        %v774 = vunpack.c.h.b16 %v545
        %v775 = vunpack.c.l.b16 %v546
        %v776 = vunpack.c.h.b16 %v546
        %v777 = vunpack.c.l.b16 %v547
        %v778 = vunpack.c.h.b16 %v547
        %v779 = vunpack.c.l.b16 %v548
        %v780 = vunpack.c.h.b16 %v548
        %v781 = vunpack.c.l.b16 %v549
        %v782 = vunpack.c.h.b16 %v549
        %v783 = vunpack.c.l.b16 %v550
        %v784 = vunpack.c.h.b16 %v550
        %v785 = vunpack.c.l.b16 %v551
        %v786 = vunpack.c.h.b16 %v551
        %v787 = vunpack.c.l.b16 %v552
        %v788 = vunpack.c.h.b16 %v552
        %v789 = vunpack.c.l.b16 %v553
        %v790 = vunpack.c.h.b16 %v553
        %v791 = vunpack.c.l.b16 %v554
        %v792 = vunpack.c.h.b16 %v554
        %v793 = vunpack.c.l.b16 %v555
        %v794 = vunpack.c.h.b16 %v555
        %v795 = vunpack.c.l.b16 %v556
        %v796 = vunpack.c.h.b16 %v556
        %v797 = vunpack.c.l.b16 %v557
        %v798 = vunpack.c.h.b16 %v557
        %v799 = vunpack.c.l.b16 %v558
        %v800 = vunpack.c.h.b16 %v558
        %v801 = vunpack.c.l.b16 %v559
        %v802 = vunpack.c.h.b16 %v559
        %v803 = vunpack.c.l.b16 %v560
        %v804 = vunpack.c.h.b16 %v560
        %v805 = vunpack.c.l.b16 %v561
        %v806 = vunpack.c.h.b16 %v561
        %v807 = vunpack.c.l.b16 %v562
        %v808 = vunpack.c.h.b16 %v562
        %v809 = vunpack.c.l.b16 %v563
        %v810 = vunpack.c.h.b16 %v563
        %v811 = vunpack.c.l.b16 %v564
        %v812 = vunpack.c.h.b16 %v564
        %v813 = vunpack.c.l.b16 %v565
        %v814 = vunpack.c.h.b16 %v565
        %v815 = vunpack.c.l.b16 %v566
        %v816 = vunpack.c.h.b16 %v566
        %v817 = vunpack.c.l.b16 %v567
        %v818 = vunpack.c.h.b16 %v567
        %v819 = vunpack.c.l.b16 %v568
        %v820 = vunpack.c.h.b16 %v568
        %v821 = vunpack.c.l.b16 %v569
        %v822 = vunpack.c.h.b16 %v569
        %v823 = vunpack.c.l.b16 %v570
        %v824 = vunpack.c.h.b16 %v570
        %v825 = vunpack.c.l.b16 %v571
        %v826 = vunpack.c.h.b16 %v571
        %v827 = vunpack.c.l.b16 %v572
        %v828 = vunpack.c.h.b16 %v572
        %v829 = vunpack.c.l.b16 %v573
        %v830 = vunpack.c.h.b16 %v573
        %v831 = vunpack.c.l.b16 %v574
        %v832 = vunpack.c.h.b16 %v574
        %v833 = vunpack.c.l.b16 %v575
        %v834 = vunpack.c.h.b16 %v575
        %v835 = vunpack.c.l.b16 %v576
        %v836 = vunpack.c.h.b16 %v576
        %v837 = vunpack.c.l.b16 %v577
        %v838 = vunpack.c.h.b16 %v577
        %v839 = vunpack.c.l.b16 %v578
        %v840 = vunpack.c.h.b16 %v578
        %v841 = vunpack.c.l.b16 %v579
        %v842 = vunpack.c.h.b16 %v579
        %v843 = vunpack.c.l.b16 %v580
        %v844 = vunpack.c.h.b16 %v580
        %v845 = vunpack.c.l.b16 %v581
        %v846 = vunpack.c.h.b16 %v581
        %v847 = vunpack.c.l.b16 %v582
        %v848 = vunpack.c.h.b16 %v582
        %v849 = vunpack.c.l.b16 %v583
        %v850 = vunpack.c.h.b16 %v583
        %v851 = vunpack.c.l.b16 %v584
        %v852 = vunpack.c.h.b16 %v584
        %v853 = vunpack.c.l.b16 %v585
        %v854 = vunpack.c.h.b16 %v585
        %v855 = vunpack.c.l.b16 %v586
        %v856 = vunpack.c.h.b16 %v586
        %v857 = vunpack.c.l.b16 %v587
        %v858 = vunpack.c.h.b16 %v587
        %v859 = vunpack.c.l.b16 %v588
        %v860 = vunpack.c.h.b16 %v588
        %v861 = vunpack.c.l.b16 %v589
        %v862 = vunpack.c.h.b16 %v589
        %v863 = vunpack.c.l.b16 %v590
        %v864 = vunpack.c.h.b16 %v590
        %v865 = vunpack.c.l.b16 %v591
        %v866 = vunpack.c.h.b16 %v591
        %v867 = vunpack.c.l.b16 %v592
        %v868 = vunpack.c.h.b16 %v592
        %v869 = vunpack.c.l.b16 %v593
        %v870 = vunpack.c.h.b16 %v593
        %v871 = vunpack.c.l.b16 %v594
        %v872 = vunpack.c.h.b16 %v594
        %v873 = vunpack.c.l.b16 %v595
        %v874 = vunpack.c.h.b16 %v595
        %v875 = vunpack.c.l.b16 %v596
        %v876 = vunpack.c.h.b16 %v596
        %v877 = vunpack.c.l.b16 %v597
        %v878 = vunpack.c.h.b16 %v597
        %v879 = vunpack.c.l.b16 %v598
        %v880 = vunpack.c.h.b16 %v598
        %v881 = vunpack.c.l.b16 %v599
        %v882 = vunpack.c.h.b16 %v599
        %v883 = vunpack.c.l.b16 %v600
        %v884 = vunpack.c.h.b16 %v600
        %v885 = vunpack.c.l.b16 %v601
        %v886 = vunpack.c.h.b16 %v601
        %v887 = vunpack.c.l.b16 %v602
        %v888 = vunpack.c.h.b16 %v602
        %v889 = vunpack.c.l.b16 %v603
        %v890 = vunpack.c.h.b16 %v603
        %v891 = vunpack.c.l.b16 %v604
        %v892 = vunpack.c.h.b16 %v604
        %v893 = vunpack.c.l.b16 %v605
        %v894 = vunpack.c.h.b16 %v605
        %v895 = vunpack.c.l.b16 %v606
        %v896 = vunpack.c.h.b16 %v606
        %v897 = vunpack.c.l.b16 %v607
        %v898 = vunpack.c.h.b16 %v607
        %v899 = vunpack.c.l.b16 %v608
        %v900 = vunpack.c.h.b16 %v608
        %v901 = vunpack.c.l.b16 %v609
        %v902 = vunpack.c.h.b16 %v609
        %v903 = vunpack.c.l.b16 %v610
        %v904 = vunpack.c.h.b16 %v610
        %v905 = vunpack.c.l.b16 %v611
        %v906 = vunpack.c.h.b16 %v611
        %v907 = vunpack.c.l.b16 %v612
        %v908 = vunpack.c.h.b16 %v612
        %v909 = vunpack.c.l.b16 %v613
        %v910 = vunpack.c.h.b16 %v613
        %v911 = vunpack.c.l.b16 %v614
        %v912 = vunpack.c.h.b16 %v614
        %v913 = vunpack.c.l.b16 %v615
        %v914 = vunpack.c.h.b16 %v615
        %v915 = vunpack.c.l.b16 %v616
        %v916 = vunpack.c.h.b16 %v616
        %v917 = vunpack.c.l.b16 %v617
        %v918 = vunpack.c.h.b16 %v617
        %v919 = vunpack.c.l.b16 %v618
        %v920 = vunpack.c.h.b16 %v618
        %v921 = vpack.c.b16 %v735, %v729
        %v922 = vpack.c.b16 %v736, %v730
        %v923 = vpack.c.b16 %v737, %v731
        %v924 = vpack.c.b16 %v738, %v732
        %v925 = vpack.c.b16 %v739, %v733
        %v926 = vpack.c.b16 %v740, %v734
        %v927 = vpack.c.b16 %v747, %v741
        %v928 = vpack.c.b16 %v748, %v742
        %v929 = vpack.c.b16 %v749, %v743
        %v930 = vpack.c.b16 %v750, %v744
        %v931 = vpack.c.b16 %v751, %v745
        %v932 = vpack.c.b16 %v752, %v746
        %v933 = vpack.c.b16 %v759, %v753
        %v934 = vpack.c.b16 %v760, %v754
        %v935 = vpack.c.b16 %v761, %v755
        %v936 = vpack.c.b16 %v762, %v756
        %v937 = vpack.c.b16 %v763, %v757
        %v938 = vpack.c.b16 %v764, %v758
        %v939 = vpack.c.b16 %v771, %v765
        %v940 = vpack.c.b16 %v772, %v766
        %v941 = vpack.c.b16 %v773, %v767
        %v942 = vpack.c.b16 %v774, %v768
        %v943 = vpack.c.b16 %v775, %v769
        %v944 = vpack.c.b16 %v776, %v770
        %v945 = vpack.c.b16 %v783, %v777
        %v946 = vpack.c.b16 %v784, %v778
        %v947 = vpack.c.b16 %v785, %v779
        %v948 = vpack.c.b16 %v786, %v780
        %v949 = vpack.c.b16 %v787, %v781
        %v950 = vpack.c.b16 %v788, %v782
        %v951 = vpack.c.b16 %v795, %v789
        %v952 = vpack.c.b16 %v796, %v790
        %v953 = vpack.c.b16 %v797, %v791
        %v954 = vpack.c.b16 %v798, %v792
        %v955 = vpack.c.b16 %v799, %v793
        %v956 = vpack.c.b16 %v800, %v794
        %v957 = vpack.c.b16 %v807, %v801
        %v958 = vpack.c.b16 %v808, %v802
        %v959 = vpack.c.b16 %v809, %v803
        %v960 = vpack.c.b16 %v810, %v804
        %v961 = vpack.c.b16 %v811, %v805
        %v962 = vpack.c.b16 %v812, %v806
        %v963 = vpack.c.b16 %v819, %v813
        %v964 = vpack.c.b16 %v820, %v814
        %v965 = vpack.c.b16 %v821, %v815
        %v966 = vpack.c.b16 %v822, %v816
        %v967 = vpack.c.b16 %v823, %v817
        %v968 = vpack.c.b16 %v824, %v818
        %v969 = vpack.c.b16 %v831, %v825
        %v970 = vpack.c.b16 %v832, %v826
        %v971 = vpack.c.b16 %v833, %v827
        %v972 = vpack.c.b16 %v834, %v828
        %v973 = vpack.c.b16 %v835, %v829
        %v974 = vpack.c.b16 %v836, %v830
        %v975 = vpack.c.b16 %v843, %v837
        %v976 = vpack.c.b16 %v844, %v838
        %v977 = vpack.c.b16 %v845, %v839
        %v978 = vpack.c.b16 %v846, %v840
        %v979 = vpack.c.b16 %v847, %v841
        %v980 = vpack.c.b16 %v848, %v842
        %v981 = vpack.c.b16 %v855, %v849
        %v982 = vpack.c.b16 %v856, %v850
        %v983 = vpack.c.b16 %v857, %v851
        %v984 = vpack.c.b16 %v858, %v852
        %v985 = vpack.c.b16 %v859, %v853
        %v986 = vpack.c.b16 %v860, %v854
        %v987 = vpack.c.b16 %v867, %v861
        %v988 = vpack.c.b16 %v868, %v862
        %v989 = vpack.c.b16 %v869, %v863
        %v990 = vpack.c.b16 %v870, %v864
        %v991 = vpack.c.b16 %v871, %v865
        %v992 = vpack.c.b16 %v872, %v866
        %v993 = vpack.c.b16 %v879, %v873
        %v994 = vpack.c.b16 %v880, %v874
        %v995 = vpack.c.b16 %v881, %v875
        %v996 = vpack.c.b16 %v882, %v876
        %v997 = vpack.c.b16 %v883, %v877
        %v998 = vpack.c.b16 %v884, %v878
        %v999 = vpack.c.b16 %v891, %v885
        %v1000 = vpack.c.b16 %v892, %v886
        %v1001 = vpack.c.b16 %v893, %v887
        %v1002 = vpack.c.b16 %v894, %v888
        %v1003 = vpack.c.b16 %v895, %v889
        %v1004 = vpack.c.b16 %v896, %v890
        %v1005 = vpack.c.b16 %v903, %v897
        %v1006 = vpack.c.b16 %v904, %v898
        %v1007 = vpack.c.b16 %v905, %v899
        %v1008 = vpack.c.b16 %v906, %v900
        %v1009 = vpack.c.b16 %v907, %v901
        %v1010 = vpack.c.b16 %v908, %v902
        %v1011 = vpack.c.b16 %v915, %v909
        %v1012 = vpack.c.b16 %v916, %v910
        %v1013 = vpack.c.b16 %v917, %v911
        %v1014 = vpack.c.b16 %v918, %v912
        %v1015 = vpack.c.b16 %v919, %v913
        %v1016 = vpack.c.b16 %v920, %v914
        %1113 = vmatpush.bf16.msra.mxu0 %v963
        %1114 = vmatpush.bf16.msra.mxu0 %v957
        %1115 = vmatpush.bf16.msra.mxu0 %v951
        %1116 = vmatpush.bf16.msra.mxu0 %v945
        %1117 = vmatpush.bf16.msra.mxu0 %v939
        %1118 = vmatpush.bf16.msra.mxu0 %v933
        %1119 = vmatpush.bf16.msra.mxu0 %v927
        %1120 = vmatpush.bf16.msra.mxu0 %v921
        %1121 = vmatmul.bf16.gmra.mxu0 %v491
        %v1122 = vpop.f32.mrf.mxu0
        %v1123 = vadd.f32 %v621, %v1122
        %v1124 = vpop.f32.mrf.mxu0
        %v1125 = vadd.f32 %v621, %v1124
        %1126 = vmatmul.bf16.gmra.mxu0 %v493
        %v1127 = vpop.f32.mrf.mxu0
        %v1128 = vadd.f32 %v621, %v1127
        %v1129 = vpop.f32.mrf.mxu0
        %v1130 = vadd.f32 %v621, %v1129
        %1131 = vmatmul.bf16.gmra.mxu0 %v495
        %v1132 = vpop.f32.mrf.mxu0
        %v1133 = vadd.f32 %v621, %v1132
        %v1134 = vpop.f32.mrf.mxu0
        %v1135 = vadd.f32 %v621, %v1134
        %1136 = vmatmul.bf16.gmra.mxu0 %v497
        %v1137 = vpop.f32.mrf.mxu0
        %v1138 = vadd.f32 %v621, %v1137
        %v1139 = vpop.f32.mrf.mxu0
        %v1140 = vadd.f32 %v621, %v1139
        %1141 = vmatmul.bf16.gmra.mxu0 %v499
        %v1142 = vpop.f32.mrf.mxu0
        %v1143 = vadd.f32 %v621, %v1142
        %v1144 = vpop.f32.mrf.mxu0
        %v1145 = vadd.f32 %v621, %v1144
        %1146 = vmatmul.bf16.gmra.mxu0 %v501
        %v1147 = vpop.f32.mrf.mxu0
        %v1148 = vadd.f32 %v621, %v1147
        %v1149 = vpop.f32.mrf.mxu0
        %v1150 = vadd.f32 %v621, %v1149
        %1151 = vmatmul.bf16.gmra.mxu0 %v503
        %v1152 = vpop.f32.mrf.mxu0
        %v1153 = vadd.f32 %v621, %v1152
        %v1154 = vpop.f32.mrf.mxu0
        %v1155 = vadd.f32 %v621, %v1154
        %1156 = vmatmul.bf16.gmra.mxu0 %v505
        %v1157 = vpop.f32.mrf.mxu0
        %v1158 = vadd.f32 %v621, %v1157
        %v1159 = vpop.f32.mrf.mxu0
        %v1160 = vadd.f32 %v621, %v1159
        %1161 = vmatmul.bf16.gmra.mxu0 %v507
        %v1162 = vpop.f32.mrf.mxu0
        %v1163 = vadd.f32 %v621, %v1162
        %v1164 = vpop.f32.mrf.mxu0
        %v1165 = vadd.f32 %v621, %v1164
        %1166 = vmatmul.bf16.gmra.mxu0 %v509
        %v1167 = vpop.f32.mrf.mxu0
        %v1168 = vadd.f32 %v621, %v1167
        %v1169 = vpop.f32.mrf.mxu0
        %v1170 = vadd.f32 %v621, %v1169
        %1171 = vmatmul.bf16.gmra.mxu0 %v511
        %v1172 = vpop.f32.mrf.mxu0
        %v1173 = vadd.f32 %v621, %v1172
        %v1174 = vpop.f32.mrf.mxu0
        %v1175 = vadd.f32 %v621, %v1174
        %1176 = vmatmul.bf16.gmra.mxu0 %v513
        %v1177 = vpop.f32.mrf.mxu0
        %v1178 = vadd.f32 %v621, %v1177
        %v1179 = vpop.f32.mrf.mxu0
        %v1180 = vadd.f32 %v621, %v1179
        %1181 = vmatmul.bf16.gmra.mxu0 %v515
        %v1182 = vpop.f32.mrf.mxu0
        %v1183 = vadd.f32 %v621, %v1182
        %v1184 = vpop.f32.mrf.mxu0
        %v1185 = vadd.f32 %v621, %v1184
        %1186 = vmatmul.bf16.gmra.mxu0 %v517
        %v1187 = vpop.f32.mrf.mxu0
        %v1188 = vadd.f32 %v621, %v1187
        %v1189 = vpop.f32.mrf.mxu0
        %v1190 = vadd.f32 %v621, %v1189
        %1191 = vmatmul.bf16.gmra.mxu0 %v519
        %v1192 = vpop.f32.mrf.mxu0
        %v1193 = vadd.f32 %v621, %v1192
        %v1194 = vpop.f32.mrf.mxu0
        %v1195 = vadd.f32 %v621, %v1194
        %1196 = vmatmul.bf16.gmra.mxu0 %v521
        %v1197 = vpop.f32.mrf.mxu0
        %v1198 = vadd.f32 %v621, %v1197
        %v1199 = vpop.f32.mrf.mxu0
        %v1200 = vadd.f32 %v621, %v1199
        %1201 = vdwg.mxu0
        %1202 = vmatpush.bf16.msra.mxu0 %v1011
        %1203 = vmatpush.bf16.msra.mxu0 %v1005
        %1204 = vmatpush.bf16.msra.mxu0 %v999
        %1205 = vmatpush.bf16.msra.mxu0 %v993
        %1206 = vmatpush.bf16.msra.mxu0 %v987
        %1207 = vmatpush.bf16.msra.mxu0 %v981
        %1208 = vmatpush.bf16.msra.mxu0 %v975
        %1209 = vmatpush.bf16.msra.mxu0 %v969
        %1210 = vmatmul.bf16.gmra.mxu0 %v492
        %v1211 = vpop.f32.mrf.mxu0
        %v1212 = vadd.f32 %v1123, %v1211
        %v1213 = vpop.f32.mrf.mxu0
        %v1214 = vadd.f32 %v1125, %v1213
        %1215 = vmatmul.bf16.gmra.mxu0 %v494
        %v1216 = vpop.f32.mrf.mxu0
        %v1217 = vadd.f32 %v1128, %v1216
        %v1218 = vpop.f32.mrf.mxu0
        %v1219 = vadd.f32 %v1130, %v1218
        %1220 = vmatmul.bf16.gmra.mxu0 %v496
        %v1221 = vpop.f32.mrf.mxu0
        %v1222 = vadd.f32 %v1133, %v1221
        %v1223 = vpop.f32.mrf.mxu0
        %v1224 = vadd.f32 %v1135, %v1223
        %1225 = vmatmul.bf16.gmra.mxu0 %v498
        %v1226 = vpop.f32.mrf.mxu0
        %v1227 = vadd.f32 %v1138, %v1226
        %v1228 = vpop.f32.mrf.mxu0
        %v1229 = vadd.f32 %v1140, %v1228
        %1230 = vmatmul.bf16.gmra.mxu0 %v500
        %v1231 = vpop.f32.mrf.mxu0
        %v1232 = vadd.f32 %v1143, %v1231
        %v1233 = vpop.f32.mrf.mxu0
        %v1234 = vadd.f32 %v1145, %v1233
        %1235 = vmatmul.bf16.gmra.mxu0 %v502
        %v1236 = vpop.f32.mrf.mxu0
        %v1237 = vadd.f32 %v1148, %v1236
        %v1238 = vpop.f32.mrf.mxu0
        %v1239 = vadd.f32 %v1150, %v1238
        %1240 = vmatmul.bf16.gmra.mxu0 %v504
        %v1241 = vpop.f32.mrf.mxu0
        %v1242 = vadd.f32 %v1153, %v1241
        %v1243 = vpop.f32.mrf.mxu0
        %v1244 = vadd.f32 %v1155, %v1243
        %1245 = vmatmul.bf16.gmra.mxu0 %v506
        %v1246 = vpop.f32.mrf.mxu0
        %v1247 = vadd.f32 %v1158, %v1246
        %v1248 = vpop.f32.mrf.mxu0
        %v1249 = vadd.f32 %v1160, %v1248
        %1250 = vmatmul.bf16.gmra.mxu0 %v508
        %v1251 = vpop.f32.mrf.mxu0
        %v1252 = vadd.f32 %v1163, %v1251
        %v1253 = vpop.f32.mrf.mxu0
        %v1254 = vadd.f32 %v1165, %v1253
        %1255 = vmatmul.bf16.gmra.mxu0 %v510
        %v1256 = vpop.f32.mrf.mxu0
        %v1257 = vadd.f32 %v1168, %v1256
        %v1258 = vpop.f32.mrf.mxu0
        %v1259 = vadd.f32 %v1170, %v1258
        %1260 = vmatmul.bf16.gmra.mxu0 %v512
        %v1261 = vpop.f32.mrf.mxu0
        %v1262 = vadd.f32 %v1173, %v1261
        %v1263 = vpop.f32.mrf.mxu0
        %v1264 = vadd.f32 %v1175, %v1263
        %1265 = vmatmul.bf16.gmra.mxu0 %v514
        %v1266 = vpop.f32.mrf.mxu0
        %v1267 = vadd.f32 %v1178, %v1266
        %v1268 = vpop.f32.mrf.mxu0
        %v1269 = vadd.f32 %v1180, %v1268
        %1270 = vmatmul.bf16.gmra.mxu0 %v516
        %v1271 = vpop.f32.mrf.mxu0
        %v1272 = vadd.f32 %v1183, %v1271
        %v1273 = vpop.f32.mrf.mxu0
        %v1274 = vadd.f32 %v1185, %v1273
        %1275 = vmatmul.bf16.gmra.mxu0 %v518
        %v1276 = vpop.f32.mrf.mxu0
        %v1277 = vadd.f32 %v1188, %v1276
        %v1278 = vpop.f32.mrf.mxu0
        %v1279 = vadd.f32 %v1190, %v1278
        %1280 = vmatmul.bf16.gmra.mxu0 %v520
        %v1281 = vpop.f32.mrf.mxu0
        %v1282 = vadd.f32 %v1193, %v1281
        %v1283 = vpop.f32.mrf.mxu0
        %v1284 = vadd.f32 %v1195, %v1283
        %1285 = vmatmul.bf16.gmra.mxu0 %v522
        %v1286 = vpop.f32.mrf.mxu0
        %v1287 = vadd.f32 %v1198, %v1286
        %v1288 = vpop.f32.mrf.mxu0
        %v1289 = vadd.f32 %v1200, %v1288
        %1290 = vdwg.mxu0
        %1291 = vmatpush.bf16.msra.mxu0 %v964
        %1292 = vmatpush.bf16.msra.mxu0 %v958
        %1293 = vmatpush.bf16.msra.mxu0 %v952
        %1294 = vmatpush.bf16.msra.mxu0 %v946
        %1295 = vmatpush.bf16.msra.mxu0 %v940
        %1296 = vmatpush.bf16.msra.mxu0 %v934
        %1297 = vmatpush.bf16.msra.mxu0 %v928
        %1298 = vmatpush.bf16.msra.mxu0 %v922
        %1299 = vmatmul.bf16.gmra.mxu0 %v491
        %v1300 = vpop.f32.mrf.mxu0
        %v1301 = vadd.f32 %v622, %v1300
        %v1302 = vpop.f32.mrf.mxu0
        %v1303 = vadd.f32 %v622, %v1302
        %1304 = vmatmul.bf16.gmra.mxu0 %v493
        %v1305 = vpop.f32.mrf.mxu0
        %v1306 = vadd.f32 %v622, %v1305
        %v1307 = vpop.f32.mrf.mxu0
        %v1308 = vadd.f32 %v622, %v1307
        %1309 = vmatmul.bf16.gmra.mxu0 %v495
        %v1310 = vpop.f32.mrf.mxu0
        %v1311 = vadd.f32 %v622, %v1310
        %v1312 = vpop.f32.mrf.mxu0
        %v1313 = vadd.f32 %v622, %v1312
        %1314 = vmatmul.bf16.gmra.mxu0 %v497
        %v1315 = vpop.f32.mrf.mxu0
        %v1316 = vadd.f32 %v622, %v1315
        %v1317 = vpop.f32.mrf.mxu0
        %v1318 = vadd.f32 %v622, %v1317
        %1319 = vmatmul.bf16.gmra.mxu0 %v499
        %v1320 = vpop.f32.mrf.mxu0
        %v1321 = vadd.f32 %v622, %v1320
        %v1322 = vpop.f32.mrf.mxu0
        %v1323 = vadd.f32 %v622, %v1322
        %1324 = vmatmul.bf16.gmra.mxu0 %v501
        %v1325 = vpop.f32.mrf.mxu0
        %v1326 = vadd.f32 %v622, %v1325
        %v1327 = vpop.f32.mrf.mxu0
        %v1328 = vadd.f32 %v622, %v1327
        %1329 = vmatmul.bf16.gmra.mxu0 %v503
        %v1330 = vpop.f32.mrf.mxu0
        %v1331 = vadd.f32 %v622, %v1330
        %v1332 = vpop.f32.mrf.mxu0
        %v1333 = vadd.f32 %v622, %v1332
        %1334 = vmatmul.bf16.gmra.mxu0 %v505
        %v1335 = vpop.f32.mrf.mxu0
        %v1336 = vadd.f32 %v622, %v1335
        %v1337 = vpop.f32.mrf.mxu0
        %v1338 = vadd.f32 %v622, %v1337
        %1339 = vmatmul.bf16.gmra.mxu0 %v507
        %v1340 = vpop.f32.mrf.mxu0
        %v1341 = vadd.f32 %v622, %v1340
        %v1342 = vpop.f32.mrf.mxu0
        %v1343 = vadd.f32 %v622, %v1342
        %1344 = vmatmul.bf16.gmra.mxu0 %v509
        %v1345 = vpop.f32.mrf.mxu0
        %v1346 = vadd.f32 %v622, %v1345
        %v1347 = vpop.f32.mrf.mxu0
        %v1348 = vadd.f32 %v622, %v1347
        %1349 = vmatmul.bf16.gmra.mxu0 %v511
        %v1350 = vpop.f32.mrf.mxu0
        %v1351 = vadd.f32 %v622, %v1350
        %v1352 = vpop.f32.mrf.mxu0
        %v1353 = vadd.f32 %v622, %v1352
        %1354 = vmatmul.bf16.gmra.mxu0 %v513
        %v1355 = vpop.f32.mrf.mxu0
        %v1356 = vadd.f32 %v622, %v1355
        %v1357 = vpop.f32.mrf.mxu0
        %v1358 = vadd.f32 %v622, %v1357
        %1359 = vmatmul.bf16.gmra.mxu0 %v515
        %v1360 = vpop.f32.mrf.mxu0
        %v1361 = vadd.f32 %v622, %v1360
        %v1362 = vpop.f32.mrf.mxu0
        %v1363 = vadd.f32 %v622, %v1362
        %1364 = vmatmul.bf16.gmra.mxu0 %v517
        %v1365 = vpop.f32.mrf.mxu0
        %v1366 = vadd.f32 %v622, %v1365
        %v1367 = vpop.f32.mrf.mxu0
        %v1368 = vadd.f32 %v622, %v1367
        %1369 = vmatmul.bf16.gmra.mxu0 %v519
        %v1370 = vpop.f32.mrf.mxu0
        %v1371 = vadd.f32 %v622, %v1370
        %v1372 = vpop.f32.mrf.mxu0
        %v1373 = vadd.f32 %v622, %v1372
        %1374 = vmatmul.bf16.gmra.mxu0 %v521
        %v1375 = vpop.f32.mrf.mxu0
        %v1376 = vadd.f32 %v622, %v1375
        %v1377 = vpop.f32.mrf.mxu0
        %v1378 = vadd.f32 %v622, %v1377
        %1379 = vdwg.mxu0
        %1380 = vmatpush.bf16.msra.mxu0 %v1012
        %1381 = vmatpush.bf16.msra.mxu0 %v1006
        %1382 = vmatpush.bf16.msra.mxu0 %v1000
        %1383 = vmatpush.bf16.msra.mxu0 %v994
        %1384 = vmatpush.bf16.msra.mxu0 %v988
        %1385 = vmatpush.bf16.msra.mxu0 %v982
        %1386 = vmatpush.bf16.msra.mxu0 %v976
        %1387 = vmatpush.bf16.msra.mxu0 %v970
        %1388 = vmatmul.bf16.gmra.mxu0 %v492
        %v1389 = vpop.f32.mrf.mxu0
        %v1390 = vadd.f32 %v1301, %v1389
        %v1391 = vpop.f32.mrf.mxu0
        %v1392 = vadd.f32 %v1303, %v1391
        %1393 = vmatmul.bf16.gmra.mxu0 %v494
        %v1394 = vpop.f32.mrf.mxu0
        %v1395 = vadd.f32 %v1306, %v1394
        %v1396 = vpop.f32.mrf.mxu0
        %v1397 = vadd.f32 %v1308, %v1396
        %1398 = vmatmul.bf16.gmra.mxu0 %v496
        %v1399 = vpop.f32.mrf.mxu0
        %v1400 = vadd.f32 %v1311, %v1399
        %v1401 = vpop.f32.mrf.mxu0
        %v1402 = vadd.f32 %v1313, %v1401
        %1403 = vmatmul.bf16.gmra.mxu0 %v498
        %v1404 = vpop.f32.mrf.mxu0
        %v1405 = vadd.f32 %v1316, %v1404
        %v1406 = vpop.f32.mrf.mxu0
        %v1407 = vadd.f32 %v1318, %v1406
        %1408 = vmatmul.bf16.gmra.mxu0 %v500
        %v1409 = vpop.f32.mrf.mxu0
        %v1410 = vadd.f32 %v1321, %v1409
        %v1411 = vpop.f32.mrf.mxu0
        %v1412 = vadd.f32 %v1323, %v1411
        %1413 = vmatmul.bf16.gmra.mxu0 %v502
        %v1414 = vpop.f32.mrf.mxu0
        %v1415 = vadd.f32 %v1326, %v1414
        %v1416 = vpop.f32.mrf.mxu0
        %v1417 = vadd.f32 %v1328, %v1416
        %1418 = vmatmul.bf16.gmra.mxu0 %v504
        %v1419 = vpop.f32.mrf.mxu0
        %v1420 = vadd.f32 %v1331, %v1419
        %v1421 = vpop.f32.mrf.mxu0
        %v1422 = vadd.f32 %v1333, %v1421
        %1423 = vmatmul.bf16.gmra.mxu0 %v506
        %v1424 = vpop.f32.mrf.mxu0
        %v1425 = vadd.f32 %v1336, %v1424
        %v1426 = vpop.f32.mrf.mxu0
        %v1427 = vadd.f32 %v1338, %v1426
        %1428 = vmatmul.bf16.gmra.mxu0 %v508
        %v1429 = vpop.f32.mrf.mxu0
        %v1430 = vadd.f32 %v1341, %v1429
        %v1431 = vpop.f32.mrf.mxu0
        %v1432 = vadd.f32 %v1343, %v1431
        %1433 = vmatmul.bf16.gmra.mxu0 %v510
        %v1434 = vpop.f32.mrf.mxu0
        %v1435 = vadd.f32 %v1346, %v1434
        %v1436 = vpop.f32.mrf.mxu0
        %v1437 = vadd.f32 %v1348, %v1436
        %1438 = vmatmul.bf16.gmra.mxu0 %v512
        %v1439 = vpop.f32.mrf.mxu0
        %v1440 = vadd.f32 %v1351, %v1439
        %v1441 = vpop.f32.mrf.mxu0
        %v1442 = vadd.f32 %v1353, %v1441
        %1443 = vmatmul.bf16.gmra.mxu0 %v514
        %v1444 = vpop.f32.mrf.mxu0
        %v1445 = vadd.f32 %v1356, %v1444
        %v1446 = vpop.f32.mrf.mxu0
        %v1447 = vadd.f32 %v1358, %v1446
        %1448 = vmatmul.bf16.gmra.mxu0 %v516
        %v1449 = vpop.f32.mrf.mxu0
        %v1450 = vadd.f32 %v1361, %v1449
        %v1451 = vpop.f32.mrf.mxu0
        %v1452 = vadd.f32 %v1363, %v1451
        %1453 = vmatmul.bf16.gmra.mxu0 %v518
        %v1454 = vpop.f32.mrf.mxu0
        %v1455 = vadd.f32 %v1366, %v1454
        %v1456 = vpop.f32.mrf.mxu0
        %v1457 = vadd.f32 %v1368, %v1456
        %1458 = vmatmul.bf16.gmra.mxu0 %v520
        %v1459 = vpop.f32.mrf.mxu0
        %v1460 = vadd.f32 %v1371, %v1459
        %v1461 = vpop.f32.mrf.mxu0
        %v1462 = vadd.f32 %v1373, %v1461
        %1463 = vmatmul.bf16.gmra.mxu0 %v522
        %v1464 = vpop.f32.mrf.mxu0
        %v1465 = vadd.f32 %v1376, %v1464
        %v1466 = vpop.f32.mrf.mxu0
        %v1467 = vadd.f32 %v1378, %v1466
        %1468 = vdwg.mxu0
        %1469 = vmatpush.bf16.msra.mxu0 %v965
        %1470 = vmatpush.bf16.msra.mxu0 %v959
        %1471 = vmatpush.bf16.msra.mxu0 %v953
        %1472 = vmatpush.bf16.msra.mxu0 %v947
        %1473 = vmatpush.bf16.msra.mxu0 %v941
        %1474 = vmatpush.bf16.msra.mxu0 %v935
        %1475 = vmatpush.bf16.msra.mxu0 %v929
        %1476 = vmatpush.bf16.msra.mxu0 %v923
        %1477 = vmatmul.bf16.gmra.mxu0 %v491
        %v1478 = vpop.f32.mrf.mxu0
        %v1479 = vadd.f32 %v623, %v1478
        %v1480 = vpop.f32.mrf.mxu0
        %v1481 = vadd.f32 %v623, %v1480
        %1482 = vmatmul.bf16.gmra.mxu0 %v493
        %v1483 = vpop.f32.mrf.mxu0
        %v1484 = vadd.f32 %v623, %v1483
        %v1485 = vpop.f32.mrf.mxu0
        %v1486 = vadd.f32 %v623, %v1485
        %1487 = vmatmul.bf16.gmra.mxu0 %v495
        %v1488 = vpop.f32.mrf.mxu0
        %v1489 = vadd.f32 %v623, %v1488
        %v1490 = vpop.f32.mrf.mxu0
        %v1491 = vadd.f32 %v623, %v1490
        %1492 = vmatmul.bf16.gmra.mxu0 %v497
        %v1493 = vpop.f32.mrf.mxu0
        %v1494 = vadd.f32 %v623, %v1493
        %v1495 = vpop.f32.mrf.mxu0
        %v1496 = vadd.f32 %v623, %v1495
        %1497 = vmatmul.bf16.gmra.mxu0 %v499
        %v1498 = vpop.f32.mrf.mxu0
        %v1499 = vadd.f32 %v623, %v1498
        %v1500 = vpop.f32.mrf.mxu0
        %v1501 = vadd.f32 %v623, %v1500
        %1502 = vmatmul.bf16.gmra.mxu0 %v501
        %v1503 = vpop.f32.mrf.mxu0
        %v1504 = vadd.f32 %v623, %v1503
        %v1505 = vpop.f32.mrf.mxu0
        %v1506 = vadd.f32 %v623, %v1505
        %1507 = vmatmul.bf16.gmra.mxu0 %v503
        %v1508 = vpop.f32.mrf.mxu0
        %v1509 = vadd.f32 %v623, %v1508
        %v1510 = vpop.f32.mrf.mxu0
        %v1511 = vadd.f32 %v623, %v1510
        %1512 = vmatmul.bf16.gmra.mxu0 %v505
        %v1513 = vpop.f32.mrf.mxu0
        %v1514 = vadd.f32 %v623, %v1513
        %v1515 = vpop.f32.mrf.mxu0
        %v1516 = vadd.f32 %v623, %v1515
        %1517 = vmatmul.bf16.gmra.mxu0 %v507
        %v1518 = vpop.f32.mrf.mxu0
        %v1519 = vadd.f32 %v623, %v1518
        %v1520 = vpop.f32.mrf.mxu0
        %v1521 = vadd.f32 %v623, %v1520
        %1522 = vmatmul.bf16.gmra.mxu0 %v509
        %v1523 = vpop.f32.mrf.mxu0
        %v1524 = vadd.f32 %v623, %v1523
        %v1525 = vpop.f32.mrf.mxu0
        %v1526 = vadd.f32 %v623, %v1525
        %1527 = vmatmul.bf16.gmra.mxu0 %v511
        %v1528 = vpop.f32.mrf.mxu0
        %v1529 = vadd.f32 %v623, %v1528
        %v1530 = vpop.f32.mrf.mxu0
        %v1531 = vadd.f32 %v623, %v1530
        %1532 = vmatmul.bf16.gmra.mxu0 %v513
        %v1533 = vpop.f32.mrf.mxu0
        %v1534 = vadd.f32 %v623, %v1533
        %v1535 = vpop.f32.mrf.mxu0
        %v1536 = vadd.f32 %v623, %v1535
        %1537 = vmatmul.bf16.gmra.mxu0 %v515
        %v1538 = vpop.f32.mrf.mxu0
        %v1539 = vadd.f32 %v623, %v1538
        %v1540 = vpop.f32.mrf.mxu0
        %v1541 = vadd.f32 %v623, %v1540
        %1542 = vmatmul.bf16.gmra.mxu0 %v517
        %v1543 = vpop.f32.mrf.mxu0
        %v1544 = vadd.f32 %v623, %v1543
        %v1545 = vpop.f32.mrf.mxu0
        %v1546 = vadd.f32 %v623, %v1545
        %1547 = vmatmul.bf16.gmra.mxu0 %v519
        %v1548 = vpop.f32.mrf.mxu0
        %v1549 = vadd.f32 %v623, %v1548
        %v1550 = vpop.f32.mrf.mxu0
        %v1551 = vadd.f32 %v623, %v1550
        %1552 = vmatmul.bf16.gmra.mxu0 %v521
        %v1553 = vpop.f32.mrf.mxu0
        %v1554 = vadd.f32 %v623, %v1553
        %v1555 = vpop.f32.mrf.mxu0
        %v1556 = vadd.f32 %v623, %v1555
        %1557 = vdwg.mxu0
        %1558 = vmatpush.bf16.msra.mxu0 %v1013
        %1559 = vmatpush.bf16.msra.mxu0 %v1007
        %1560 = vmatpush.bf16.msra.mxu0 %v1001
        %1561 = vmatpush.bf16.msra.mxu0 %v995
        %1562 = vmatpush.bf16.msra.mxu0 %v989
        %1563 = vmatpush.bf16.msra.mxu0 %v983
        %1564 = vmatpush.bf16.msra.mxu0 %v977
        %1565 = vmatpush.bf16.msra.mxu0 %v971
        %1566 = vmatmul.bf16.gmra.mxu0 %v492
        %v1567 = vpop.f32.mrf.mxu0
        %v1568 = vadd.f32 %v1479, %v1567
        %v1569 = vpop.f32.mrf.mxu0
        %v1570 = vadd.f32 %v1481, %v1569
        %1571 = vmatmul.bf16.gmra.mxu0 %v494
        %v1572 = vpop.f32.mrf.mxu0
        %v1573 = vadd.f32 %v1484, %v1572
        %v1574 = vpop.f32.mrf.mxu0
        %v1575 = vadd.f32 %v1486, %v1574
        %1576 = vmatmul.bf16.gmra.mxu0 %v496
        %v1577 = vpop.f32.mrf.mxu0
        %v1578 = vadd.f32 %v1489, %v1577
        %v1579 = vpop.f32.mrf.mxu0
        %v1580 = vadd.f32 %v1491, %v1579
        %1581 = vmatmul.bf16.gmra.mxu0 %v498
        %v1582 = vpop.f32.mrf.mxu0
        %v1583 = vadd.f32 %v1494, %v1582
        %v1584 = vpop.f32.mrf.mxu0
        %v1585 = vadd.f32 %v1496, %v1584
        %1586 = vmatmul.bf16.gmra.mxu0 %v500
        %v1587 = vpop.f32.mrf.mxu0
        %v1588 = vadd.f32 %v1499, %v1587
        %v1589 = vpop.f32.mrf.mxu0
        %v1590 = vadd.f32 %v1501, %v1589
        %1591 = vmatmul.bf16.gmra.mxu0 %v502
        %v1592 = vpop.f32.mrf.mxu0
        %v1593 = vadd.f32 %v1504, %v1592
        %v1594 = vpop.f32.mrf.mxu0
        %v1595 = vadd.f32 %v1506, %v1594
        %1596 = vmatmul.bf16.gmra.mxu0 %v504
        %v1597 = vpop.f32.mrf.mxu0
        %v1598 = vadd.f32 %v1509, %v1597
        %v1599 = vpop.f32.mrf.mxu0
        %v1600 = vadd.f32 %v1511, %v1599
        %1601 = vmatmul.bf16.gmra.mxu0 %v506
        %v1602 = vpop.f32.mrf.mxu0
        %v1603 = vadd.f32 %v1514, %v1602
        %v1604 = vpop.f32.mrf.mxu0
        %v1605 = vadd.f32 %v1516, %v1604
        %1606 = vmatmul.bf16.gmra.mxu0 %v508
        %v1607 = vpop.f32.mrf.mxu0
        %v1608 = vadd.f32 %v1519, %v1607
        %v1609 = vpop.f32.mrf.mxu0
        %v1610 = vadd.f32 %v1521, %v1609
        %1611 = vmatmul.bf16.gmra.mxu0 %v510
        %v1612 = vpop.f32.mrf.mxu0
        %v1613 = vadd.f32 %v1524, %v1612
        %v1614 = vpop.f32.mrf.mxu0
        %v1615 = vadd.f32 %v1526, %v1614
        %1616 = vmatmul.bf16.gmra.mxu0 %v512
        %v1617 = vpop.f32.mrf.mxu0
        %v1618 = vadd.f32 %v1529, %v1617
        %v1619 = vpop.f32.mrf.mxu0
        %v1620 = vadd.f32 %v1531, %v1619
        %1621 = vmatmul.bf16.gmra.mxu0 %v514
        %v1622 = vpop.f32.mrf.mxu0
        %v1623 = vadd.f32 %v1534, %v1622
        %v1624 = vpop.f32.mrf.mxu0
        %v1625 = vadd.f32 %v1536, %v1624
        %1626 = vmatmul.bf16.gmra.mxu0 %v516
        %v1627 = vpop.f32.mrf.mxu0
        %v1628 = vadd.f32 %v1539, %v1627
        %v1629 = vpop.f32.mrf.mxu0
        %v1630 = vadd.f32 %v1541, %v1629
        %1631 = vmatmul.bf16.gmra.mxu0 %v518
        %v1632 = vpop.f32.mrf.mxu0
        %v1633 = vadd.f32 %v1544, %v1632
        %v1634 = vpop.f32.mrf.mxu0
        %v1635 = vadd.f32 %v1546, %v1634
        %1636 = vmatmul.bf16.gmra.mxu0 %v520
        %v1637 = vpop.f32.mrf.mxu0
        %v1638 = vadd.f32 %v1549, %v1637
        %v1639 = vpop.f32.mrf.mxu0
        %v1640 = vadd.f32 %v1551, %v1639
        %1641 = vmatmul.bf16.gmra.mxu0 %v522
        %v1642 = vpop.f32.mrf.mxu0
        %v1643 = vadd.f32 %v1554, %v1642
        %v1644 = vpop.f32.mrf.mxu0
        %v1645 = vadd.f32 %v1556, %v1644
        %1646 = vdwg.mxu0
        %1647 = vmatpush.bf16.msra.mxu0 %v966
        %1648 = vmatpush.bf16.msra.mxu0 %v960
        %1649 = vmatpush.bf16.msra.mxu0 %v954
        %1650 = vmatpush.bf16.msra.mxu0 %v948
        %1651 = vmatpush.bf16.msra.mxu0 %v942
        %1652 = vmatpush.bf16.msra.mxu0 %v936
        %1653 = vmatpush.bf16.msra.mxu0 %v930
        %1654 = vmatpush.bf16.msra.mxu0 %v924
        %1655 = vmatmul.bf16.gmra.mxu0 %v491
        %v1656 = vpop.f32.mrf.mxu0
        %v1657 = vadd.f32 %v624, %v1656
        %v1658 = vpop.f32.mrf.mxu0
        %v1659 = vadd.f32 %v624, %v1658
        %1660 = vmatmul.bf16.gmra.mxu0 %v493
        %v1661 = vpop.f32.mrf.mxu0
        %v1662 = vadd.f32 %v624, %v1661
        %v1663 = vpop.f32.mrf.mxu0
        %v1664 = vadd.f32 %v624, %v1663
        %1665 = vmatmul.bf16.gmra.mxu0 %v495
        %v1666 = vpop.f32.mrf.mxu0
        %v1667 = vadd.f32 %v624, %v1666
        %v1668 = vpop.f32.mrf.mxu0
        %v1669 = vadd.f32 %v624, %v1668
        %1670 = vmatmul.bf16.gmra.mxu0 %v497
        %v1671 = vpop.f32.mrf.mxu0
        %v1672 = vadd.f32 %v624, %v1671
        %v1673 = vpop.f32.mrf.mxu0
        %v1674 = vadd.f32 %v624, %v1673
        %1675 = vmatmul.bf16.gmra.mxu0 %v499
        %v1676 = vpop.f32.mrf.mxu0
        %v1677 = vadd.f32 %v624, %v1676
        %v1678 = vpop.f32.mrf.mxu0
        %v1679 = vadd.f32 %v624, %v1678
        %1680 = vmatmul.bf16.gmra.mxu0 %v501
        %v1681 = vpop.f32.mrf.mxu0
        %v1682 = vadd.f32 %v624, %v1681
        %v1683 = vpop.f32.mrf.mxu0
        %v1684 = vadd.f32 %v624, %v1683
        %1685 = vmatmul.bf16.gmra.mxu0 %v503
        %v1686 = vpop.f32.mrf.mxu0
        %v1687 = vadd.f32 %v624, %v1686
        %v1688 = vpop.f32.mrf.mxu0
        %v1689 = vadd.f32 %v624, %v1688
        %1690 = vmatmul.bf16.gmra.mxu0 %v505
        %v1691 = vpop.f32.mrf.mxu0
        %v1692 = vadd.f32 %v624, %v1691
        %v1693 = vpop.f32.mrf.mxu0
        %v1694 = vadd.f32 %v624, %v1693
        %1695 = vmatmul.bf16.gmra.mxu0 %v507
        %v1696 = vpop.f32.mrf.mxu0
        %v1697 = vadd.f32 %v624, %v1696
        %v1698 = vpop.f32.mrf.mxu0
        %v1699 = vadd.f32 %v624, %v1698
        %1700 = vmatmul.bf16.gmra.mxu0 %v509
        %v1701 = vpop.f32.mrf.mxu0
        %v1702 = vadd.f32 %v624, %v1701
        %v1703 = vpop.f32.mrf.mxu0
        %v1704 = vadd.f32 %v624, %v1703
        %1705 = vmatmul.bf16.gmra.mxu0 %v511
        %v1706 = vpop.f32.mrf.mxu0
        %v1707 = vadd.f32 %v624, %v1706
        %v1708 = vpop.f32.mrf.mxu0
        %v1709 = vadd.f32 %v624, %v1708
        %1710 = vmatmul.bf16.gmra.mxu0 %v513
        %v1711 = vpop.f32.mrf.mxu0
        %v1712 = vadd.f32 %v624, %v1711
        %v1713 = vpop.f32.mrf.mxu0
        %v1714 = vadd.f32 %v624, %v1713
        %1715 = vmatmul.bf16.gmra.mxu0 %v515
        %v1716 = vpop.f32.mrf.mxu0
        %v1717 = vadd.f32 %v624, %v1716
        %v1718 = vpop.f32.mrf.mxu0
        %v1719 = vadd.f32 %v624, %v1718
        %1720 = vmatmul.bf16.gmra.mxu0 %v517
        %v1721 = vpop.f32.mrf.mxu0
        %v1722 = vadd.f32 %v624, %v1721
        %v1723 = vpop.f32.mrf.mxu0
        %v1724 = vadd.f32 %v624, %v1723
        %1725 = vmatmul.bf16.gmra.mxu0 %v519
        %v1726 = vpop.f32.mrf.mxu0
        %v1727 = vadd.f32 %v624, %v1726
        %v1728 = vpop.f32.mrf.mxu0
        %v1729 = vadd.f32 %v624, %v1728
        %1730 = vmatmul.bf16.gmra.mxu0 %v521
        %v1731 = vpop.f32.mrf.mxu0
        %v1732 = vadd.f32 %v624, %v1731
        %v1733 = vpop.f32.mrf.mxu0
        %v1734 = vadd.f32 %v624, %v1733
        %1735 = vdwg.mxu0
        %1736 = vmatpush.bf16.msra.mxu0 %v1014
        %1737 = vmatpush.bf16.msra.mxu0 %v1008
        %1738 = vmatpush.bf16.msra.mxu0 %v1002
        %1739 = vmatpush.bf16.msra.mxu0 %v996
        %1740 = vmatpush.bf16.msra.mxu0 %v990
        %1741 = vmatpush.bf16.msra.mxu0 %v984
        %1742 = vmatpush.bf16.msra.mxu0 %v978
        %1743 = vmatpush.bf16.msra.mxu0 %v972
        %1744 = vmatmul.bf16.gmra.mxu0 %v492
        %v1745 = vpop.f32.mrf.mxu0
        %v1746 = vadd.f32 %v1657, %v1745
        %v1747 = vpop.f32.mrf.mxu0
        %v1748 = vadd.f32 %v1659, %v1747
        %1749 = vmatmul.bf16.gmra.mxu0 %v494
        %v1750 = vpop.f32.mrf.mxu0
        %v1751 = vadd.f32 %v1662, %v1750
        %v1752 = vpop.f32.mrf.mxu0
        %v1753 = vadd.f32 %v1664, %v1752
        %1754 = vmatmul.bf16.gmra.mxu0 %v496
        %v1755 = vpop.f32.mrf.mxu0
        %v1756 = vadd.f32 %v1667, %v1755
        %v1757 = vpop.f32.mrf.mxu0
        %v1758 = vadd.f32 %v1669, %v1757
        %1759 = vmatmul.bf16.gmra.mxu0 %v498
        %v1760 = vpop.f32.mrf.mxu0
        %v1761 = vadd.f32 %v1672, %v1760
        %v1762 = vpop.f32.mrf.mxu0
        %v1763 = vadd.f32 %v1674, %v1762
        %1764 = vmatmul.bf16.gmra.mxu0 %v500
        %v1765 = vpop.f32.mrf.mxu0
        %v1766 = vadd.f32 %v1677, %v1765
        %v1767 = vpop.f32.mrf.mxu0
        %v1768 = vadd.f32 %v1679, %v1767
        %1769 = vmatmul.bf16.gmra.mxu0 %v502
        %v1770 = vpop.f32.mrf.mxu0
        %v1771 = vadd.f32 %v1682, %v1770
        %v1772 = vpop.f32.mrf.mxu0
        %v1773 = vadd.f32 %v1684, %v1772
        %1774 = vmatmul.bf16.gmra.mxu0 %v504
        %v1775 = vpop.f32.mrf.mxu0
        %v1776 = vadd.f32 %v1687, %v1775
        %v1777 = vpop.f32.mrf.mxu0
        %v1778 = vadd.f32 %v1689, %v1777
        %1779 = vmatmul.bf16.gmra.mxu0 %v506
        %v1780 = vpop.f32.mrf.mxu0
        %v1781 = vadd.f32 %v1692, %v1780
        %v1782 = vpop.f32.mrf.mxu0
        %v1783 = vadd.f32 %v1694, %v1782
        %1784 = vmatmul.bf16.gmra.mxu0 %v508
        %v1785 = vpop.f32.mrf.mxu0
        %v1786 = vadd.f32 %v1697, %v1785
        %v1787 = vpop.f32.mrf.mxu0
        %v1788 = vadd.f32 %v1699, %v1787
        %1789 = vmatmul.bf16.gmra.mxu0 %v510
        %v1790 = vpop.f32.mrf.mxu0
        %v1791 = vadd.f32 %v1702, %v1790
        %v1792 = vpop.f32.mrf.mxu0
        %v1793 = vadd.f32 %v1704, %v1792
        %1794 = vmatmul.bf16.gmra.mxu0 %v512
        %v1795 = vpop.f32.mrf.mxu0
        %v1796 = vadd.f32 %v1707, %v1795
        %v1797 = vpop.f32.mrf.mxu0
        %v1798 = vadd.f32 %v1709, %v1797
        %1799 = vmatmul.bf16.gmra.mxu0 %v514
        %v1800 = vpop.f32.mrf.mxu0
        %v1801 = vadd.f32 %v1712, %v1800
        %v1802 = vpop.f32.mrf.mxu0
        %v1803 = vadd.f32 %v1714, %v1802
        %1804 = vmatmul.bf16.gmra.mxu0 %v516
        %v1805 = vpop.f32.mrf.mxu0
        %v1806 = vadd.f32 %v1717, %v1805
        %v1807 = vpop.f32.mrf.mxu0
        %v1808 = vadd.f32 %v1719, %v1807
        %1809 = vmatmul.bf16.gmra.mxu0 %v518
        %v1810 = vpop.f32.mrf.mxu0
        %v1811 = vadd.f32 %v1722, %v1810
        %v1812 = vpop.f32.mrf.mxu0
        %v1813 = vadd.f32 %v1724, %v1812
        %1814 = vmatmul.bf16.gmra.mxu0 %v520
        %v1815 = vpop.f32.mrf.mxu0
        %v1816 = vadd.f32 %v1727, %v1815
        %v1817 = vpop.f32.mrf.mxu0
        %v1818 = vadd.f32 %v1729, %v1817
        %1819 = vmatmul.bf16.gmra.mxu0 %v522
        %v1820 = vpop.f32.mrf.mxu0
        %v1821 = vadd.f32 %v1732, %v1820
        %v1822 = vpop.f32.mrf.mxu0
        %v1823 = vadd.f32 %v1734, %v1822
        %1824 = vdwg.mxu0
        %1825 = vmatpush.bf16.msra.mxu0 %v967
        %1826 = vmatpush.bf16.msra.mxu0 %v961
        %1827 = vmatpush.bf16.msra.mxu0 %v955
        %1828 = vmatpush.bf16.msra.mxu0 %v949
        %1829 = vmatpush.bf16.msra.mxu0 %v943
        %1830 = vmatpush.bf16.msra.mxu0 %v937
        %1831 = vmatpush.bf16.msra.mxu0 %v931
        %1832 = vmatpush.bf16.msra.mxu0 %v925
        %1833 = vmatmul.bf16.gmra.mxu0 %v491
        %v1834 = vpop.f32.mrf.mxu0
        %v1835 = vadd.f32 %v625, %v1834
        %v1836 = vpop.f32.mrf.mxu0
        %v1837 = vadd.f32 %v625, %v1836
        %1838 = vmatmul.bf16.gmra.mxu0 %v493
        %v1839 = vpop.f32.mrf.mxu0
        %v1840 = vadd.f32 %v625, %v1839
        %v1841 = vpop.f32.mrf.mxu0
        %v1842 = vadd.f32 %v625, %v1841
        %1843 = vmatmul.bf16.gmra.mxu0 %v495
        %v1844 = vpop.f32.mrf.mxu0
        %v1845 = vadd.f32 %v625, %v1844
        %v1846 = vpop.f32.mrf.mxu0
        %v1847 = vadd.f32 %v625, %v1846
        %1848 = vmatmul.bf16.gmra.mxu0 %v497
        %v1849 = vpop.f32.mrf.mxu0
        %v1850 = vadd.f32 %v625, %v1849
        %v1851 = vpop.f32.mrf.mxu0
        %v1852 = vadd.f32 %v625, %v1851
        %1853 = vmatmul.bf16.gmra.mxu0 %v499
        %v1854 = vpop.f32.mrf.mxu0
        %v1855 = vadd.f32 %v625, %v1854
        %v1856 = vpop.f32.mrf.mxu0
        %v1857 = vadd.f32 %v625, %v1856
        %1858 = vmatmul.bf16.gmra.mxu0 %v501
        %v1859 = vpop.f32.mrf.mxu0
        %v1860 = vadd.f32 %v625, %v1859
        %v1861 = vpop.f32.mrf.mxu0
        %v1862 = vadd.f32 %v625, %v1861
        %1863 = vmatmul.bf16.gmra.mxu0 %v503
        %v1864 = vpop.f32.mrf.mxu0
        %v1865 = vadd.f32 %v625, %v1864
        %v1866 = vpop.f32.mrf.mxu0
        %v1867 = vadd.f32 %v625, %v1866
        %1868 = vmatmul.bf16.gmra.mxu0 %v505
        %v1869 = vpop.f32.mrf.mxu0
        %v1870 = vadd.f32 %v625, %v1869
        %v1871 = vpop.f32.mrf.mxu0
        %v1872 = vadd.f32 %v625, %v1871
        %1873 = vmatmul.bf16.gmra.mxu0 %v507
        %v1874 = vpop.f32.mrf.mxu0
        %v1875 = vadd.f32 %v625, %v1874
        %v1876 = vpop.f32.mrf.mxu0
        %v1877 = vadd.f32 %v625, %v1876
        %1878 = vmatmul.bf16.gmra.mxu0 %v509
        %v1879 = vpop.f32.mrf.mxu0
        %v1880 = vadd.f32 %v625, %v1879
        %v1881 = vpop.f32.mrf.mxu0
        %v1882 = vadd.f32 %v625, %v1881
        %1883 = vmatmul.bf16.gmra.mxu0 %v511
        %v1884 = vpop.f32.mrf.mxu0
        %v1885 = vadd.f32 %v625, %v1884
        %v1886 = vpop.f32.mrf.mxu0
        %v1887 = vadd.f32 %v625, %v1886
        %1888 = vmatmul.bf16.gmra.mxu0 %v513
        %v1889 = vpop.f32.mrf.mxu0
        %v1890 = vadd.f32 %v625, %v1889
        %v1891 = vpop.f32.mrf.mxu0
        %v1892 = vadd.f32 %v625, %v1891
        %1893 = vmatmul.bf16.gmra.mxu0 %v515
        %v1894 = vpop.f32.mrf.mxu0
        %v1895 = vadd.f32 %v625, %v1894
        %v1896 = vpop.f32.mrf.mxu0
        %v1897 = vadd.f32 %v625, %v1896
        %1898 = vmatmul.bf16.gmra.mxu0 %v517
        %v1899 = vpop.f32.mrf.mxu0
        %v1900 = vadd.f32 %v625, %v1899
        %v1901 = vpop.f32.mrf.mxu0
        %v1902 = vadd.f32 %v625, %v1901
        %1903 = vmatmul.bf16.gmra.mxu0 %v519
        %v1904 = vpop.f32.mrf.mxu0
        %v1905 = vadd.f32 %v625, %v1904
        %v1906 = vpop.f32.mrf.mxu0
        %v1907 = vadd.f32 %v625, %v1906
        %1908 = vmatmul.bf16.gmra.mxu0 %v521
        %v1909 = vpop.f32.mrf.mxu0
        %v1910 = vadd.f32 %v625, %v1909
        %v1911 = vpop.f32.mrf.mxu0
        %v1912 = vadd.f32 %v625, %v1911
        %1913 = vdwg.mxu0
        %1914 = vmatpush.bf16.msra.mxu0 %v1015
        %1915 = vmatpush.bf16.msra.mxu0 %v1009
        %1916 = vmatpush.bf16.msra.mxu0 %v1003
        %1917 = vmatpush.bf16.msra.mxu0 %v997
        %1918 = vmatpush.bf16.msra.mxu0 %v991
        %1919 = vmatpush.bf16.msra.mxu0 %v985
        %1920 = vmatpush.bf16.msra.mxu0 %v979
        %1921 = vmatpush.bf16.msra.mxu0 %v973
        %1922 = vmatmul.bf16.gmra.mxu0 %v492
        %v1923 = vpop.f32.mrf.mxu0
        %v1924 = vadd.f32 %v1835, %v1923
        %v1925 = vpop.f32.mrf.mxu0
        %v1926 = vadd.f32 %v1837, %v1925
        %1927 = vmatmul.bf16.gmra.mxu0 %v494
        %v1928 = vpop.f32.mrf.mxu0
        %v1929 = vadd.f32 %v1840, %v1928
        %v1930 = vpop.f32.mrf.mxu0
        %v1931 = vadd.f32 %v1842, %v1930
        %1932 = vmatmul.bf16.gmra.mxu0 %v496
        %v1933 = vpop.f32.mrf.mxu0
        %v1934 = vadd.f32 %v1845, %v1933
        %v1935 = vpop.f32.mrf.mxu0
        %v1936 = vadd.f32 %v1847, %v1935
        %1937 = vmatmul.bf16.gmra.mxu0 %v498
        %v1938 = vpop.f32.mrf.mxu0
        %v1939 = vadd.f32 %v1850, %v1938
        %v1940 = vpop.f32.mrf.mxu0
        %v1941 = vadd.f32 %v1852, %v1940
        %1942 = vmatmul.bf16.gmra.mxu0 %v500
        %v1943 = vpop.f32.mrf.mxu0
        %v1944 = vadd.f32 %v1855, %v1943
        %v1945 = vpop.f32.mrf.mxu0
        %v1946 = vadd.f32 %v1857, %v1945
        %1947 = vmatmul.bf16.gmra.mxu0 %v502
        %v1948 = vpop.f32.mrf.mxu0
        %v1949 = vadd.f32 %v1860, %v1948
        %v1950 = vpop.f32.mrf.mxu0
        %v1951 = vadd.f32 %v1862, %v1950
        %1952 = vmatmul.bf16.gmra.mxu0 %v504
        %v1953 = vpop.f32.mrf.mxu0
        %v1954 = vadd.f32 %v1865, %v1953
        %v1955 = vpop.f32.mrf.mxu0
        %v1956 = vadd.f32 %v1867, %v1955
        %1957 = vmatmul.bf16.gmra.mxu0 %v506
        %v1958 = vpop.f32.mrf.mxu0
        %v1959 = vadd.f32 %v1870, %v1958
        %v1960 = vpop.f32.mrf.mxu0
        %v1961 = vadd.f32 %v1872, %v1960
        %1962 = vmatmul.bf16.gmra.mxu0 %v508
        %v1963 = vpop.f32.mrf.mxu0
        %v1964 = vadd.f32 %v1875, %v1963
        %v1965 = vpop.f32.mrf.mxu0
        %v1966 = vadd.f32 %v1877, %v1965
        %1967 = vmatmul.bf16.gmra.mxu0 %v510
        %v1968 = vpop.f32.mrf.mxu0
        %v1969 = vadd.f32 %v1880, %v1968
        %v1970 = vpop.f32.mrf.mxu0
        %v1971 = vadd.f32 %v1882, %v1970
        %1972 = vmatmul.bf16.gmra.mxu0 %v512
        %v1973 = vpop.f32.mrf.mxu0
        %v1974 = vadd.f32 %v1885, %v1973
        %v1975 = vpop.f32.mrf.mxu0
        %v1976 = vadd.f32 %v1887, %v1975
        %1977 = vmatmul.bf16.gmra.mxu0 %v514
        %v1978 = vpop.f32.mrf.mxu0
        %v1979 = vadd.f32 %v1890, %v1978
        %v1980 = vpop.f32.mrf.mxu0
        %v1981 = vadd.f32 %v1892, %v1980
        %1982 = vmatmul.bf16.gmra.mxu0 %v516
        %v1983 = vpop.f32.mrf.mxu0
        %v1984 = vadd.f32 %v1895, %v1983
        %v1985 = vpop.f32.mrf.mxu0
        %v1986 = vadd.f32 %v1897, %v1985
        %1987 = vmatmul.bf16.gmra.mxu0 %v518
        %v1988 = vpop.f32.mrf.mxu0
        %v1989 = vadd.f32 %v1900, %v1988
        %v1990 = vpop.f32.mrf.mxu0
        %v1991 = vadd.f32 %v1902, %v1990
        %1992 = vmatmul.bf16.gmra.mxu0 %v520
        %v1993 = vpop.f32.mrf.mxu0
        %v1994 = vadd.f32 %v1905, %v1993
        %v1995 = vpop.f32.mrf.mxu0
        %v1996 = vadd.f32 %v1907, %v1995
        %1997 = vmatmul.bf16.gmra.mxu0 %v522
        %v1998 = vpop.f32.mrf.mxu0
        %v1999 = vadd.f32 %v1910, %v1998
        %v2000 = vpop.f32.mrf.mxu0
        %v2001 = vadd.f32 %v1912, %v2000
        %2002 = vdwg.mxu0
        %2003 = vmatpush.bf16.msra.mxu0 %v968
        %2004 = vmatpush.bf16.msra.mxu0 %v962
        %2005 = vmatpush.bf16.msra.mxu0 %v956
        %2006 = vmatpush.bf16.msra.mxu0 %v950
        %2007 = vmatpush.bf16.msra.mxu0 %v944
        %2008 = vmatpush.bf16.msra.mxu0 %v938
        %2009 = vmatpush.bf16.msra.mxu0 %v932
        %2010 = vmatpush.bf16.msra.mxu0 %v926
        %2011 = vmatmul.bf16.gmra.mxu0 %v491
        %v2012 = vpop.f32.mrf.mxu0
        %v2013 = vadd.f32 %v626, %v2012
        %v2014 = vpop.f32.mrf.mxu0
        %v2015 = vadd.f32 %v626, %v2014
        %2016 = vmatmul.bf16.gmra.mxu0 %v493
        %v2017 = vpop.f32.mrf.mxu0
        %v2018 = vadd.f32 %v626, %v2017
        %v2019 = vpop.f32.mrf.mxu0
        %v2020 = vadd.f32 %v626, %v2019
        %2021 = vmatmul.bf16.gmra.mxu0 %v495
        %v2022 = vpop.f32.mrf.mxu0
        %v2023 = vadd.f32 %v626, %v2022
        %v2024 = vpop.f32.mrf.mxu0
        %v2025 = vadd.f32 %v626, %v2024
        %2026 = vmatmul.bf16.gmra.mxu0 %v497
        %v2027 = vpop.f32.mrf.mxu0
        %v2028 = vadd.f32 %v626, %v2027
        %v2029 = vpop.f32.mrf.mxu0
        %v2030 = vadd.f32 %v626, %v2029
        %2031 = vmatmul.bf16.gmra.mxu0 %v499
        %v2032 = vpop.f32.mrf.mxu0
        %v2033 = vadd.f32 %v626, %v2032
        %v2034 = vpop.f32.mrf.mxu0
        %v2035 = vadd.f32 %v626, %v2034
        %2036 = vmatmul.bf16.gmra.mxu0 %v501
        %v2037 = vpop.f32.mrf.mxu0
        %v2038 = vadd.f32 %v626, %v2037
        %v2039 = vpop.f32.mrf.mxu0
        %v2040 = vadd.f32 %v626, %v2039
        %2041 = vmatmul.bf16.gmra.mxu0 %v503
        %v2042 = vpop.f32.mrf.mxu0
        %v2043 = vadd.f32 %v626, %v2042
        %v2044 = vpop.f32.mrf.mxu0
        %v2045 = vadd.f32 %v626, %v2044
        %2046 = vmatmul.bf16.gmra.mxu0 %v505
        %v2047 = vpop.f32.mrf.mxu0
        %v2048 = vadd.f32 %v626, %v2047
        %v2049 = vpop.f32.mrf.mxu0
        %v2050 = vadd.f32 %v626, %v2049
        %2051 = vmatmul.bf16.gmra.mxu0 %v507
        %v2052 = vpop.f32.mrf.mxu0
        %v2053 = vadd.f32 %v626, %v2052
        %v2054 = vpop.f32.mrf.mxu0
        %v2055 = vadd.f32 %v626, %v2054
        %2056 = vmatmul.bf16.gmra.mxu0 %v509
        %v2057 = vpop.f32.mrf.mxu0
        %v2058 = vadd.f32 %v626, %v2057
        %v2059 = vpop.f32.mrf.mxu0
        %v2060 = vadd.f32 %v626, %v2059
        %2061 = vmatmul.bf16.gmra.mxu0 %v511
        %v2062 = vpop.f32.mrf.mxu0
        %v2063 = vadd.f32 %v626, %v2062
        %v2064 = vpop.f32.mrf.mxu0
        %v2065 = vadd.f32 %v626, %v2064
        %2066 = vmatmul.bf16.gmra.mxu0 %v513
        %v2067 = vpop.f32.mrf.mxu0
        %v2068 = vadd.f32 %v626, %v2067
        %v2069 = vpop.f32.mrf.mxu0
        %v2070 = vadd.f32 %v626, %v2069
        %2071 = vmatmul.bf16.gmra.mxu0 %v515
        %v2072 = vpop.f32.mrf.mxu0
        %v2073 = vadd.f32 %v626, %v2072
        %v2074 = vpop.f32.mrf.mxu0
        %v2075 = vadd.f32 %v626, %v2074
        %2076 = vmatmul.bf16.gmra.mxu0 %v517
        %v2077 = vpop.f32.mrf.mxu0
        %v2078 = vadd.f32 %v626, %v2077
        %v2079 = vpop.f32.mrf.mxu0
        %v2080 = vadd.f32 %v626, %v2079
        %2081 = vmatmul.bf16.gmra.mxu0 %v519
        %v2082 = vpop.f32.mrf.mxu0
        %v2083 = vadd.f32 %v626, %v2082
        %v2084 = vpop.f32.mrf.mxu0
        %v2085 = vadd.f32 %v626, %v2084
        %2086 = vmatmul.bf16.gmra.mxu0 %v521
        %v2087 = vpop.f32.mrf.mxu0
        %v2088 = vadd.f32 %v626, %v2087
        %v2089 = vpop.f32.mrf.mxu0
        %v2090 = vadd.f32 %v626, %v2089
        %2091 = vdwg.mxu0
        %2092 = vmatpush.bf16.msra.mxu0 %v1016
        %2093 = vmatpush.bf16.msra.mxu0 %v1010
        %2094 = vmatpush.bf16.msra.mxu0 %v1004
        %2095 = vmatpush.bf16.msra.mxu0 %v998
        %2096 = vmatpush.bf16.msra.mxu0 %v992
        %2097 = vmatpush.bf16.msra.mxu0 %v986
        %2098 = vmatpush.bf16.msra.mxu0 %v980
        %2099 = vmatpush.bf16.msra.mxu0 %v974
        %2100 = vmatmul.bf16.gmra.mxu0 %v492
        %v2101 = vpop.f32.mrf.mxu0
        %v2102 = vadd.f32 %v2013, %v2101
        %v2103 = vpop.f32.mrf.mxu0
        %v2104 = vadd.f32 %v2015, %v2103
        %2105 = vmatmul.bf16.gmra.mxu0 %v494
        %v2106 = vpop.f32.mrf.mxu0
        %v2107 = vadd.f32 %v2018, %v2106
        %v2108 = vpop.f32.mrf.mxu0
        %v2109 = vadd.f32 %v2020, %v2108
        %2110 = vmatmul.bf16.gmra.mxu0 %v496
        %v2111 = vpop.f32.mrf.mxu0
        %v2112 = vadd.f32 %v2023, %v2111
        %v2113 = vpop.f32.mrf.mxu0
        %v2114 = vadd.f32 %v2025, %v2113
        %2115 = vmatmul.bf16.gmra.mxu0 %v498
        %v2116 = vpop.f32.mrf.mxu0
        %v2117 = vadd.f32 %v2028, %v2116
        %v2118 = vpop.f32.mrf.mxu0
        %v2119 = vadd.f32 %v2030, %v2118
        %2120 = vmatmul.bf16.gmra.mxu0 %v500
        %v2121 = vpop.f32.mrf.mxu0
        %v2122 = vadd.f32 %v2033, %v2121
        %v2123 = vpop.f32.mrf.mxu0
        %v2124 = vadd.f32 %v2035, %v2123
        %2125 = vmatmul.bf16.gmra.mxu0 %v502
        %v2126 = vpop.f32.mrf.mxu0
        %v2127 = vadd.f32 %v2038, %v2126
        %v2128 = vpop.f32.mrf.mxu0
        %v2129 = vadd.f32 %v2040, %v2128
        %2130 = vmatmul.bf16.gmra.mxu0 %v504
        %v2131 = vpop.f32.mrf.mxu0
        %v2132 = vadd.f32 %v2043, %v2131
        %v2133 = vpop.f32.mrf.mxu0
        %v2134 = vadd.f32 %v2045, %v2133
        %2135 = vmatmul.bf16.gmra.mxu0 %v506
        %v2136 = vpop.f32.mrf.mxu0
        %v2137 = vadd.f32 %v2048, %v2136
        %v2138 = vpop.f32.mrf.mxu0
        %v2139 = vadd.f32 %v2050, %v2138
        %2140 = vmatmul.bf16.gmra.mxu0 %v508
        %v2141 = vpop.f32.mrf.mxu0
        %v2142 = vadd.f32 %v2053, %v2141
        %v2143 = vpop.f32.mrf.mxu0
        %v2144 = vadd.f32 %v2055, %v2143
        %2145 = vmatmul.bf16.gmra.mxu0 %v510
        %v2146 = vpop.f32.mrf.mxu0
        %v2147 = vadd.f32 %v2058, %v2146
        %v2148 = vpop.f32.mrf.mxu0
        %v2149 = vadd.f32 %v2060, %v2148
        %2150 = vmatmul.bf16.gmra.mxu0 %v512
        %v2151 = vpop.f32.mrf.mxu0
        %v2152 = vadd.f32 %v2063, %v2151
        %v2153 = vpop.f32.mrf.mxu0
        %v2154 = vadd.f32 %v2065, %v2153
        %2155 = vmatmul.bf16.gmra.mxu0 %v514
        %v2156 = vpop.f32.mrf.mxu0
        %v2157 = vadd.f32 %v2068, %v2156
        %v2158 = vpop.f32.mrf.mxu0
        %v2159 = vadd.f32 %v2070, %v2158
        %2160 = vmatmul.bf16.gmra.mxu0 %v516
        %v2161 = vpop.f32.mrf.mxu0
        %v2162 = vadd.f32 %v2073, %v2161
        %v2163 = vpop.f32.mrf.mxu0
        %v2164 = vadd.f32 %v2075, %v2163
        %2165 = vmatmul.bf16.gmra.mxu0 %v518
        %v2166 = vpop.f32.mrf.mxu0
        %v2167 = vadd.f32 %v2078, %v2166
        %v2168 = vpop.f32.mrf.mxu0
        %v2169 = vadd.f32 %v2080, %v2168
        %2170 = vmatmul.bf16.gmra.mxu0 %v520
        %v2171 = vpop.f32.mrf.mxu0
        %v2172 = vadd.f32 %v2083, %v2171
        %v2173 = vpop.f32.mrf.mxu0
        %v2174 = vadd.f32 %v2085, %v2173
        %2175 = vmatmul.bf16.gmra.mxu0 %v522
        %v2176 = vpop.f32.mrf.mxu0
        %v2177 = vadd.f32 %v2088, %v2176
        %v2178 = vpop.f32.mrf.mxu0
        %v2179 = vadd.f32 %v2090, %v2178
        %2180 = vdwg.mxu0
        %v2181 = vld [vmem:[#allocation11] sm:$0xff]
        %v2182 = vld [vmem:[#allocation11 + $0x8] sm:$0xff]
        %v2183 = vld [vmem:[#allocation11 + $0x10] sm:$0xff]
        %v2184 = vld [vmem:[#allocation11 + $0x18] sm:$0xff]
        %v2185 = vld [vmem:[#allocation11 + $0x20] sm:$0xff]
        %v2186 = vld [vmem:[#allocation11 + $0x28] sm:$0xff]
        %v2187 = vld [vmem:[#allocation11 + $0x30] sm:$0xff]
        %v2188 = vld [vmem:[#allocation11 + $0x38] sm:$0xff]
        %v2189 = vld [vmem:[#allocation11 + $0x40] sm:$0xff]
        %v2190 = vld [vmem:[#allocation11 + $0x48] sm:$0xff]
        %v2191 = vld [vmem:[#allocation11 + $0x50] sm:$0xff]
        %v2192 = vld [vmem:[#allocation11 + $0x58] sm:$0xff]
        %v2193 = vld [vmem:[#allocation11 + $0x60] sm:$0xff]
        %v2194 = vld [vmem:[#allocation11 + $0x68] sm:$0xff]
        %v2195 = vld [vmem:[#allocation11 + $0x70] sm:$0xff]
        %v2196 = vld [vmem:[#allocation11 + $0x78] sm:$0xff]
        %v2197 = vld [vmem:[#allocation12] sm:$0xff]
        %v2198 = vld [vmem:[#allocation12 + $0x8] sm:$0xff]
        %v2199 = vld [vmem:[#allocation12 + $0x10] sm:$0xff]
        %v2200 = vld [vmem:[#allocation12 + $0x18] sm:$0xff]
        %v2201 = vld [vmem:[#allocation12 + $0x20] sm:$0xff]
        %v2202 = vld [vmem:[#allocation12 + $0x28] sm:$0xff]
        %v2203 = vld [vmem:[#allocation12 + $0x30] sm:$0xff]
        %v2204 = vld [vmem:[#allocation12 + $0x38] sm:$0xff]
        %v2205 = vld [vmem:[#allocation12 + $0x40] sm:$0xff]
        %v2206 = vld [vmem:[#allocation12 + $0x48] sm:$0xff]
        %v2207 = vld [vmem:[#allocation12 + $0x50] sm:$0xff]
        %v2208 = vld [vmem:[#allocation12 + $0x58] sm:$0xff]
        %v2209 = vld [vmem:[#allocation12 + $0x60] sm:$0xff]
        %v2210 = vld [vmem:[#allocation12 + $0x68] sm:$0xff]
        %v2211 = vld [vmem:[#allocation12 + $0x70] sm:$0xff]
        %v2212 = vld [vmem:[#allocation12 + $0x78] sm:$0xff]
        %v2213 = vld [vmem:[#allocation14] sm:$0xff]
        %v2214 = vld [vmem:[#allocation14 + $0x8] sm:$0xff]
        %v2215 = vld [vmem:[#allocation14 + $0x10] sm:$0xff]
        %v2216 = vld [vmem:[#allocation14 + $0x18] sm:$0xff]
        %v2217 = vld [vmem:[#allocation14 + $0x20] sm:$0xff]
        %v2218 = vld [vmem:[#allocation14 + $0x28] sm:$0xff]
        %v2219 = vld [vmem:[#allocation14 + $0x30] sm:$0xff]
        %v2220 = vld [vmem:[#allocation14 + $0x38] sm:$0xff]
        %v2221 = vld [vmem:[#allocation14 + $0x40] sm:$0xff]
        %v2222 = vld [vmem:[#allocation14 + $0x48] sm:$0xff]
        %v2223 = vld [vmem:[#allocation14 + $0x50] sm:$0xff]
        %v2224 = vld [vmem:[#allocation14 + $0x58] sm:$0xff]
        %v2225 = vld [vmem:[#allocation14 + $0x60] sm:$0xff]
        %v2226 = vld [vmem:[#allocation14 + $0x68] sm:$0xff]
        %v2227 = vld [vmem:[#allocation14 + $0x70] sm:$0xff]
        %v2228 = vld [vmem:[#allocation14 + $0x78] sm:$0xff]
        %2229 = vrot.lane.b32.xlu0 %v1212, 64
        %v2230 = vpop.permute.xlu0 %2229
        %2231 = vrot.lane.b32.xlu0 %v1214, 64
        %v2232 = vpop.permute.xlu0 %2231
        %2233 = vrot.lane.b32.xlu0 %v1217, 64
        %v2234 = vpop.permute.xlu0 %2233
        %2235 = vrot.lane.b32.xlu0 %v1219, 64
        %v2236 = vpop.permute.xlu0 %2235
        %2237 = vrot.lane.b32.xlu0 %v1222, 64
        %v2238 = vpop.permute.xlu0 %2237
        %2239 = vrot.lane.b32.xlu0 %v1224, 64
        %v2240 = vpop.permute.xlu0 %2239
        %2241 = vrot.lane.b32.xlu0 %v1227, 64
        %v2242 = vpop.permute.xlu0 %2241
        %2243 = vrot.lane.b32.xlu0 %v1229, 64
        %v2244 = vpop.permute.xlu0 %2243
        %2245 = vrot.lane.b32.xlu0 %v1232, 64
        %v2246 = vpop.permute.xlu0 %2245
        %2247 = vrot.lane.b32.xlu0 %v1234, 64
        %v2248 = vpop.permute.xlu0 %2247
        %2249 = vrot.lane.b32.xlu0 %v1237, 64
        %v2250 = vpop.permute.xlu0 %2249
        %2251 = vrot.lane.b32.xlu0 %v1239, 64
        %v2252 = vpop.permute.xlu0 %2251
        %2253 = vrot.lane.b32.xlu0 %v1242, 64
        %v2254 = vpop.permute.xlu0 %2253
        %2255 = vrot.lane.b32.xlu0 %v1244, 64
        %v2256 = vpop.permute.xlu0 %2255
        %2257 = vrot.lane.b32.xlu0 %v1247, 64
        %v2258 = vpop.permute.xlu0 %2257
        %2259 = vrot.lane.b32.xlu0 %v1249, 64
        %v2260 = vpop.permute.xlu0 %2259
        %2261 = vrot.lane.b32.xlu0 %v1252, 64
        %v2262 = vpop.permute.xlu0 %2261
        %2263 = vrot.lane.b32.xlu0 %v1254, 64
        %v2264 = vpop.permute.xlu0 %2263
        %2265 = vrot.lane.b32.xlu0 %v1257, 64
        %v2266 = vpop.permute.xlu0 %2265
        %2267 = vrot.lane.b32.xlu0 %v1259, 64
        %v2268 = vpop.permute.xlu0 %2267
        %2269 = vrot.lane.b32.xlu0 %v1262, 64
        %v2270 = vpop.permute.xlu0 %2269
        %2271 = vrot.lane.b32.xlu0 %v1264, 64
        %v2272 = vpop.permute.xlu0 %2271
        %2273 = vrot.lane.b32.xlu0 %v1267, 64
        %v2274 = vpop.permute.xlu0 %2273
        %2275 = vrot.lane.b32.xlu0 %v1269, 64
        %v2276 = vpop.permute.xlu0 %2275
        %2277 = vrot.lane.b32.xlu0 %v1272, 64
        %v2278 = vpop.permute.xlu0 %2277
        %2279 = vrot.lane.b32.xlu0 %v1274, 64
        %v2280 = vpop.permute.xlu0 %2279
        %2281 = vrot.lane.b32.xlu0 %v1277, 64
        %v2282 = vpop.permute.xlu0 %2281
        %2283 = vrot.lane.b32.xlu0 %v1279, 64
        %v2284 = vpop.permute.xlu0 %2283
        %2285 = vrot.lane.b32.xlu0 %v1282, 64
        %v2286 = vpop.permute.xlu0 %2285
        %2287 = vrot.lane.b32.xlu0 %v1284, 64
        %v2288 = vpop.permute.xlu0 %2287
        %2289 = vrot.lane.b32.xlu0 %v1287, 64
        %v2290 = vpop.permute.xlu0 %2289
        %2291 = vrot.lane.b32.xlu0 %v1289, 64
        %v2292 = vpop.permute.xlu0 %2291
        %2293 = vrot.lane.b32.xlu0 %v1390, 64
        %v2294 = vpop.permute.xlu0 %2293
        %2295 = vrot.lane.b32.xlu0 %v1392, 64
        %v2296 = vpop.permute.xlu0 %2295
        %2297 = vrot.lane.b32.xlu0 %v1395, 64
        %v2298 = vpop.permute.xlu0 %2297
        %2299 = vrot.lane.b32.xlu0 %v1397, 64
        %v2300 = vpop.permute.xlu0 %2299
        %2301 = vrot.lane.b32.xlu0 %v1400, 64
        %v2302 = vpop.permute.xlu0 %2301
        %2303 = vrot.lane.b32.xlu0 %v1402, 64
        %v2304 = vpop.permute.xlu0 %2303
        %2305 = vrot.lane.b32.xlu0 %v1405, 64
        %v2306 = vpop.permute.xlu0 %2305
        %2307 = vrot.lane.b32.xlu0 %v1407, 64
        %v2308 = vpop.permute.xlu0 %2307
        %2309 = vrot.lane.b32.xlu0 %v1410, 64
        %v2310 = vpop.permute.xlu0 %2309
        %2311 = vrot.lane.b32.xlu0 %v1412, 64
        %v2312 = vpop.permute.xlu0 %2311
        %2313 = vrot.lane.b32.xlu0 %v1415, 64
        %v2314 = vpop.permute.xlu0 %2313
        %2315 = vrot.lane.b32.xlu0 %v1417, 64
        %v2316 = vpop.permute.xlu0 %2315
        %2317 = vrot.lane.b32.xlu0 %v1420, 64
        %v2318 = vpop.permute.xlu0 %2317
        %2319 = vrot.lane.b32.xlu0 %v1422, 64
        %v2320 = vpop.permute.xlu0 %2319
        %2321 = vrot.lane.b32.xlu0 %v1425, 64
        %v2322 = vpop.permute.xlu0 %2321
        %2323 = vrot.lane.b32.xlu0 %v1427, 64
        %v2324 = vpop.permute.xlu0 %2323
        %2325 = vrot.lane.b32.xlu0 %v1430, 64
        %v2326 = vpop.permute.xlu0 %2325
        %2327 = vrot.lane.b32.xlu0 %v1432, 64
        %v2328 = vpop.permute.xlu0 %2327
        %2329 = vrot.lane.b32.xlu0 %v1435, 64
        %v2330 = vpop.permute.xlu0 %2329
        %2331 = vrot.lane.b32.xlu0 %v1437, 64
        %v2332 = vpop.permute.xlu0 %2331
        %2333 = vrot.lane.b32.xlu0 %v1440, 64
        %v2334 = vpop.permute.xlu0 %2333
        %2335 = vrot.lane.b32.xlu0 %v1442, 64
        %v2336 = vpop.permute.xlu0 %2335
        %2337 = vrot.lane.b32.xlu0 %v1445, 64
        %v2338 = vpop.permute.xlu0 %2337
        %2339 = vrot.lane.b32.xlu0 %v1447, 64
        %v2340 = vpop.permute.xlu0 %2339
        %2341 = vrot.lane.b32.xlu0 %v1450, 64
        %v2342 = vpop.permute.xlu0 %2341
        %2343 = vrot.lane.b32.xlu0 %v1452, 64
        %v2344 = vpop.permute.xlu0 %2343
        %2345 = vrot.lane.b32.xlu0 %v1455, 64
        %v2346 = vpop.permute.xlu0 %2345
        %2347 = vrot.lane.b32.xlu0 %v1457, 64
        %v2348 = vpop.permute.xlu0 %2347
        %2349 = vrot.lane.b32.xlu0 %v1460, 64
        %v2350 = vpop.permute.xlu0 %2349
        %2351 = vrot.lane.b32.xlu0 %v1462, 64
        %v2352 = vpop.permute.xlu0 %2351
        %2353 = vrot.lane.b32.xlu0 %v1465, 64
        %v2354 = vpop.permute.xlu0 %2353
        %2355 = vrot.lane.b32.xlu0 %v1467, 64
        %v2356 = vpop.permute.xlu0 %2355
        %v2357 = vlaneseq
        %v2358 = vand.u32 %v2357, 127
        %vm2359 = vcmp.lt.s32.totalorder %v2358, 64
        %v2360 = vsel %vm2359, %v2230, %v2294
        %v2361 = vsel %vm2359, %v2232, %v2296
        %v2362 = vsel %vm2359, %v2234, %v2298
        %v2363 = vsel %vm2359, %v2236, %v2300
        %v2364 = vsel %vm2359, %v2238, %v2302
        %v2365 = vsel %vm2359, %v2240, %v2304
        %v2366 = vsel %vm2359, %v2242, %v2306
        %v2367 = vsel %vm2359, %v2244, %v2308
        %v2368 = vsel %vm2359, %v2246, %v2310
        %v2369 = vsel %vm2359, %v2248, %v2312
        %v2370 = vsel %vm2359, %v2250, %v2314
        %v2371 = vsel %vm2359, %v2252, %v2316
        %v2372 = vsel %vm2359, %v2254, %v2318
        %v2373 = vsel %vm2359, %v2256, %v2320
        %v2374 = vsel %vm2359, %v2258, %v2322
        %v2375 = vsel %vm2359, %v2260, %v2324
        %v2376 = vsel %vm2359, %v2262, %v2326
        %v2377 = vsel %vm2359, %v2264, %v2328
        %v2378 = vsel %vm2359, %v2266, %v2330
        %v2379 = vsel %vm2359, %v2268, %v2332
        %v2380 = vsel %vm2359, %v2270, %v2334
        %v2381 = vsel %vm2359, %v2272, %v2336
        %v2382 = vsel %vm2359, %v2274, %v2338
        %v2383 = vsel %vm2359, %v2276, %v2340
        %v2384 = vsel %vm2359, %v2278, %v2342
        %v2385 = vsel %vm2359, %v2280, %v2344
        %v2386 = vsel %vm2359, %v2282, %v2346
        %v2387 = vsel %vm2359, %v2284, %v2348
        %v2388 = vsel %vm2359, %v2286, %v2350
        %v2389 = vsel %vm2359, %v2288, %v2352
        %v2390 = vsel %vm2359, %v2290, %v2354
        %v2391 = vsel %vm2359, %v2292, %v2356
        %v2392 = vsel %vm2359, %v2294, %v2230
        %v2393 = vsel %vm2359, %v2296, %v2232
        %v2394 = vsel %vm2359, %v2298, %v2234
        %v2395 = vsel %vm2359, %v2300, %v2236
        %v2396 = vsel %vm2359, %v2302, %v2238
        %v2397 = vsel %vm2359, %v2304, %v2240
        %v2398 = vsel %vm2359, %v2306, %v2242
        %v2399 = vsel %vm2359, %v2308, %v2244
        %v2400 = vsel %vm2359, %v2310, %v2246
        %v2401 = vsel %vm2359, %v2312, %v2248
        %v2402 = vsel %vm2359, %v2314, %v2250
        %v2403 = vsel %vm2359, %v2316, %v2252
        %v2404 = vsel %vm2359, %v2318, %v2254
        %v2405 = vsel %vm2359, %v2320, %v2256
        %v2406 = vsel %vm2359, %v2322, %v2258
        %v2407 = vsel %vm2359, %v2324, %v2260
        %v2408 = vsel %vm2359, %v2326, %v2262
        %v2409 = vsel %vm2359, %v2328, %v2264
        %v2410 = vsel %vm2359, %v2330, %v2266
        %v2411 = vsel %vm2359, %v2332, %v2268
        %v2412 = vsel %vm2359, %v2334, %v2270
        %v2413 = vsel %vm2359, %v2336, %v2272
        %v2414 = vsel %vm2359, %v2338, %v2274
        %v2415 = vsel %vm2359, %v2340, %v2276
        %v2416 = vsel %vm2359, %v2342, %v2278
        %v2417 = vsel %vm2359, %v2344, %v2280
        %v2418 = vsel %vm2359, %v2346, %v2282
        %v2419 = vsel %vm2359, %v2348, %v2284
        %v2420 = vsel %vm2359, %v2350, %v2286
        %v2421 = vsel %vm2359, %v2352, %v2288
        %v2422 = vsel %vm2359, %v2354, %v2290
        %v2423 = vsel %vm2359, %v2356, %v2292
        %v2424 = vmul.f32 %v1212, %v2181
        %v2425 = vmul.f32 %v1390, %v2182
        %v2426 = vmul.f32 %v1214, %v2183
        %v2427 = vmul.f32 %v1392, %v2184
        %v2428 = vmul.f32 %v1217, %v2185
        %v2429 = vmul.f32 %v1395, %v2186
        %v2430 = vmul.f32 %v1219, %v2187
        %v2431 = vmul.f32 %v1397, %v2188
        %v2432 = vmul.f32 %v1222, %v2189
        %v2433 = vmul.f32 %v1400, %v2190
        %v2434 = vmul.f32 %v1224, %v2191
        %v2435 = vmul.f32 %v1402, %v2192
        %v2436 = vmul.f32 %v1227, %v2193
        %v2437 = vmul.f32 %v1405, %v2194
        %v2438 = vmul.f32 %v1229, %v2195
        %v2439 = vmul.f32 %v1407, %v2196
        %v2440 = vmul.f32 %v1232, %v2181
        %v2441 = vmul.f32 %v1410, %v2182
        %v2442 = vmul.f32 %v1234, %v2183
        %v2443 = vmul.f32 %v1412, %v2184
        %v2444 = vmul.f32 %v1237, %v2185
        %v2445 = vmul.f32 %v1415, %v2186
        %v2446 = vmul.f32 %v1239, %v2187
        %v2447 = vmul.f32 %v1417, %v2188
        %v2448 = vmul.f32 %v1242, %v2189
        %v2449 = vmul.f32 %v1420, %v2190
        %v2450 = vmul.f32 %v1244, %v2191
        %v2451 = vmul.f32 %v1422, %v2192
        %v2452 = vmul.f32 %v1247, %v2193
        %v2453 = vmul.f32 %v1425, %v2194
        %v2454 = vmul.f32 %v1249, %v2195
        %v2455 = vmul.f32 %v1427, %v2196
        %v2456 = vmul.f32 %v1252, %v2181
        %v2457 = vmul.f32 %v1430, %v2182
        %v2458 = vmul.f32 %v1254, %v2183
        %v2459 = vmul.f32 %v1432, %v2184
        %v2460 = vmul.f32 %v1257, %v2185
        %v2461 = vmul.f32 %v1435, %v2186
        %v2462 = vmul.f32 %v1259, %v2187
        %v2463 = vmul.f32 %v1437, %v2188
        %v2464 = vmul.f32 %v1262, %v2189
        %v2465 = vmul.f32 %v1440, %v2190
        %v2466 = vmul.f32 %v1264, %v2191
        %v2467 = vmul.f32 %v1442, %v2192
        %v2468 = vmul.f32 %v1267, %v2193
        %v2469 = vmul.f32 %v1445, %v2194
        %v2470 = vmul.f32 %v1269, %v2195
        %v2471 = vmul.f32 %v1447, %v2196
        %v2472 = vmul.f32 %v1272, %v2181
        %v2473 = vmul.f32 %v1450, %v2182
        %v2474 = vmul.f32 %v1274, %v2183
        %v2475 = vmul.f32 %v1452, %v2184
        %v2476 = vmul.f32 %v1277, %v2185
        %v2477 = vmul.f32 %v1455, %v2186
        %v2478 = vmul.f32 %v1279, %v2187
        %v2479 = vmul.f32 %v1457, %v2188
        %v2480 = vmul.f32 %v1282, %v2189
        %v2481 = vmul.f32 %v1460, %v2190
        %v2482 = vmul.f32 %v1284, %v2191
        %v2483 = vmul.f32 %v1462, %v2192
        %v2484 = vmul.f32 %v1287, %v2193
        %v2485 = vmul.f32 %v1465, %v2194
        %v2486 = vmul.f32 %v1289, %v2195
        %v2487 = vmul.f32 %v1467, %v2196
        %v2488 = vmul.f32 %v2360, %v2197
        %v2489 = vmul.f32 %v2392, %v2198
        %v2490 = vmul.f32 %v2361, %v2199
        %v2491 = vmul.f32 %v2393, %v2200
        %v2492 = vmul.f32 %v2362, %v2201
        %v2493 = vmul.f32 %v2394, %v2202
        %v2494 = vmul.f32 %v2363, %v2203
        %v2495 = vmul.f32 %v2395, %v2204
        %v2496 = vmul.f32 %v2364, %v2205
        %v2497 = vmul.f32 %v2396, %v2206
        %v2498 = vmul.f32 %v2365, %v2207
        %v2499 = vmul.f32 %v2397, %v2208
        %v2500 = vmul.f32 %v2366, %v2209
        %v2501 = vmul.f32 %v2398, %v2210
        %v2502 = vmul.f32 %v2367, %v2211
        %v2503 = vmul.f32 %v2399, %v2212
        %v2504 = vmul.f32 %v2368, %v2197
        %v2505 = vmul.f32 %v2400, %v2198
        %v2506 = vmul.f32 %v2369, %v2199
        %v2507 = vmul.f32 %v2401, %v2200
        %v2508 = vmul.f32 %v2370, %v2201
        %v2509 = vmul.f32 %v2402, %v2202
        %v2510 = vmul.f32 %v2371, %v2203
        %v2511 = vmul.f32 %v2403, %v2204
        %v2512 = vmul.f32 %v2372, %v2205
        %v2513 = vmul.f32 %v2404, %v2206
        %v2514 = vmul.f32 %v2373, %v2207
        %v2515 = vmul.f32 %v2405, %v2208
        %v2516 = vmul.f32 %v2374, %v2209
        %v2517 = vmul.f32 %v2406, %v2210
        %v2518 = vmul.f32 %v2375, %v2211
        %v2519 = vmul.f32 %v2407, %v2212
        %v2520 = vmul.f32 %v2376, %v2197
        %v2521 = vmul.f32 %v2408, %v2198
        %v2522 = vmul.f32 %v2377, %v2199
        %v2523 = vmul.f32 %v2409, %v2200
        %v2524 = vmul.f32 %v2378, %v2201
        %v2525 = vmul.f32 %v2410, %v2202
        %v2526 = vmul.f32 %v2379, %v2203
        %v2527 = vmul.f32 %v2411, %v2204
        %v2528 = vmul.f32 %v2380, %v2205
        %v2529 = vmul.f32 %v2412, %v2206
        %v2530 = vmul.f32 %v2381, %v2207
        %v2531 = vmul.f32 %v2413, %v2208
        %v2532 = vmul.f32 %v2382, %v2209
        %v2533 = vmul.f32 %v2414, %v2210
        %v2534 = vmul.f32 %v2383, %v2211
        %v2535 = vmul.f32 %v2415, %v2212
        %v2536 = vmul.f32 %v2384, %v2197
        %v2537 = vmul.f32 %v2416, %v2198
        %v2538 = vmul.f32 %v2385, %v2199
        %v2539 = vmul.f32 %v2417, %v2200
        %v2540 = vmul.f32 %v2386, %v2201
        %v2541 = vmul.f32 %v2418, %v2202
        %v2542 = vmul.f32 %v2387, %v2203
        %v2543 = vmul.f32 %v2419, %v2204
        %v2544 = vmul.f32 %v2388, %v2205
        %v2545 = vmul.f32 %v2420, %v2206
        %v2546 = vmul.f32 %v2389, %v2207
        %v2547 = vmul.f32 %v2421, %v2208
        %v2548 = vmul.f32 %v2390, %v2209
        %v2549 = vmul.f32 %v2422, %v2210
        %v2550 = vmul.f32 %v2391, %v2211
        %v2551 = vmul.f32 %v2423, %v2212
        %v2552 = vadd.f32 %v2424, %v2488
        %v2553 = vadd.f32 %v2425, %v2489
        %v2554 = vadd.f32 %v2426, %v2490
        %v2555 = vadd.f32 %v2427, %v2491
        %v2556 = vadd.f32 %v2428, %v2492
        %v2557 = vadd.f32 %v2429, %v2493
        %v2558 = vadd.f32 %v2430, %v2494
        %v2559 = vadd.f32 %v2431, %v2495
        %v2560 = vadd.f32 %v2432, %v2496
        %v2561 = vadd.f32 %v2433, %v2497
        %v2562 = vadd.f32 %v2434, %v2498
        %v2563 = vadd.f32 %v2435, %v2499
        %v2564 = vadd.f32 %v2436, %v2500
        %v2565 = vadd.f32 %v2437, %v2501
        %v2566 = vadd.f32 %v2438, %v2502
        %v2567 = vadd.f32 %v2439, %v2503
        %v2568 = vadd.f32 %v2440, %v2504
        %v2569 = vadd.f32 %v2441, %v2505
        %v2570 = vadd.f32 %v2442, %v2506
        %v2571 = vadd.f32 %v2443, %v2507
        %v2572 = vadd.f32 %v2444, %v2508
        %v2573 = vadd.f32 %v2445, %v2509
        %v2574 = vadd.f32 %v2446, %v2510
        %v2575 = vadd.f32 %v2447, %v2511
        %v2576 = vadd.f32 %v2448, %v2512
        %v2577 = vadd.f32 %v2449, %v2513
        %v2578 = vadd.f32 %v2450, %v2514
        %v2579 = vadd.f32 %v2451, %v2515
        %v2580 = vadd.f32 %v2452, %v2516
        %v2581 = vadd.f32 %v2453, %v2517
        %v2582 = vadd.f32 %v2454, %v2518
        %v2583 = vadd.f32 %v2455, %v2519
        %v2584 = vadd.f32 %v2456, %v2520
        %v2585 = vadd.f32 %v2457, %v2521
        %v2586 = vadd.f32 %v2458, %v2522
        %v2587 = vadd.f32 %v2459, %v2523
        %v2588 = vadd.f32 %v2460, %v2524
        %v2589 = vadd.f32 %v2461, %v2525
        %v2590 = vadd.f32 %v2462, %v2526
        %v2591 = vadd.f32 %v2463, %v2527
        %v2592 = vadd.f32 %v2464, %v2528
        %v2593 = vadd.f32 %v2465, %v2529
        %v2594 = vadd.f32 %v2466, %v2530
        %v2595 = vadd.f32 %v2467, %v2531
        %v2596 = vadd.f32 %v2468, %v2532
        %v2597 = vadd.f32 %v2469, %v2533
        %v2598 = vadd.f32 %v2470, %v2534
        %v2599 = vadd.f32 %v2471, %v2535
        %v2600 = vadd.f32 %v2472, %v2536
        %v2601 = vadd.f32 %v2473, %v2537
        %v2602 = vadd.f32 %v2474, %v2538
        %v2603 = vadd.f32 %v2475, %v2539
        %v2604 = vadd.f32 %v2476, %v2540
        %v2605 = vadd.f32 %v2477, %v2541
        %v2606 = vadd.f32 %v2478, %v2542
        %v2607 = vadd.f32 %v2479, %v2543
        %v2608 = vadd.f32 %v2480, %v2544
        %v2609 = vadd.f32 %v2481, %v2545
        %v2610 = vadd.f32 %v2482, %v2546
        %v2611 = vadd.f32 %v2483, %v2547
        %v2612 = vadd.f32 %v2484, %v2548
        %v2613 = vadd.f32 %v2485, %v2549
        %v2614 = vadd.f32 %v2486, %v2550
        %v2615 = vadd.f32 %v2487, %v2551
        %v2616 = vmul.f32 %v2392, %v2213
        %v2617 = vmul.f32 %v2360, %v2214
        %v2618 = vmul.f32 %v2393, %v2215
        %v2619 = vmul.f32 %v2361, %v2216
        %v2620 = vmul.f32 %v2394, %v2217
        %v2621 = vmul.f32 %v2362, %v2218
        %v2622 = vmul.f32 %v2395, %v2219
        %v2623 = vmul.f32 %v2363, %v2220
        %v2624 = vmul.f32 %v2396, %v2221
        %v2625 = vmul.f32 %v2364, %v2222
        %v2626 = vmul.f32 %v2397, %v2223
        %v2627 = vmul.f32 %v2365, %v2224
        %v2628 = vmul.f32 %v2398, %v2225
        %v2629 = vmul.f32 %v2366, %v2226
        %v2630 = vmul.f32 %v2399, %v2227
        %v2631 = vmul.f32 %v2367, %v2228
        %v2632 = vmul.f32 %v2400, %v2213
        %v2633 = vmul.f32 %v2368, %v2214
        %v2634 = vmul.f32 %v2401, %v2215
        %v2635 = vmul.f32 %v2369, %v2216
        %v2636 = vmul.f32 %v2402, %v2217
        %v2637 = vmul.f32 %v2370, %v2218
        %v2638 = vmul.f32 %v2403, %v2219
        %v2639 = vmul.f32 %v2371, %v2220
        %v2640 = vmul.f32 %v2404, %v2221
        %v2641 = vmul.f32 %v2372, %v2222
        %v2642 = vmul.f32 %v2405, %v2223
        %v2643 = vmul.f32 %v2373, %v2224
        %v2644 = vmul.f32 %v2406, %v2225
        %v2645 = vmul.f32 %v2374, %v2226
        %v2646 = vmul.f32 %v2407, %v2227
        %v2647 = vmul.f32 %v2375, %v2228
        %v2648 = vmul.f32 %v2408, %v2213
        %v2649 = vmul.f32 %v2376, %v2214
        %v2650 = vmul.f32 %v2409, %v2215
        %v2651 = vmul.f32 %v2377, %v2216
        %v2652 = vmul.f32 %v2410, %v2217
        %v2653 = vmul.f32 %v2378, %v2218
        %v2654 = vmul.f32 %v2411, %v2219
        %v2655 = vmul.f32 %v2379, %v2220
        %v2656 = vmul.f32 %v2412, %v2221
        %v2657 = vmul.f32 %v2380, %v2222
        %v2658 = vmul.f32 %v2413, %v2223
        %v2659 = vmul.f32 %v2381, %v2224
        %v2660 = vmul.f32 %v2414, %v2225
        %v2661 = vmul.f32 %v2382, %v2226
        %v2662 = vmul.f32 %v2415, %v2227
        %v2663 = vmul.f32 %v2383, %v2228
        %v2664 = vmul.f32 %v2416, %v2213
        %v2665 = vmul.f32 %v2384, %v2214
        %v2666 = vmul.f32 %v2417, %v2215
        %v2667 = vmul.f32 %v2385, %v2216
        %v2668 = vmul.f32 %v2418, %v2217
        %v2669 = vmul.f32 %v2386, %v2218
        %v2670 = vmul.f32 %v2419, %v2219
        %v2671 = vmul.f32 %v2387, %v2220
        %v2672 = vmul.f32 %v2420, %v2221
        %v2673 = vmul.f32 %v2388, %v2222
        %v2674 = vmul.f32 %v2421, %v2223
        %v2675 = vmul.f32 %v2389, %v2224
        %v2676 = vmul.f32 %v2422, %v2225
        %v2677 = vmul.f32 %v2390, %v2226
        %v2678 = vmul.f32 %v2423, %v2227
        %v2679 = vmul.f32 %v2391, %v2228
        %v2680 = vadd.f32 %v2552, %v2616
        %v2681 = vadd.f32 %v2553, %v2617
        %v2682 = vadd.f32 %v2554, %v2618
        %v2683 = vadd.f32 %v2555, %v2619
        %v2684 = vadd.f32 %v2556, %v2620
        %v2685 = vadd.f32 %v2557, %v2621
        %v2686 = vadd.f32 %v2558, %v2622
        %v2687 = vadd.f32 %v2559, %v2623
        %v2688 = vadd.f32 %v2560, %v2624
        %v2689 = vadd.f32 %v2561, %v2625
        %v2690 = vadd.f32 %v2562, %v2626
        %v2691 = vadd.f32 %v2563, %v2627
        %v2692 = vadd.f32 %v2564, %v2628
        %v2693 = vadd.f32 %v2565, %v2629
        %v2694 = vadd.f32 %v2566, %v2630
        %v2695 = vadd.f32 %v2567, %v2631
        %v2696 = vadd.f32 %v2568, %v2632
        %v2697 = vadd.f32 %v2569, %v2633
        %v2698 = vadd.f32 %v2570, %v2634
        %v2699 = vadd.f32 %v2571, %v2635
        %v2700 = vadd.f32 %v2572, %v2636
        %v2701 = vadd.f32 %v2573, %v2637
        %v2702 = vadd.f32 %v2574, %v2638
        %v2703 = vadd.f32 %v2575, %v2639
        %v2704 = vadd.f32 %v2576, %v2640
        %v2705 = vadd.f32 %v2577, %v2641
        %v2706 = vadd.f32 %v2578, %v2642
        %v2707 = vadd.f32 %v2579, %v2643
        %v2708 = vadd.f32 %v2580, %v2644
        %v2709 = vadd.f32 %v2581, %v2645
        %v2710 = vadd.f32 %v2582, %v2646
        %v2711 = vadd.f32 %v2583, %v2647
        %v2712 = vadd.f32 %v2584, %v2648
        %v2713 = vadd.f32 %v2585, %v2649
        %v2714 = vadd.f32 %v2586, %v2650
        %v2715 = vadd.f32 %v2587, %v2651
        %v2716 = vadd.f32 %v2588, %v2652
        %v2717 = vadd.f32 %v2589, %v2653
        %v2718 = vadd.f32 %v2590, %v2654
        %v2719 = vadd.f32 %v2591, %v2655
        %v2720 = vadd.f32 %v2592, %v2656
        %v2721 = vadd.f32 %v2593, %v2657
        %v2722 = vadd.f32 %v2594, %v2658
        %v2723 = vadd.f32 %v2595, %v2659
        %v2724 = vadd.f32 %v2596, %v2660
        %v2725 = vadd.f32 %v2597, %v2661
        %v2726 = vadd.f32 %v2598, %v2662
        %v2727 = vadd.f32 %v2599, %v2663
        %v2728 = vadd.f32 %v2600, %v2664
        %v2729 = vadd.f32 %v2601, %v2665
        %v2730 = vadd.f32 %v2602, %v2666
        %v2731 = vadd.f32 %v2603, %v2667
        %v2732 = vadd.f32 %v2604, %v2668
        %v2733 = vadd.f32 %v2605, %v2669
        %v2734 = vadd.f32 %v2606, %v2670
        %v2735 = vadd.f32 %v2607, %v2671
        %v2736 = vadd.f32 %v2608, %v2672
        %v2737 = vadd.f32 %v2609, %v2673
        %v2738 = vadd.f32 %v2610, %v2674
        %v2739 = vadd.f32 %v2611, %v2675
        %v2740 = vadd.f32 %v2612, %v2676
        %v2741 = vadd.f32 %v2613, %v2677
        %v2742 = vadd.f32 %v2614, %v2678
        %v2743 = vadd.f32 %v2615, %v2679
        %2744 = vrot.lane.b32.xlu0 %v1568, 64
        %v2745 = vpop.permute.xlu0 %2744
        %2746 = vrot.lane.b32.xlu0 %v1570, 64
        %v2747 = vpop.permute.xlu0 %2746
        %2748 = vrot.lane.b32.xlu0 %v1573, 64
        %v2749 = vpop.permute.xlu0 %2748
        %2750 = vrot.lane.b32.xlu0 %v1575, 64
        %v2751 = vpop.permute.xlu0 %2750
        %2752 = vrot.lane.b32.xlu0 %v1578, 64
        %v2753 = vpop.permute.xlu0 %2752
        %2754 = vrot.lane.b32.xlu0 %v1580, 64
        %v2755 = vpop.permute.xlu0 %2754
        %2756 = vrot.lane.b32.xlu0 %v1583, 64
        %v2757 = vpop.permute.xlu0 %2756
        %2758 = vrot.lane.b32.xlu0 %v1585, 64
        %v2759 = vpop.permute.xlu0 %2758
        %2760 = vrot.lane.b32.xlu0 %v1588, 64
        %v2761 = vpop.permute.xlu0 %2760
        %2762 = vrot.lane.b32.xlu0 %v1590, 64
        %v2763 = vpop.permute.xlu0 %2762
        %2764 = vrot.lane.b32.xlu0 %v1593, 64
        %v2765 = vpop.permute.xlu0 %2764
        %2766 = vrot.lane.b32.xlu0 %v1595, 64
        %v2767 = vpop.permute.xlu0 %2766
        %2768 = vrot.lane.b32.xlu0 %v1598, 64
        %v2769 = vpop.permute.xlu0 %2768
        %2770 = vrot.lane.b32.xlu0 %v1600, 64
        %v2771 = vpop.permute.xlu0 %2770
        %2772 = vrot.lane.b32.xlu0 %v1603, 64
        %v2773 = vpop.permute.xlu0 %2772
        %2774 = vrot.lane.b32.xlu0 %v1605, 64
        %v2775 = vpop.permute.xlu0 %2774
        %2776 = vrot.lane.b32.xlu0 %v1608, 64
        %v2777 = vpop.permute.xlu0 %2776
        %2778 = vrot.lane.b32.xlu0 %v1610, 64
        %v2779 = vpop.permute.xlu0 %2778
        %2780 = vrot.lane.b32.xlu0 %v1613, 64
        %v2781 = vpop.permute.xlu0 %2780
        %2782 = vrot.lane.b32.xlu0 %v1615, 64
        %v2783 = vpop.permute.xlu0 %2782
        %2784 = vrot.lane.b32.xlu0 %v1618, 64
        %v2785 = vpop.permute.xlu0 %2784
        %2786 = vrot.lane.b32.xlu0 %v1620, 64
        %v2787 = vpop.permute.xlu0 %2786
        %2788 = vrot.lane.b32.xlu0 %v1623, 64
        %v2789 = vpop.permute.xlu0 %2788
        %2790 = vrot.lane.b32.xlu0 %v1625, 64
        %v2791 = vpop.permute.xlu0 %2790
        %2792 = vrot.lane.b32.xlu0 %v1628, 64
        %v2793 = vpop.permute.xlu0 %2792
        %2794 = vrot.lane.b32.xlu0 %v1630, 64
        %v2795 = vpop.permute.xlu0 %2794
        %2796 = vrot.lane.b32.xlu0 %v1633, 64
        %v2797 = vpop.permute.xlu0 %2796
        %2798 = vrot.lane.b32.xlu0 %v1635, 64
        %v2799 = vpop.permute.xlu0 %2798
        %2800 = vrot.lane.b32.xlu0 %v1638, 64
        %v2801 = vpop.permute.xlu0 %2800
        %2802 = vrot.lane.b32.xlu0 %v1640, 64
        %v2803 = vpop.permute.xlu0 %2802
        %2804 = vrot.lane.b32.xlu0 %v1643, 64
        %v2805 = vpop.permute.xlu0 %2804
        %2806 = vrot.lane.b32.xlu0 %v1645, 64
        %v2807 = vpop.permute.xlu0 %2806
        %2808 = vrot.lane.b32.xlu0 %v1746, 64
        %v2809 = vpop.permute.xlu0 %2808
        %2810 = vrot.lane.b32.xlu0 %v1748, 64
        %v2811 = vpop.permute.xlu0 %2810
        %2812 = vrot.lane.b32.xlu0 %v1751, 64
        %v2813 = vpop.permute.xlu0 %2812
        %2814 = vrot.lane.b32.xlu0 %v1753, 64
        %v2815 = vpop.permute.xlu0 %2814
        %2816 = vrot.lane.b32.xlu0 %v1756, 64
        %v2817 = vpop.permute.xlu0 %2816
        %2818 = vrot.lane.b32.xlu0 %v1758, 64
        %v2819 = vpop.permute.xlu0 %2818
        %2820 = vrot.lane.b32.xlu0 %v1761, 64
        %v2821 = vpop.permute.xlu0 %2820
        %2822 = vrot.lane.b32.xlu0 %v1763, 64
        %v2823 = vpop.permute.xlu0 %2822
        %2824 = vrot.lane.b32.xlu0 %v1766, 64
        %v2825 = vpop.permute.xlu0 %2824
        %2826 = vrot.lane.b32.xlu0 %v1768, 64
        %v2827 = vpop.permute.xlu0 %2826
        %2828 = vrot.lane.b32.xlu0 %v1771, 64
        %v2829 = vpop.permute.xlu0 %2828
        %2830 = vrot.lane.b32.xlu0 %v1773, 64
        %v2831 = vpop.permute.xlu0 %2830
        %2832 = vrot.lane.b32.xlu0 %v1776, 64
        %v2833 = vpop.permute.xlu0 %2832
        %2834 = vrot.lane.b32.xlu0 %v1778, 64
        %v2835 = vpop.permute.xlu0 %2834
        %2836 = vrot.lane.b32.xlu0 %v1781, 64
        %v2837 = vpop.permute.xlu0 %2836
        %2838 = vrot.lane.b32.xlu0 %v1783, 64
        %v2839 = vpop.permute.xlu0 %2838
        %2840 = vrot.lane.b32.xlu0 %v1786, 64
        %v2841 = vpop.permute.xlu0 %2840
        %2842 = vrot.lane.b32.xlu0 %v1788, 64
        %v2843 = vpop.permute.xlu0 %2842
        %2844 = vrot.lane.b32.xlu0 %v1791, 64
        %v2845 = vpop.permute.xlu0 %2844
        %2846 = vrot.lane.b32.xlu0 %v1793, 64
        %v2847 = vpop.permute.xlu0 %2846
        %2848 = vrot.lane.b32.xlu0 %v1796, 64
        %v2849 = vpop.permute.xlu0 %2848
        %2850 = vrot.lane.b32.xlu0 %v1798, 64
        %v2851 = vpop.permute.xlu0 %2850
        %2852 = vrot.lane.b32.xlu0 %v1801, 64
        %v2853 = vpop.permute.xlu0 %2852
        %2854 = vrot.lane.b32.xlu0 %v1803, 64
        %v2855 = vpop.permute.xlu0 %2854
        %2856 = vrot.lane.b32.xlu0 %v1806, 64
        %v2857 = vpop.permute.xlu0 %2856
        %2858 = vrot.lane.b32.xlu0 %v1808, 64
        %v2859 = vpop.permute.xlu0 %2858
        %2860 = vrot.lane.b32.xlu0 %v1811, 64
        %v2861 = vpop.permute.xlu0 %2860
        %2862 = vrot.lane.b32.xlu0 %v1813, 64
        %v2863 = vpop.permute.xlu0 %2862
        %2864 = vrot.lane.b32.xlu0 %v1816, 64
        %v2865 = vpop.permute.xlu0 %2864
        %2866 = vrot.lane.b32.xlu0 %v1818, 64
        %v2867 = vpop.permute.xlu0 %2866
        %2868 = vrot.lane.b32.xlu0 %v1821, 64
        %v2869 = vpop.permute.xlu0 %2868
        %2870 = vrot.lane.b32.xlu0 %v1823, 64
        %v2871 = vpop.permute.xlu0 %2870
        %v2872 = vsel %vm2359, %v2745, %v2809
        %v2873 = vsel %vm2359, %v2747, %v2811
        %v2874 = vsel %vm2359, %v2749, %v2813
        %v2875 = vsel %vm2359, %v2751, %v2815
        %v2876 = vsel %vm2359, %v2753, %v2817
        %v2877 = vsel %vm2359, %v2755, %v2819
        %v2878 = vsel %vm2359, %v2757, %v2821
        %v2879 = vsel %vm2359, %v2759, %v2823
        %v2880 = vsel %vm2359, %v2761, %v2825
        %v2881 = vsel %vm2359, %v2763, %v2827
        %v2882 = vsel %vm2359, %v2765, %v2829
        %v2883 = vsel %vm2359, %v2767, %v2831
        %v2884 = vsel %vm2359, %v2769, %v2833
        %v2885 = vsel %vm2359, %v2771, %v2835
        %v2886 = vsel %vm2359, %v2773, %v2837
        %v2887 = vsel %vm2359, %v2775, %v2839
        %v2888 = vsel %vm2359, %v2777, %v2841
        %v2889 = vsel %vm2359, %v2779, %v2843
        %v2890 = vsel %vm2359, %v2781, %v2845
        %v2891 = vsel %vm2359, %v2783, %v2847
        %v2892 = vsel %vm2359, %v2785, %v2849
        %v2893 = vsel %vm2359, %v2787, %v2851
        %v2894 = vsel %vm2359, %v2789, %v2853
        %v2895 = vsel %vm2359, %v2791, %v2855
        %v2896 = vsel %vm2359, %v2793, %v2857
        %v2897 = vsel %vm2359, %v2795, %v2859
        %v2898 = vsel %vm2359, %v2797, %v2861
        %v2899 = vsel %vm2359, %v2799, %v2863
        %v2900 = vsel %vm2359, %v2801, %v2865
        %v2901 = vsel %vm2359, %v2803, %v2867
        %v2902 = vsel %vm2359, %v2805, %v2869
        %v2903 = vsel %vm2359, %v2807, %v2871
        %v2904 = vsel %vm2359, %v2809, %v2745
        %v2905 = vsel %vm2359, %v2811, %v2747
        %v2906 = vsel %vm2359, %v2813, %v2749
        %v2907 = vsel %vm2359, %v2815, %v2751
        %v2908 = vsel %vm2359, %v2817, %v2753
        %v2909 = vsel %vm2359, %v2819, %v2755
        %v2910 = vsel %vm2359, %v2821, %v2757
        %v2911 = vsel %vm2359, %v2823, %v2759
        %v2912 = vsel %vm2359, %v2825, %v2761
        %v2913 = vsel %vm2359, %v2827, %v2763
        %v2914 = vsel %vm2359, %v2829, %v2765
        %v2915 = vsel %vm2359, %v2831, %v2767
        %v2916 = vsel %vm2359, %v2833, %v2769
        %v2917 = vsel %vm2359, %v2835, %v2771
        %v2918 = vsel %vm2359, %v2837, %v2773
        %v2919 = vsel %vm2359, %v2839, %v2775
        %v2920 = vsel %vm2359, %v2841, %v2777
        %v2921 = vsel %vm2359, %v2843, %v2779
        %v2922 = vsel %vm2359, %v2845, %v2781
        %v2923 = vsel %vm2359, %v2847, %v2783
        %v2924 = vsel %vm2359, %v2849, %v2785
        %v2925 = vsel %vm2359, %v2851, %v2787
        %v2926 = vsel %vm2359, %v2853, %v2789
        %v2927 = vsel %vm2359, %v2855, %v2791
        %v2928 = vsel %vm2359, %v2857, %v2793
        %v2929 = vsel %vm2359, %v2859, %v2795
        %v2930 = vsel %vm2359, %v2861, %v2797
        %v2931 = vsel %vm2359, %v2863, %v2799
        %v2932 = vsel %vm2359, %v2865, %v2801
        %v2933 = vsel %vm2359, %v2867, %v2803
        %v2934 = vsel %vm2359, %v2869, %v2805
        %v2935 = vsel %vm2359, %v2871, %v2807
        %v2936 = vmul.f32 %v1568, %v2181
        %v2937 = vmul.f32 %v1746, %v2182
        %v2938 = vmul.f32 %v1570, %v2183
        %v2939 = vmul.f32 %v1748, %v2184
        %v2940 = vmul.f32 %v1573, %v2185
        %v2941 = vmul.f32 %v1751, %v2186
        %v2942 = vmul.f32 %v1575, %v2187
        %v2943 = vmul.f32 %v1753, %v2188
        %v2944 = vmul.f32 %v1578, %v2189
        %v2945 = vmul.f32 %v1756, %v2190
        %v2946 = vmul.f32 %v1580, %v2191
        %v2947 = vmul.f32 %v1758, %v2192
        %v2948 = vmul.f32 %v1583, %v2193
        %v2949 = vmul.f32 %v1761, %v2194
        %v2950 = vmul.f32 %v1585, %v2195
        %v2951 = vmul.f32 %v1763, %v2196
        %v2952 = vmul.f32 %v1588, %v2181
        %v2953 = vmul.f32 %v1766, %v2182
        %v2954 = vmul.f32 %v1590, %v2183
        %v2955 = vmul.f32 %v1768, %v2184
        %v2956 = vmul.f32 %v1593, %v2185
        %v2957 = vmul.f32 %v1771, %v2186
        %v2958 = vmul.f32 %v1595, %v2187
        %v2959 = vmul.f32 %v1773, %v2188
        %v2960 = vmul.f32 %v1598, %v2189
        %v2961 = vmul.f32 %v1776, %v2190
        %v2962 = vmul.f32 %v1600, %v2191
        %v2963 = vmul.f32 %v1778, %v2192
        %v2964 = vmul.f32 %v1603, %v2193
        %v2965 = vmul.f32 %v1781, %v2194
        %v2966 = vmul.f32 %v1605, %v2195
        %v2967 = vmul.f32 %v1783, %v2196
        %v2968 = vmul.f32 %v1608, %v2181
        %v2969 = vmul.f32 %v1786, %v2182
        %v2970 = vmul.f32 %v1610, %v2183
        %v2971 = vmul.f32 %v1788, %v2184
        %v2972 = vmul.f32 %v1613, %v2185
        %v2973 = vmul.f32 %v1791, %v2186
        %v2974 = vmul.f32 %v1615, %v2187
        %v2975 = vmul.f32 %v1793, %v2188
        %v2976 = vmul.f32 %v1618, %v2189
        %v2977 = vmul.f32 %v1796, %v2190
        %v2978 = vmul.f32 %v1620, %v2191
        %v2979 = vmul.f32 %v1798, %v2192
        %v2980 = vmul.f32 %v1623, %v2193
        %v2981 = vmul.f32 %v1801, %v2194
        %v2982 = vmul.f32 %v1625, %v2195
        %v2983 = vmul.f32 %v1803, %v2196
        %v2984 = vmul.f32 %v1628, %v2181
        %v2985 = vmul.f32 %v1806, %v2182
        %v2986 = vmul.f32 %v1630, %v2183
        %v2987 = vmul.f32 %v1808, %v2184
        %v2988 = vmul.f32 %v1633, %v2185
        %v2989 = vmul.f32 %v1811, %v2186
        %v2990 = vmul.f32 %v1635, %v2187
        %v2991 = vmul.f32 %v1813, %v2188
        %v2992 = vmul.f32 %v1638, %v2189
        %v2993 = vmul.f32 %v1816, %v2190
        %v2994 = vmul.f32 %v1640, %v2191
        %v2995 = vmul.f32 %v1818, %v2192
        %v2996 = vmul.f32 %v1643, %v2193
        %v2997 = vmul.f32 %v1821, %v2194
        %v2998 = vmul.f32 %v1645, %v2195
        %v2999 = vmul.f32 %v1823, %v2196
        %v3000 = vmul.f32 %v2872, %v2197
        %v3001 = vmul.f32 %v2904, %v2198
        %v3002 = vmul.f32 %v2873, %v2199
        %v3003 = vmul.f32 %v2905, %v2200
        %v3004 = vmul.f32 %v2874, %v2201
        %v3005 = vmul.f32 %v2906, %v2202
        %v3006 = vmul.f32 %v2875, %v2203
        %v3007 = vmul.f32 %v2907, %v2204
        %v3008 = vmul.f32 %v2876, %v2205
        %v3009 = vmul.f32 %v2908, %v2206
        %v3010 = vmul.f32 %v2877, %v2207
        %v3011 = vmul.f32 %v2909, %v2208
        %v3012 = vmul.f32 %v2878, %v2209
        %v3013 = vmul.f32 %v2910, %v2210
        %v3014 = vmul.f32 %v2879, %v2211
        %v3015 = vmul.f32 %v2911, %v2212
        %v3016 = vmul.f32 %v2880, %v2197
        %v3017 = vmul.f32 %v2912, %v2198
        %v3018 = vmul.f32 %v2881, %v2199
        %v3019 = vmul.f32 %v2913, %v2200
        %v3020 = vmul.f32 %v2882, %v2201
        %v3021 = vmul.f32 %v2914, %v2202
        %v3022 = vmul.f32 %v2883, %v2203
        %v3023 = vmul.f32 %v2915, %v2204
        %v3024 = vmul.f32 %v2884, %v2205
        %v3025 = vmul.f32 %v2916, %v2206
        %v3026 = vmul.f32 %v2885, %v2207
        %v3027 = vmul.f32 %v2917, %v2208
        %v3028 = vmul.f32 %v2886, %v2209
        %v3029 = vmul.f32 %v2918, %v2210
        %v3030 = vmul.f32 %v2887, %v2211
        %v3031 = vmul.f32 %v2919, %v2212
        %v3032 = vmul.f32 %v2888, %v2197
        %v3033 = vmul.f32 %v2920, %v2198
        %v3034 = vmul.f32 %v2889, %v2199
        %v3035 = vmul.f32 %v2921, %v2200
        %v3036 = vmul.f32 %v2890, %v2201
        %v3037 = vmul.f32 %v2922, %v2202
        %v3038 = vmul.f32 %v2891, %v2203
        %v3039 = vmul.f32 %v2923, %v2204
        %v3040 = vmul.f32 %v2892, %v2205
        %v3041 = vmul.f32 %v2924, %v2206
        %v3042 = vmul.f32 %v2893, %v2207
        %v3043 = vmul.f32 %v2925, %v2208
        %v3044 = vmul.f32 %v2894, %v2209
        %v3045 = vmul.f32 %v2926, %v2210
        %v3046 = vmul.f32 %v2895, %v2211
        %v3047 = vmul.f32 %v2927, %v2212
        %v3048 = vmul.f32 %v2896, %v2197
        %v3049 = vmul.f32 %v2928, %v2198
        %v3050 = vmul.f32 %v2897, %v2199
        %v3051 = vmul.f32 %v2929, %v2200
        %v3052 = vmul.f32 %v2898, %v2201
        %v3053 = vmul.f32 %v2930, %v2202
        %v3054 = vmul.f32 %v2899, %v2203
        %v3055 = vmul.f32 %v2931, %v2204
        %v3056 = vmul.f32 %v2900, %v2205
        %v3057 = vmul.f32 %v2932, %v2206
        %v3058 = vmul.f32 %v2901, %v2207
        %v3059 = vmul.f32 %v2933, %v2208
        %v3060 = vmul.f32 %v2902, %v2209
        %v3061 = vmul.f32 %v2934, %v2210
        %v3062 = vmul.f32 %v2903, %v2211
        %v3063 = vmul.f32 %v2935, %v2212
        %v3064 = vadd.f32 %v2936, %v3000
        %v3065 = vadd.f32 %v2937, %v3001
        %v3066 = vadd.f32 %v2938, %v3002
        %v3067 = vadd.f32 %v2939, %v3003
        %v3068 = vadd.f32 %v2940, %v3004
        %v3069 = vadd.f32 %v2941, %v3005
        %v3070 = vadd.f32 %v2942, %v3006
        %v3071 = vadd.f32 %v2943, %v3007
        %v3072 = vadd.f32 %v2944, %v3008
        %v3073 = vadd.f32 %v2945, %v3009
        %v3074 = vadd.f32 %v2946, %v3010
        %v3075 = vadd.f32 %v2947, %v3011
        %v3076 = vadd.f32 %v2948, %v3012
        %v3077 = vadd.f32 %v2949, %v3013
        %v3078 = vadd.f32 %v2950, %v3014
        %v3079 = vadd.f32 %v2951, %v3015
        %v3080 = vadd.f32 %v2952, %v3016
        %v3081 = vadd.f32 %v2953, %v3017
        %v3082 = vadd.f32 %v2954, %v3018
        %v3083 = vadd.f32 %v2955, %v3019
        %v3084 = vadd.f32 %v2956, %v3020
        %v3085 = vadd.f32 %v2957, %v3021
        %v3086 = vadd.f32 %v2958, %v3022
        %v3087 = vadd.f32 %v2959, %v3023
        %v3088 = vadd.f32 %v2960, %v3024
        %v3089 = vadd.f32 %v2961, %v3025
        %v3090 = vadd.f32 %v2962, %v3026
        %v3091 = vadd.f32 %v2963, %v3027
        %v3092 = vadd.f32 %v2964, %v3028
        %v3093 = vadd.f32 %v2965, %v3029
        %v3094 = vadd.f32 %v2966, %v3030
        %v3095 = vadd.f32 %v2967, %v3031
        %v3096 = vadd.f32 %v2968, %v3032
        %v3097 = vadd.f32 %v2969, %v3033
        %v3098 = vadd.f32 %v2970, %v3034
        %v3099 = vadd.f32 %v2971, %v3035
        %v3100 = vadd.f32 %v2972, %v3036
        %v3101 = vadd.f32 %v2973, %v3037
        %v3102 = vadd.f32 %v2974, %v3038
        %v3103 = vadd.f32 %v2975, %v3039
        %v3104 = vadd.f32 %v2976, %v3040
        %v3105 = vadd.f32 %v2977, %v3041
        %v3106 = vadd.f32 %v2978, %v3042
        %v3107 = vadd.f32 %v2979, %v3043
        %v3108 = vadd.f32 %v2980, %v3044
        %v3109 = vadd.f32 %v2981, %v3045
        %v3110 = vadd.f32 %v2982, %v3046
        %v3111 = vadd.f32 %v2983, %v3047
        %v3112 = vadd.f32 %v2984, %v3048
        %v3113 = vadd.f32 %v2985, %v3049
        %v3114 = vadd.f32 %v2986, %v3050
        %v3115 = vadd.f32 %v2987, %v3051
        %v3116 = vadd.f32 %v2988, %v3052
        %v3117 = vadd.f32 %v2989, %v3053
        %v3118 = vadd.f32 %v2990, %v3054
        %v3119 = vadd.f32 %v2991, %v3055
        %v3120 = vadd.f32 %v2992, %v3056
        %v3121 = vadd.f32 %v2993, %v3057
        %v3122 = vadd.f32 %v2994, %v3058
        %v3123 = vadd.f32 %v2995, %v3059
        %v3124 = vadd.f32 %v2996, %v3060
        %v3125 = vadd.f32 %v2997, %v3061
        %v3126 = vadd.f32 %v2998, %v3062
        %v3127 = vadd.f32 %v2999, %v3063
        %v3128 = vmul.f32 %v2904, %v2213
        %v3129 = vmul.f32 %v2872, %v2214
        %v3130 = vmul.f32 %v2905, %v2215
        %v3131 = vmul.f32 %v2873, %v2216
        %v3132 = vmul.f32 %v2906, %v2217
        %v3133 = vmul.f32 %v2874, %v2218
        %v3134 = vmul.f32 %v2907, %v2219
        %v3135 = vmul.f32 %v2875, %v2220
        %v3136 = vmul.f32 %v2908, %v2221
        %v3137 = vmul.f32 %v2876, %v2222
        %v3138 = vmul.f32 %v2909, %v2223
        %v3139 = vmul.f32 %v2877, %v2224
        %v3140 = vmul.f32 %v2910, %v2225
        %v3141 = vmul.f32 %v2878, %v2226
        %v3142 = vmul.f32 %v2911, %v2227
        %v3143 = vmul.f32 %v2879, %v2228
        %v3144 = vmul.f32 %v2912, %v2213
        %v3145 = vmul.f32 %v2880, %v2214
        %v3146 = vmul.f32 %v2913, %v2215
        %v3147 = vmul.f32 %v2881, %v2216
        %v3148 = vmul.f32 %v2914, %v2217
        %v3149 = vmul.f32 %v2882, %v2218
        %v3150 = vmul.f32 %v2915, %v2219
        %v3151 = vmul.f32 %v2883, %v2220
        %v3152 = vmul.f32 %v2916, %v2221
        %v3153 = vmul.f32 %v2884, %v2222
        %v3154 = vmul.f32 %v2917, %v2223
        %v3155 = vmul.f32 %v2885, %v2224
        %v3156 = vmul.f32 %v2918, %v2225
        %v3157 = vmul.f32 %v2886, %v2226
        %v3158 = vmul.f32 %v2919, %v2227
        %v3159 = vmul.f32 %v2887, %v2228
        %v3160 = vmul.f32 %v2920, %v2213
        %v3161 = vmul.f32 %v2888, %v2214
        %v3162 = vmul.f32 %v2921, %v2215
        %v3163 = vmul.f32 %v2889, %v2216
        %v3164 = vmul.f32 %v2922, %v2217
        %v3165 = vmul.f32 %v2890, %v2218
        %v3166 = vmul.f32 %v2923, %v2219
        %v3167 = vmul.f32 %v2891, %v2220
        %v3168 = vmul.f32 %v2924, %v2221
        %v3169 = vmul.f32 %v2892, %v2222
        %v3170 = vmul.f32 %v2925, %v2223
        %v3171 = vmul.f32 %v2893, %v2224
        %v3172 = vmul.f32 %v2926, %v2225
        %v3173 = vmul.f32 %v2894, %v2226
        %v3174 = vmul.f32 %v2927, %v2227
        %v3175 = vmul.f32 %v2895, %v2228
        %v3176 = vmul.f32 %v2928, %v2213
        %v3177 = vmul.f32 %v2896, %v2214
        %v3178 = vmul.f32 %v2929, %v2215
        %v3179 = vmul.f32 %v2897, %v2216
        %v3180 = vmul.f32 %v2930, %v2217
        %v3181 = vmul.f32 %v2898, %v2218
        %v3182 = vmul.f32 %v2931, %v2219
        %v3183 = vmul.f32 %v2899, %v2220
        %v3184 = vmul.f32 %v2932, %v2221
        %v3185 = vmul.f32 %v2900, %v2222
        %v3186 = vmul.f32 %v2933, %v2223
        %v3187 = vmul.f32 %v2901, %v2224
        %v3188 = vmul.f32 %v2934, %v2225
        %v3189 = vmul.f32 %v2902, %v2226
        %v3190 = vmul.f32 %v2935, %v2227
        %v3191 = vmul.f32 %v2903, %v2228
        %v3192 = vadd.f32 %v3064, %v3128
        %v3193 = vadd.f32 %v3065, %v3129
        %v3194 = vadd.f32 %v3066, %v3130
        %v3195 = vadd.f32 %v3067, %v3131
        %v3196 = vadd.f32 %v3068, %v3132
        %v3197 = vadd.f32 %v3069, %v3133
        %v3198 = vadd.f32 %v3070, %v3134
        %v3199 = vadd.f32 %v3071, %v3135
        %v3200 = vadd.f32 %v3072, %v3136
        %v3201 = vadd.f32 %v3073, %v3137
        %v3202 = vadd.f32 %v3074, %v3138
        %v3203 = vadd.f32 %v3075, %v3139
        %v3204 = vadd.f32 %v3076, %v3140
        %v3205 = vadd.f32 %v3077, %v3141
        %v3206 = vadd.f32 %v3078, %v3142
        %v3207 = vadd.f32 %v3079, %v3143
        %v3208 = vadd.f32 %v3080, %v3144
        %v3209 = vadd.f32 %v3081, %v3145
        %v3210 = vadd.f32 %v3082, %v3146
        %v3211 = vadd.f32 %v3083, %v3147
        %v3212 = vadd.f32 %v3084, %v3148
        %v3213 = vadd.f32 %v3085, %v3149
        %v3214 = vadd.f32 %v3086, %v3150
        %v3215 = vadd.f32 %v3087, %v3151
        %v3216 = vadd.f32 %v3088, %v3152
        %v3217 = vadd.f32 %v3089, %v3153
        %v3218 = vadd.f32 %v3090, %v3154
        %v3219 = vadd.f32 %v3091, %v3155
        %v3220 = vadd.f32 %v3092, %v3156
        %v3221 = vadd.f32 %v3093, %v3157
        %v3222 = vadd.f32 %v3094, %v3158
        %v3223 = vadd.f32 %v3095, %v3159
        %v3224 = vadd.f32 %v3096, %v3160
        %v3225 = vadd.f32 %v3097, %v3161
        %v3226 = vadd.f32 %v3098, %v3162
        %v3227 = vadd.f32 %v3099, %v3163
        %v3228 = vadd.f32 %v3100, %v3164
        %v3229 = vadd.f32 %v3101, %v3165
        %v3230 = vadd.f32 %v3102, %v3166
        %v3231 = vadd.f32 %v3103, %v3167
        %v3232 = vadd.f32 %v3104, %v3168
        %v3233 = vadd.f32 %v3105, %v3169
        %v3234 = vadd.f32 %v3106, %v3170
        %v3235 = vadd.f32 %v3107, %v3171
        %v3236 = vadd.f32 %v3108, %v3172
        %v3237 = vadd.f32 %v3109, %v3173
        %v3238 = vadd.f32 %v3110, %v3174
        %v3239 = vadd.f32 %v3111, %v3175
        %v3240 = vadd.f32 %v3112, %v3176
        %v3241 = vadd.f32 %v3113, %v3177
        %v3242 = vadd.f32 %v3114, %v3178
        %v3243 = vadd.f32 %v3115, %v3179
        %v3244 = vadd.f32 %v3116, %v3180
        %v3245 = vadd.f32 %v3117, %v3181
        %v3246 = vadd.f32 %v3118, %v3182
        %v3247 = vadd.f32 %v3119, %v3183
        %v3248 = vadd.f32 %v3120, %v3184
        %v3249 = vadd.f32 %v3121, %v3185
        %v3250 = vadd.f32 %v3122, %v3186
        %v3251 = vadd.f32 %v3123, %v3187
        %v3252 = vadd.f32 %v3124, %v3188
        %v3253 = vadd.f32 %v3125, %v3189
        %v3254 = vadd.f32 %v3126, %v3190
        %v3255 = vadd.f32 %v3127, %v3191
        %v3256 = vpack.c.bf16 %v2682, %v2680
        %v3257 = vpack.c.bf16 %v2686, %v2684
        %v3258 = vpack.c.bf16 %v2690, %v2688
        %v3259 = vpack.c.bf16 %v2694, %v2692
        %v3260 = vpack.c.bf16 %v3194, %v3192
        %v3261 = vpack.c.bf16 %v3198, %v3196
        %v3262 = vpack.c.bf16 %v3202, %v3200
        %v3263 = vpack.c.bf16 %v3206, %v3204
        %v3264 = vpack.c.bf16 %v1926, %v1924
        %v3265 = vpack.c.bf16 %v1931, %v1929
        %v3266 = vpack.c.bf16 %v1936, %v1934
        %v3267 = vpack.c.bf16 %v1941, %v1939
        %3268 = vmatpush.bf16.xpose.msra.mxu0 0
        %3269 = vmatpush.bf16.xpose.msra.mxu0 0
        %3270 = vmatpush.bf16.xpose.msra.mxu0 0
        %3271 = vmatpush.bf16.xpose.msra.mxu0 0
        %3272 = vmatpush.bf16.xpose.msra.mxu0 %v3263
        %3273 = vmatpush.bf16.xpose.msra.mxu0 %v3262
        %3274 = vmatpush.bf16.xpose.msra.mxu0 %v3261
        %3275 = vmatpush.bf16.xpose.msra.mxu0 %v3260
        %3276 = vmatmul.bf16.gmra.mxu0 %v3256
        %v3277 = vpop.f32.mrf.mxu0
        %v3278 = vadd.f32 0.0, %v3277
        %v3279 = vpop.f32.mrf.mxu0
        %v3280 = vadd.f32 0.0, %v3279
        %3281 = vmatmul.bf16.gmra.mxu0 %v3257
        %v3282 = vpop.f32.mrf.mxu0
        %v3283 = vadd.f32 0.0, %v3282
        %v3284 = vpop.f32.mrf.mxu0
        %v3285 = vadd.f32 0.0, %v3284
        %3286 = vmatmul.bf16.gmra.mxu0 %v3258
        %v3287 = vpop.f32.mrf.mxu0
        %v3288 = vadd.f32 0.0, %v3287
        %v3289 = vpop.f32.mrf.mxu0
        %v3290 = vadd.f32 0.0, %v3289
        %3291 = vmatmul.bf16.gmra.mxu0 %v3259
        %v3292 = vpop.f32.mrf.mxu0
        %v3293 = vadd.f32 0.0, %v3292
        %v3294 = vpop.f32.mrf.mxu0
        %v3295 = vadd.f32 0.0, %v3294
        %3296 = vdwg.mxu0
        %vm3297 = vcmask 523264
        %v3298 = vsel %vm3297, %v3278, -inf
        %3299 = vmax.xlane.f32.xlu0 %v3298
        %v3300 = vpop.xlane.xlu0 %3299
        %v3301 = vsel %vm3297, %v3280, -inf
        %3302 = vmax.xlane.f32.xlu0 %v3301
        %v3303 = vpop.xlane.xlu0 %3302
        %v3304 = vsel %vm3297, %v3283, -inf
        %3305 = vmax.xlane.f32.xlu0 %v3304
        %v3306 = vpop.xlane.xlu0 %3305
        %v3307 = vsel %vm3297, %v3285, -inf
        %3308 = vmax.xlane.f32.xlu0 %v3307
        %v3309 = vpop.xlane.xlu0 %3308
        %v3310 = vsel %vm3297, %v3288, -inf
        %3311 = vmax.xlane.f32.xlu0 %v3310
        %v3312 = vpop.xlane.xlu0 %3311
        %v3313 = vsel %vm3297, %v3290, -inf
        %3314 = vmax.xlane.f32.xlu0 %v3313
        %v3315 = vpop.xlane.xlu0 %3314
        %v3316 = vsel %vm3297, %v3293, -inf
        %3317 = vmax.xlane.f32.xlu0 %v3316
        %v3318 = vpop.xlane.xlu0 %3317
        %v3319 = vsel %vm3297, %v3295, -inf
        %3320 = vmax.xlane.f32.xlu0 %v3319
        %v3321 = vpop.xlane.xlu0 %3320
        %v3322 = vsub.f32 %v3278, %v3300
        %v3323 = vsub.f32 %v3280, %v3303
        %v3324 = vsub.f32 %v3283, %v3306
        %v3325 = vsub.f32 %v3285, %v3309
        %v3326 = vsub.f32 %v3288, %v3312
        %v3327 = vsub.f32 %v3290, %v3315
        %v3328 = vsub.f32 %v3293, %v3318
        %v3329 = vsub.f32 %v3295, %v3321
        %v3330 = vmul.f32 %v3322, 1.442695
        %v3331 = vpow.pop %v3330
        %v3332 = vmul.f32 %v3323, 1.442695
        %v3333 = vpow.pop %v3332
        %v3334 = vmul.f32 %v3324, 1.442695
        %v3335 = vpow.pop %v3334
        %v3336 = vmul.f32 %v3325, 1.442695
        %v3337 = vpow.pop %v3336
        %v3338 = vmul.f32 %v3326, 1.442695
        %v3339 = vpow.pop %v3338
        %v3340 = vmul.f32 %v3327, 1.442695
        %v3341 = vpow.pop %v3340
        %v3342 = vmul.f32 %v3328, 1.442695
        %v3343 = vpow.pop %v3342
        %v3344 = vmul.f32 %v3329, 1.442695
        %v3345 = vpow.pop %v3344
        %v3346 = vsel %vm3297, %v3331, 0.0
        %3347 = vadd.xlane.f32.xlu0 %v3346
        %v3348 = vpop.xlane.xlu0 %3347
        %v3349 = vsel %vm3297, %v3333, 0.0
        %3350 = vadd.xlane.f32.xlu0 %v3349
        %v3351 = vpop.xlane.xlu0 %3350
        %v3352 = vsel %vm3297, %v3335, 0.0
        %3353 = vadd.xlane.f32.xlu0 %v3352
        %v3354 = vpop.xlane.xlu0 %3353
        %v3355 = vsel %vm3297, %v3337, 0.0
        %3356 = vadd.xlane.f32.xlu0 %v3355
        %v3357 = vpop.xlane.xlu0 %3356
        %v3358 = vsel %vm3297, %v3339, 0.0
        %3359 = vadd.xlane.f32.xlu0 %v3358
        %v3360 = vpop.xlane.xlu0 %3359
        %v3361 = vsel %vm3297, %v3341, 0.0
        %3362 = vadd.xlane.f32.xlu0 %v3361
        %v3363 = vpop.xlane.xlu0 %3362
        %v3364 = vsel %vm3297, %v3343, 0.0
        %3365 = vadd.xlane.f32.xlu0 %v3364
        %v3366 = vpop.xlane.xlu0 %3365
        %v3367 = vsel %vm3297, %v3345, 0.0
        %3368 = vadd.xlane.f32.xlu0 %v3367
        %v3369 = vpop.xlane.xlu0 %3368
        %v3370 = vrcp.pop %v3348
        %v3371 = vrcp.pop %v3351
        %v3372 = vrcp.pop %v3354
        %v3373 = vrcp.pop %v3357
        %v3374 = vrcp.pop %v3360
        %v3375 = vrcp.pop %v3363
        %v3376 = vrcp.pop %v3366
        %v3377 = vrcp.pop %v3369
        %v3378 = vmul.f32 %v3331, %v3370
        %v3379 = vmul.f32 %v3333, %v3371
        %v3380 = vmul.f32 %v3335, %v3372
        %v3381 = vmul.f32 %v3337, %v3373
        %v3382 = vmul.f32 %v3339, %v3374
        %v3383 = vmul.f32 %v3341, %v3375
        %v3384 = vmul.f32 %v3343, %v3376
        %v3385 = vmul.f32 %v3345, %v3377
        %v3386 = vpack.c.bf16 %v3379, %v3378
        %v3387 = vpack.c.bf16 %v3381, %v3380
        %v3388 = vpack.c.bf16 %v3383, %v3382
        %v3389 = vpack.c.bf16 %v3385, %v3384
        %v3391 = vsel %vm3297, %v3386, 0
        %v3394 = vsel %vm3297, %v3387, 0
        %v3397 = vsel %vm3297, %v3388, 0
        %v3400 = vsel %vm3297, %v3389, 0
        %3402 = vmatpush.bf16.msra.mxu0 0
        %3403 = vmatpush.bf16.msra.mxu0 0
        %3404 = vmatpush.bf16.msra.mxu0 0
        %3405 = vmatpush.bf16.msra.mxu0 0
        %3406 = vmatpush.bf16.msra.mxu0 %v3267
        %3407 = vmatpush.bf16.msra.mxu0 %v3266
        %3408 = vmatpush.bf16.msra.mxu0 %v3265
        %3409 = vmatpush.bf16.msra.mxu0 %v3264
        %3410 = vmatmul.bf16.gmra.mxu0 %v3391
        %v3411 = vpop.f32.mrf.mxu0
        %v3412 = vadd.f32 0.0, %v3411
        %v3413 = vpop.f32.mrf.mxu0
        %v3414 = vadd.f32 0.0, %v3413
        %3415 = vmatmul.bf16.gmra.mxu0 %v3394
        %v3416 = vpop.f32.mrf.mxu0
        %v3417 = vadd.f32 0.0, %v3416
        %v3418 = vpop.f32.mrf.mxu0
        %v3419 = vadd.f32 0.0, %v3418
        %3420 = vmatmul.bf16.gmra.mxu0 %v3397
        %v3421 = vpop.f32.mrf.mxu0
        %v3422 = vadd.f32 0.0, %v3421
        %v3423 = vpop.f32.mrf.mxu0
        %v3424 = vadd.f32 0.0, %v3423
        %3425 = vmatmul.bf16.gmra.mxu0 %v3400
        %v3426 = vpop.f32.mrf.mxu0
        %v3427 = vadd.f32 0.0, %v3426
        %v3428 = vpop.f32.mrf.mxu0
        %v3429 = vadd.f32 0.0, %v3428
        %3430 = vdwg.mxu0
        %v3431 = vpack.c.bf16 %v3412, %v3412
        %v3432 = vpack.c.bf16 %v3414, %v3414
        %v3433 = vpack.c.bf16 %v3417, %v3417
        %v3434 = vpack.c.bf16 %v3419, %v3419
        %v3435 = vpack.c.bf16 %v3422, %v3422
        %v3436 = vpack.c.bf16 %v3424, %v3424
        %v3437 = vpack.c.bf16 %v3427, %v3427
        %v3438 = vpack.c.bf16 %v3429, %v3429
        %3439 = vst [vmem:[#allocation2] sm:$0xf] %v3431
        %3440 = vst [vmem:[#allocation2 + $0x8] sm:$0xf] %v3432
        %3441 = vst [vmem:[#allocation2 + $0x10] sm:$0xf] %v3433
        %3442 = vst [vmem:[#allocation2 + $0x18] sm:$0xf] %v3434
        %3443 = vst [vmem:[#allocation2 + $0x20] sm:$0xf] %v3435
        %3444 = vst [vmem:[#allocation2 + $0x28] sm:$0xf] %v3436
        %3445 = vst [vmem:[#allocation2 + $0x30] sm:$0xf] %v3437
        %3446 = vst [vmem:[#allocation2 + $0x38] sm:$0xf] %v3438
        %v3447 = vpack.c.bf16 %v2683, %v2681
        %v3448 = vpack.c.bf16 %v2687, %v2685
        %v3449 = vpack.c.bf16 %v2691, %v2689
        %v3450 = vpack.c.bf16 %v2695, %v2693
        %v3451 = vpack.c.bf16 %v3195, %v3193
        %v3452 = vpack.c.bf16 %v3199, %v3197
        %v3453 = vpack.c.bf16 %v3203, %v3201
        %v3454 = vpack.c.bf16 %v3207, %v3205
        %v3455 = vpack.c.bf16 %v2104, %v2102
        %v3456 = vpack.c.bf16 %v2109, %v2107
        %v3457 = vpack.c.bf16 %v2114, %v2112
        %v3458 = vpack.c.bf16 %v2119, %v2117
        %3459 = vmatpush.bf16.xpose.msra.mxu0 0
        %3460 = vmatpush.bf16.xpose.msra.mxu0 0
        %3461 = vmatpush.bf16.xpose.msra.mxu0 0
        %3462 = vmatpush.bf16.xpose.msra.mxu0 0
        %3463 = vmatpush.bf16.xpose.msra.mxu0 %v3454
        %3464 = vmatpush.bf16.xpose.msra.mxu0 %v3453
        %3465 = vmatpush.bf16.xpose.msra.mxu0 %v3452
        %3466 = vmatpush.bf16.xpose.msra.mxu0 %v3451
        %3467 = vmatmul.bf16.gmra.mxu0 %v3447
        %v3468 = vpop.f32.mrf.mxu0
        %v3469 = vadd.f32 0.0, %v3468
        %v3470 = vpop.f32.mrf.mxu0
        %v3471 = vadd.f32 0.0, %v3470
        %3472 = vmatmul.bf16.gmra.mxu0 %v3448
        %v3473 = vpop.f32.mrf.mxu0
        %v3474 = vadd.f32 0.0, %v3473
        %v3475 = vpop.f32.mrf.mxu0
        %v3476 = vadd.f32 0.0, %v3475
        %3477 = vmatmul.bf16.gmra.mxu0 %v3449
        %v3478 = vpop.f32.mrf.mxu0
        %v3479 = vadd.f32 0.0, %v3478
        %v3480 = vpop.f32.mrf.mxu0
        %v3481 = vadd.f32 0.0, %v3480
        %3482 = vmatmul.bf16.gmra.mxu0 %v3450
        %v3483 = vpop.f32.mrf.mxu0
        %v3484 = vadd.f32 0.0, %v3483
        %v3485 = vpop.f32.mrf.mxu0
        %v3486 = vadd.f32 0.0, %v3485
        %3487 = vdwg.mxu0
        %v3488 = vsel %vm3297, %v3469, -inf
        %3489 = vmax.xlane.f32.xlu0 %v3488
        %v3490 = vpop.xlane.xlu0 %3489
        %v3491 = vsel %vm3297, %v3471, -inf
        %3492 = vmax.xlane.f32.xlu0 %v3491
        %v3493 = vpop.xlane.xlu0 %3492
        %v3494 = vsel %vm3297, %v3474, -inf
        %3495 = vmax.xlane.f32.xlu0 %v3494
        %v3496 = vpop.xlane.xlu0 %3495
        %v3497 = vsel %vm3297, %v3476, -inf
        %3498 = vmax.xlane.f32.xlu0 %v3497
        %v3499 = vpop.xlane.xlu0 %3498
        %v3500 = vsel %vm3297, %v3479, -inf
        %3501 = vmax.xlane.f32.xlu0 %v3500
        %v3502 = vpop.xlane.xlu0 %3501
        %v3503 = vsel %vm3297, %v3481, -inf
        %3504 = vmax.xlane.f32.xlu0 %v3503
        %v3505 = vpop.xlane.xlu0 %3504
        %v3506 = vsel %vm3297, %v3484, -inf
        %3507 = vmax.xlane.f32.xlu0 %v3506
        %v3508 = vpop.xlane.xlu0 %3507
        %v3509 = vsel %vm3297, %v3486, -inf
        %3510 = vmax.xlane.f32.xlu0 %v3509
        %v3511 = vpop.xlane.xlu0 %3510
        %v3512 = vsub.f32 %v3469, %v3490
        %v3513 = vsub.f32 %v3471, %v3493
        %v3514 = vsub.f32 %v3474, %v3496
        %v3515 = vsub.f32 %v3476, %v3499
        %v3516 = vsub.f32 %v3479, %v3502
        %v3517 = vsub.f32 %v3481, %v3505
        %v3518 = vsub.f32 %v3484, %v3508
        %v3519 = vsub.f32 %v3486, %v3511
        %v3520 = vmul.f32 %v3512, 1.442695
        %v3521 = vpow.pop %v3520
        %v3522 = vmul.f32 %v3513, 1.442695
        %v3523 = vpow.pop %v3522
        %v3524 = vmul.f32 %v3514, 1.442695
        %v3525 = vpow.pop %v3524
        %v3526 = vmul.f32 %v3515, 1.442695
        %v3527 = vpow.pop %v3526
        %v3528 = vmul.f32 %v3516, 1.442695
        %v3529 = vpow.pop %v3528
        %v3530 = vmul.f32 %v3517, 1.442695
        %v3531 = vpow.pop %v3530
        %v3532 = vmul.f32 %v3518, 1.442695
        %v3533 = vpow.pop %v3532
        %v3534 = vmul.f32 %v3519, 1.442695
        %v3535 = vpow.pop %v3534
        %v3536 = vsel %vm3297, %v3521, 0.0
        %3537 = vadd.xlane.f32.xlu0 %v3536
        %v3538 = vpop.xlane.xlu0 %3537
        %v3539 = vsel %vm3297, %v3523, 0.0
        %3540 = vadd.xlane.f32.xlu0 %v3539
        %v3541 = vpop.xlane.xlu0 %3540
        %v3542 = vsel %vm3297, %v3525, 0.0
        %3543 = vadd.xlane.f32.xlu0 %v3542
        %v3544 = vpop.xlane.xlu0 %3543
        %v3545 = vsel %vm3297, %v3527, 0.0
        %3546 = vadd.xlane.f32.xlu0 %v3545
        %v3547 = vpop.xlane.xlu0 %3546
        %v3548 = vsel %vm3297, %v3529, 0.0
        %3549 = vadd.xlane.f32.xlu0 %v3548
        %v3550 = vpop.xlane.xlu0 %3549
        %v3551 = vsel %vm3297, %v3531, 0.0
        %3552 = vadd.xlane.f32.xlu0 %v3551
        %v3553 = vpop.xlane.xlu0 %3552
        %v3554 = vsel %vm3297, %v3533, 0.0
        %3555 = vadd.xlane.f32.xlu0 %v3554
        %v3556 = vpop.xlane.xlu0 %3555
        %v3557 = vsel %vm3297, %v3535, 0.0
        %3558 = vadd.xlane.f32.xlu0 %v3557
        %v3559 = vpop.xlane.xlu0 %3558
        %v3560 = vrcp.pop %v3538
        %v3561 = vrcp.pop %v3541
        %v3562 = vrcp.pop %v3544
        %v3563 = vrcp.pop %v3547
        %v3564 = vrcp.pop %v3550
        %v3565 = vrcp.pop %v3553
        %v3566 = vrcp.pop %v3556
        %v3567 = vrcp.pop %v3559
        %v3568 = vmul.f32 %v3521, %v3560
        %v3569 = vmul.f32 %v3523, %v3561
        %v3570 = vmul.f32 %v3525, %v3562
        %v3571 = vmul.f32 %v3527, %v3563
        %v3572 = vmul.f32 %v3529, %v3564
        %v3573 = vmul.f32 %v3531, %v3565
        %v3574 = vmul.f32 %v3533, %v3566
        %v3575 = vmul.f32 %v3535, %v3567
        %v3576 = vpack.c.bf16 %v3569, %v3568
        %v3577 = vpack.c.bf16 %v3571, %v3570
        %v3578 = vpack.c.bf16 %v3573, %v3572
        %v3579 = vpack.c.bf16 %v3575, %v3574
        %v3581 = vsel %vm3297, %v3576, 0
        %v3584 = vsel %vm3297, %v3577, 0
        %v3587 = vsel %vm3297, %v3578, 0
        %v3590 = vsel %vm3297, %v3579, 0
        %3592 = vmatpush.bf16.msra.mxu0 0
        %3593 = vmatpush.bf16.msra.mxu0 0
        %3594 = vmatpush.bf16.msra.mxu0 0
        %3595 = vmatpush.bf16.msra.mxu0 0
        %3596 = vmatpush.bf16.msra.mxu0 %v3458
        %3597 = vmatpush.bf16.msra.mxu0 %v3457
        %3598 = vmatpush.bf16.msra.mxu0 %v3456
        %3599 = vmatpush.bf16.msra.mxu0 %v3455
        %3600 = vmatmul.bf16.gmra.mxu0 %v3581
        %v3601 = vpop.f32.mrf.mxu0
        %v3602 = vadd.f32 0.0, %v3601
        %v3603 = vpop.f32.mrf.mxu0
        %v3604 = vadd.f32 0.0, %v3603
        %3605 = vmatmul.bf16.gmra.mxu0 %v3584
        %v3606 = vpop.f32.mrf.mxu0
        %v3607 = vadd.f32 0.0, %v3606
        %v3608 = vpop.f32.mrf.mxu0
        %v3609 = vadd.f32 0.0, %v3608
        %3610 = vmatmul.bf16.gmra.mxu0 %v3587
        %v3611 = vpop.f32.mrf.mxu0
        %v3612 = vadd.f32 0.0, %v3611
        %v3613 = vpop.f32.mrf.mxu0
        %v3614 = vadd.f32 0.0, %v3613
        %3615 = vmatmul.bf16.gmra.mxu0 %v3590
        %v3616 = vpop.f32.mrf.mxu0
        %v3617 = vadd.f32 0.0, %v3616
        %v3618 = vpop.f32.mrf.mxu0
        %v3619 = vadd.f32 0.0, %v3618
        %3620 = vdwg.mxu0
        %v3621 = vpack.c.bf16 %v3602, %v3602
        %v3622 = vpack.c.bf16 %v3604, %v3604
        %v3623 = vpack.c.bf16 %v3607, %v3607
        %v3624 = vpack.c.bf16 %v3609, %v3609
        %v3625 = vpack.c.bf16 %v3612, %v3612
        %v3626 = vpack.c.bf16 %v3614, %v3614
        %v3627 = vpack.c.bf16 %v3617, %v3617
        %v3628 = vpack.c.bf16 %v3619, %v3619
        %3629 = vst [vmem:[#allocation2 + $0x4] sm:$0xf] %v3621
        %3630 = vst [vmem:[#allocation2 + $0xc] sm:$0xf] %v3622
        %3631 = vst [vmem:[#allocation2 + $0x14] sm:$0xf] %v3623
        %3632 = vst [vmem:[#allocation2 + $0x1c] sm:$0xf] %v3624
        %3633 = vst [vmem:[#allocation2 + $0x24] sm:$0xf] %v3625
        %3634 = vst [vmem:[#allocation2 + $0x2c] sm:$0xf] %v3626
        %3635 = vst [vmem:[#allocation2 + $0x34] sm:$0xf] %v3627
        %3636 = vst [vmem:[#allocation2 + $0x3c] sm:$0xf] %v3628
        %v3637 = vpack.c.bf16 %v2698, %v2696
        %v3638 = vpack.c.bf16 %v2702, %v2700
        %v3639 = vpack.c.bf16 %v2706, %v2704
        %v3640 = vpack.c.bf16 %v2710, %v2708
        %v3641 = vpack.c.bf16 %v3210, %v3208
        %v3642 = vpack.c.bf16 %v3214, %v3212
        %v3643 = vpack.c.bf16 %v3218, %v3216
        %v3644 = vpack.c.bf16 %v3222, %v3220
        %v3645 = vpack.c.bf16 %v1946, %v1944
        %v3646 = vpack.c.bf16 %v1951, %v1949
        %v3647 = vpack.c.bf16 %v1956, %v1954
        %v3648 = vpack.c.bf16 %v1961, %v1959
        %3649 = vmatpush.bf16.xpose.msra.mxu0 0
        %3650 = vmatpush.bf16.xpose.msra.mxu0 0
        %3651 = vmatpush.bf16.xpose.msra.mxu0 0
        %3652 = vmatpush.bf16.xpose.msra.mxu0 0
        %3653 = vmatpush.bf16.xpose.msra.mxu0 %v3644
        %3654 = vmatpush.bf16.xpose.msra.mxu0 %v3643
        %3655 = vmatpush.bf16.xpose.msra.mxu0 %v3642
        %3656 = vmatpush.bf16.xpose.msra.mxu0 %v3641
        %3657 = vmatmul.bf16.gmra.mxu0 %v3637
        %v3658 = vpop.f32.mrf.mxu0
        %v3659 = vadd.f32 0.0, %v3658
        %v3660 = vpop.f32.mrf.mxu0
        %v3661 = vadd.f32 0.0, %v3660
        %3662 = vmatmul.bf16.gmra.mxu0 %v3638
        %v3663 = vpop.f32.mrf.mxu0
        %v3664 = vadd.f32 0.0, %v3663
        %v3665 = vpop.f32.mrf.mxu0
        %v3666 = vadd.f32 0.0, %v3665
        %3667 = vmatmul.bf16.gmra.mxu0 %v3639
        %v3668 = vpop.f32.mrf.mxu0
        %v3669 = vadd.f32 0.0, %v3668
        %v3670 = vpop.f32.mrf.mxu0
        %v3671 = vadd.f32 0.0, %v3670
        %3672 = vmatmul.bf16.gmra.mxu0 %v3640
        %v3673 = vpop.f32.mrf.mxu0
        %v3674 = vadd.f32 0.0, %v3673
        %v3675 = vpop.f32.mrf.mxu0
        %v3676 = vadd.f32 0.0, %v3675
        %3677 = vdwg.mxu0
        %v3678 = vsel %vm3297, %v3659, -inf
        %3679 = vmax.xlane.f32.xlu0 %v3678
        %v3680 = vpop.xlane.xlu0 %3679
        %v3681 = vsel %vm3297, %v3661, -inf
        %3682 = vmax.xlane.f32.xlu0 %v3681
        %v3683 = vpop.xlane.xlu0 %3682
        %v3684 = vsel %vm3297, %v3664, -inf
        %3685 = vmax.xlane.f32.xlu0 %v3684
        %v3686 = vpop.xlane.xlu0 %3685
        %v3687 = vsel %vm3297, %v3666, -inf
        %3688 = vmax.xlane.f32.xlu0 %v3687
        %v3689 = vpop.xlane.xlu0 %3688
        %v3690 = vsel %vm3297, %v3669, -inf
        %3691 = vmax.xlane.f32.xlu0 %v3690
        %v3692 = vpop.xlane.xlu0 %3691
        %v3693 = vsel %vm3297, %v3671, -inf
        %3694 = vmax.xlane.f32.xlu0 %v3693
        %v3695 = vpop.xlane.xlu0 %3694
        %v3696 = vsel %vm3297, %v3674, -inf
        %3697 = vmax.xlane.f32.xlu0 %v3696
        %v3698 = vpop.xlane.xlu0 %3697
        %v3699 = vsel %vm3297, %v3676, -inf
        %3700 = vmax.xlane.f32.xlu0 %v3699
        %v3701 = vpop.xlane.xlu0 %3700
        %v3702 = vsub.f32 %v3659, %v3680
        %v3703 = vsub.f32 %v3661, %v3683
        %v3704 = vsub.f32 %v3664, %v3686
        %v3705 = vsub.f32 %v3666, %v3689
        %v3706 = vsub.f32 %v3669, %v3692
        %v3707 = vsub.f32 %v3671, %v3695
        %v3708 = vsub.f32 %v3674, %v3698
        %v3709 = vsub.f32 %v3676, %v3701
        %v3710 = vmul.f32 %v3702, 1.442695
        %v3711 = vpow.pop %v3710
        %v3712 = vmul.f32 %v3703, 1.442695
        %v3713 = vpow.pop %v3712
        %v3714 = vmul.f32 %v3704, 1.442695
        %v3715 = vpow.pop %v3714
        %v3716 = vmul.f32 %v3705, 1.442695
        %v3717 = vpow.pop %v3716
        %v3718 = vmul.f32 %v3706, 1.442695
        %v3719 = vpow.pop %v3718
        %v3720 = vmul.f32 %v3707, 1.442695
        %v3721 = vpow.pop %v3720
        %v3722 = vmul.f32 %v3708, 1.442695
        %v3723 = vpow.pop %v3722
        %v3724 = vmul.f32 %v3709, 1.442695
        %v3725 = vpow.pop %v3724
        %v3726 = vsel %vm3297, %v3711, 0.0
        %3727 = vadd.xlane.f32.xlu0 %v3726
        %v3728 = vpop.xlane.xlu0 %3727
        %v3729 = vsel %vm3297, %v3713, 0.0
        %3730 = vadd.xlane.f32.xlu0 %v3729
        %v3731 = vpop.xlane.xlu0 %3730
        %v3732 = vsel %vm3297, %v3715, 0.0
        %3733 = vadd.xlane.f32.xlu0 %v3732
        %v3734 = vpop.xlane.xlu0 %3733
        %v3735 = vsel %vm3297, %v3717, 0.0
        %3736 = vadd.xlane.f32.xlu0 %v3735
        %v3737 = vpop.xlane.xlu0 %3736
        %v3738 = vsel %vm3297, %v3719, 0.0
        %3739 = vadd.xlane.f32.xlu0 %v3738
        %v3740 = vpop.xlane.xlu0 %3739
        %v3741 = vsel %vm3297, %v3721, 0.0
        %3742 = vadd.xlane.f32.xlu0 %v3741
        %v3743 = vpop.xlane.xlu0 %3742
        %v3744 = vsel %vm3297, %v3723, 0.0
        %3745 = vadd.xlane.f32.xlu0 %v3744
        %v3746 = vpop.xlane.xlu0 %3745
        %v3747 = vsel %vm3297, %v3725, 0.0
        %3748 = vadd.xlane.f32.xlu0 %v3747
        %v3749 = vpop.xlane.xlu0 %3748
        %v3750 = vrcp.pop %v3728
        %v3751 = vrcp.pop %v3731
        %v3752 = vrcp.pop %v3734
        %v3753 = vrcp.pop %v3737
        %v3754 = vrcp.pop %v3740
        %v3755 = vrcp.pop %v3743
        %v3756 = vrcp.pop %v3746
        %v3757 = vrcp.pop %v3749
        %v3758 = vmul.f32 %v3711, %v3750
        %v3759 = vmul.f32 %v3713, %v3751
        %v3760 = vmul.f32 %v3715, %v3752
        %v3761 = vmul.f32 %v3717, %v3753
        %v3762 = vmul.f32 %v3719, %v3754
        %v3763 = vmul.f32 %v3721, %v3755
        %v3764 = vmul.f32 %v3723, %v3756
        %v3765 = vmul.f32 %v3725, %v3757
        %v3766 = vpack.c.bf16 %v3759, %v3758
        %v3767 = vpack.c.bf16 %v3761, %v3760
        %v3768 = vpack.c.bf16 %v3763, %v3762
        %v3769 = vpack.c.bf16 %v3765, %v3764
        %v3771 = vsel %vm3297, %v3766, 0
        %v3774 = vsel %vm3297, %v3767, 0
        %v3777 = vsel %vm3297, %v3768, 0
        %v3780 = vsel %vm3297, %v3769, 0
        %3782 = vmatpush.bf16.msra.mxu0 0
        %3783 = vmatpush.bf16.msra.mxu0 0
        %3784 = vmatpush.bf16.msra.mxu0 0
        %3785 = vmatpush.bf16.msra.mxu0 0
        %3786 = vmatpush.bf16.msra.mxu0 %v3648
        %3787 = vmatpush.bf16.msra.mxu0 %v3647
        %3788 = vmatpush.bf16.msra.mxu0 %v3646
        %3789 = vmatpush.bf16.msra.mxu0 %v3645
        %3790 = vmatmul.bf16.gmra.mxu0 %v3771
        %v3791 = vpop.f32.mrf.mxu0
        %v3792 = vadd.f32 0.0, %v3791
        %v3793 = vpop.f32.mrf.mxu0
        %v3794 = vadd.f32 0.0, %v3793
        %3795 = vmatmul.bf16.gmra.mxu0 %v3774
        %v3796 = vpop.f32.mrf.mxu0
        %v3797 = vadd.f32 0.0, %v3796
        %v3798 = vpop.f32.mrf.mxu0
        %v3799 = vadd.f32 0.0, %v3798
        %3800 = vmatmul.bf16.gmra.mxu0 %v3777
        %v3801 = vpop.f32.mrf.mxu0
        %v3802 = vadd.f32 0.0, %v3801
        %v3803 = vpop.f32.mrf.mxu0
        %v3804 = vadd.f32 0.0, %v3803
        %3805 = vmatmul.bf16.gmra.mxu0 %v3780
        %v3806 = vpop.f32.mrf.mxu0
        %v3807 = vadd.f32 0.0, %v3806
        %v3808 = vpop.f32.mrf.mxu0
        %v3809 = vadd.f32 0.0, %v3808
        %3810 = vdwg.mxu0
        %v3811 = vpack.c.bf16 %v3792, %v3792
        %v3812 = vpack.c.bf16 %v3794, %v3794
        %v3813 = vpack.c.bf16 %v3797, %v3797
        %v3814 = vpack.c.bf16 %v3799, %v3799
        %v3815 = vpack.c.bf16 %v3802, %v3802
        %v3816 = vpack.c.bf16 %v3804, %v3804
        %v3817 = vpack.c.bf16 %v3807, %v3807
        %v3818 = vpack.c.bf16 %v3809, %v3809
        %s3819 = scalar_lea.vmem [#allocation2], 64
        %3820 = vst [vmem:[%s3819] sm:$0xf] %v3811
        %3821 = vst [vmem:[%s3819 + $0x8] sm:$0xf] %v3812
        %3822 = vst [vmem:[%s3819 + $0x10] sm:$0xf] %v3813
        %3823 = vst [vmem:[%s3819 + $0x18] sm:$0xf] %v3814
        %3824 = vst [vmem:[%s3819 + $0x20] sm:$0xf] %v3815
        %3825 = vst [vmem:[%s3819 + $0x28] sm:$0xf] %v3816
        %3826 = vst [vmem:[%s3819 + $0x30] sm:$0xf] %v3817
        %3827 = vst [vmem:[%s3819 + $0x38] sm:$0xf] %v3818
        %v3828 = vpack.c.bf16 %v2699, %v2697
        %v3829 = vpack.c.bf16 %v2703, %v2701
        %v3830 = vpack.c.bf16 %v2707, %v2705
        %v3831 = vpack.c.bf16 %v2711, %v2709
        %v3832 = vpack.c.bf16 %v3211, %v3209
        %v3833 = vpack.c.bf16 %v3215, %v3213
        %v3834 = vpack.c.bf16 %v3219, %v3217
        %v3835 = vpack.c.bf16 %v3223, %v3221
        %v3836 = vpack.c.bf16 %v2124, %v2122
        %v3837 = vpack.c.bf16 %v2129, %v2127
        %v3838 = vpack.c.bf16 %v2134, %v2132
        %v3839 = vpack.c.bf16 %v2139, %v2137
        %3840 = vmatpush.bf16.xpose.msra.mxu0 0
        %3841 = vmatpush.bf16.xpose.msra.mxu0 0
        %3842 = vmatpush.bf16.xpose.msra.mxu0 0
        %3843 = vmatpush.bf16.xpose.msra.mxu0 0
        %3844 = vmatpush.bf16.xpose.msra.mxu0 %v3835
        %3845 = vmatpush.bf16.xpose.msra.mxu0 %v3834
        %3846 = vmatpush.bf16.xpose.msra.mxu0 %v3833
        %3847 = vmatpush.bf16.xpose.msra.mxu0 %v3832
        %3848 = vmatmul.bf16.gmra.mxu0 %v3828
        %v3849 = vpop.f32.mrf.mxu0
        %v3850 = vadd.f32 0.0, %v3849
        %v3851 = vpop.f32.mrf.mxu0
        %v3852 = vadd.f32 0.0, %v3851
        %3853 = vmatmul.bf16.gmra.mxu0 %v3829
        %v3854 = vpop.f32.mrf.mxu0
        %v3855 = vadd.f32 0.0, %v3854
        %v3856 = vpop.f32.mrf.mxu0
        %v3857 = vadd.f32 0.0, %v3856
        %3858 = vmatmul.bf16.gmra.mxu0 %v3830
        %v3859 = vpop.f32.mrf.mxu0
        %v3860 = vadd.f32 0.0, %v3859
        %v3861 = vpop.f32.mrf.mxu0
        %v3862 = vadd.f32 0.0, %v3861
        %3863 = vmatmul.bf16.gmra.mxu0 %v3831
        %v3864 = vpop.f32.mrf.mxu0
        %v3865 = vadd.f32 0.0, %v3864
        %v3866 = vpop.f32.mrf.mxu0
        %v3867 = vadd.f32 0.0, %v3866
        %3868 = vdwg.mxu0
        %v3869 = vsel %vm3297, %v3850, -inf
        %3870 = vmax.xlane.f32.xlu0 %v3869
        %v3871 = vpop.xlane.xlu0 %3870
        %v3872 = vsel %vm3297, %v3852, -inf
        %3873 = vmax.xlane.f32.xlu0 %v3872
        %v3874 = vpop.xlane.xlu0 %3873
        %v3875 = vsel %vm3297, %v3855, -inf
        %3876 = vmax.xlane.f32.xlu0 %v3875
        %v3877 = vpop.xlane.xlu0 %3876
        %v3878 = vsel %vm3297, %v3857, -inf
        %3879 = vmax.xlane.f32.xlu0 %v3878
        %v3880 = vpop.xlane.xlu0 %3879
        %v3881 = vsel %vm3297, %v3860, -inf
        %3882 = vmax.xlane.f32.xlu0 %v3881
        %v3883 = vpop.xlane.xlu0 %3882
        %v3884 = vsel %vm3297, %v3862, -inf
        %3885 = vmax.xlane.f32.xlu0 %v3884
        %v3886 = vpop.xlane.xlu0 %3885
        %v3887 = vsel %vm3297, %v3865, -inf
        %3888 = vmax.xlane.f32.xlu0 %v3887
        %v3889 = vpop.xlane.xlu0 %3888
        %v3890 = vsel %vm3297, %v3867, -inf
        %3891 = vmax.xlane.f32.xlu0 %v3890
        %v3892 = vpop.xlane.xlu0 %3891
        %v3893 = vsub.f32 %v3850, %v3871
        %v3894 = vsub.f32 %v3852, %v3874
        %v3895 = vsub.f32 %v3855, %v3877
        %v3896 = vsub.f32 %v3857, %v3880
        %v3897 = vsub.f32 %v3860, %v3883
        %v3898 = vsub.f32 %v3862, %v3886
        %v3899 = vsub.f32 %v3865, %v3889
        %v3900 = vsub.f32 %v3867, %v3892
        %v3901 = vmul.f32 %v3893, 1.442695
        %v3902 = vpow.pop %v3901
        %v3903 = vmul.f32 %v3894, 1.442695
        %v3904 = vpow.pop %v3903
        %v3905 = vmul.f32 %v3895, 1.442695
        %v3906 = vpow.pop %v3905
        %v3907 = vmul.f32 %v3896, 1.442695
        %v3908 = vpow.pop %v3907
        %v3909 = vmul.f32 %v3897, 1.442695
        %v3910 = vpow.pop %v3909
        %v3911 = vmul.f32 %v3898, 1.442695
        %v3912 = vpow.pop %v3911
        %v3913 = vmul.f32 %v3899, 1.442695
        %v3914 = vpow.pop %v3913
        %v3915 = vmul.f32 %v3900, 1.442695
        %v3916 = vpow.pop %v3915
        %v3917 = vsel %vm3297, %v3902, 0.0
        %3918 = vadd.xlane.f32.xlu0 %v3917
        %v3919 = vpop.xlane.xlu0 %3918
        %v3920 = vsel %vm3297, %v3904, 0.0
        %3921 = vadd.xlane.f32.xlu0 %v3920
        %v3922 = vpop.xlane.xlu0 %3921
        %v3923 = vsel %vm3297, %v3906, 0.0
        %3924 = vadd.xlane.f32.xlu0 %v3923
        %v3925 = vpop.xlane.xlu0 %3924
        %v3926 = vsel %vm3297, %v3908, 0.0
        %3927 = vadd.xlane.f32.xlu0 %v3926
        %v3928 = vpop.xlane.xlu0 %3927
        %v3929 = vsel %vm3297, %v3910, 0.0
        %3930 = vadd.xlane.f32.xlu0 %v3929
        %v3931 = vpop.xlane.xlu0 %3930
        %v3932 = vsel %vm3297, %v3912, 0.0
        %3933 = vadd.xlane.f32.xlu0 %v3932
        %v3934 = vpop.xlane.xlu0 %3933
        %v3935 = vsel %vm3297, %v3914, 0.0
        %3936 = vadd.xlane.f32.xlu0 %v3935
        %v3937 = vpop.xlane.xlu0 %3936
        %v3938 = vsel %vm3297, %v3916, 0.0
        %3939 = vadd.xlane.f32.xlu0 %v3938
        %v3940 = vpop.xlane.xlu0 %3939
        %v3941 = vrcp.pop %v3919
        %v3942 = vrcp.pop %v3922
        %v3943 = vrcp.pop %v3925
        %v3944 = vrcp.pop %v3928
        %v3945 = vrcp.pop %v3931
        %v3946 = vrcp.pop %v3934
        %v3947 = vrcp.pop %v3937
        %v3948 = vrcp.pop %v3940
        %v3949 = vmul.f32 %v3902, %v3941
        %v3950 = vmul.f32 %v3904, %v3942
        %v3951 = vmul.f32 %v3906, %v3943
        %v3952 = vmul.f32 %v3908, %v3944
        %v3953 = vmul.f32 %v3910, %v3945
        %v3954 = vmul.f32 %v3912, %v3946
        %v3955 = vmul.f32 %v3914, %v3947
        %v3956 = vmul.f32 %v3916, %v3948
        %v3957 = vpack.c.bf16 %v3950, %v3949
        %v3958 = vpack.c.bf16 %v3952, %v3951
        %v3959 = vpack.c.bf16 %v3954, %v3953
        %v3960 = vpack.c.bf16 %v3956, %v3955
        %v3962 = vsel %vm3297, %v3957, 0
        %v3965 = vsel %vm3297, %v3958, 0
        %v3968 = vsel %vm3297, %v3959, 0
        %v3971 = vsel %vm3297, %v3960, 0
        %3973 = vmatpush.bf16.msra.mxu0 0
        %3974 = vmatpush.bf16.msra.mxu0 0
        %3975 = vmatpush.bf16.msra.mxu0 0
        %3976 = vmatpush.bf16.msra.mxu0 0
        %3977 = vmatpush.bf16.msra.mxu0 %v3839
        %3978 = vmatpush.bf16.msra.mxu0 %v3838
        %3979 = vmatpush.bf16.msra.mxu0 %v3837
        %3980 = vmatpush.bf16.msra.mxu0 %v3836
        %3981 = vmatmul.bf16.gmra.mxu0 %v3962
        %v3982 = vpop.f32.mrf.mxu0
        %v3983 = vadd.f32 0.0, %v3982
        %v3984 = vpop.f32.mrf.mxu0
        %v3985 = vadd.f32 0.0, %v3984
        %3986 = vmatmul.bf16.gmra.mxu0 %v3965
        %v3987 = vpop.f32.mrf.mxu0
        %v3988 = vadd.f32 0.0, %v3987
        %v3989 = vpop.f32.mrf.mxu0
        %v3990 = vadd.f32 0.0, %v3989
        %3991 = vmatmul.bf16.gmra.mxu0 %v3968
        %v3992 = vpop.f32.mrf.mxu0
        %v3993 = vadd.f32 0.0, %v3992
        %v3994 = vpop.f32.mrf.mxu0
        %v3995 = vadd.f32 0.0, %v3994
        %3996 = vmatmul.bf16.gmra.mxu0 %v3971
        %v3997 = vpop.f32.mrf.mxu0
        %v3998 = vadd.f32 0.0, %v3997
        %v3999 = vpop.f32.mrf.mxu0
        %v4000 = vadd.f32 0.0, %v3999
        %4001 = vdwg.mxu0
        %v4002 = vpack.c.bf16 %v3983, %v3983
        %v4003 = vpack.c.bf16 %v3985, %v3985
        %v4004 = vpack.c.bf16 %v3988, %v3988
        %v4005 = vpack.c.bf16 %v3990, %v3990
        %v4006 = vpack.c.bf16 %v3993, %v3993
        %v4007 = vpack.c.bf16 %v3995, %v3995
        %v4008 = vpack.c.bf16 %v3998, %v3998
        %v4009 = vpack.c.bf16 %v4000, %v4000
        %4010 = vst [vmem:[%s3819 + $0x4] sm:$0xf] %v4002
        %4011 = vst [vmem:[%s3819 + $0xc] sm:$0xf] %v4003
        %4012 = vst [vmem:[%s3819 + $0x14] sm:$0xf] %v4004
        %4013 = vst [vmem:[%s3819 + $0x1c] sm:$0xf] %v4005
        %4014 = vst [vmem:[%s3819 + $0x24] sm:$0xf] %v4006
        %4015 = vst [vmem:[%s3819 + $0x2c] sm:$0xf] %v4007
        %4016 = vst [vmem:[%s3819 + $0x34] sm:$0xf] %v4008
        %4017 = vst [vmem:[%s3819 + $0x3c] sm:$0xf] %v4009
        %v4018 = vpack.c.bf16 %v2714, %v2712
        %v4019 = vpack.c.bf16 %v2718, %v2716
        %v4020 = vpack.c.bf16 %v2722, %v2720
        %v4021 = vpack.c.bf16 %v2726, %v2724
        %v4022 = vpack.c.bf16 %v3226, %v3224
        %v4023 = vpack.c.bf16 %v3230, %v3228
        %v4024 = vpack.c.bf16 %v3234, %v3232
        %v4025 = vpack.c.bf16 %v3238, %v3236
        %v4026 = vpack.c.bf16 %v1966, %v1964
        %v4027 = vpack.c.bf16 %v1971, %v1969
        %v4028 = vpack.c.bf16 %v1976, %v1974
        %v4029 = vpack.c.bf16 %v1981, %v1979
        %4030 = vmatpush.bf16.xpose.msra.mxu0 0
        %4031 = vmatpush.bf16.xpose.msra.mxu0 0
        %4032 = vmatpush.bf16.xpose.msra.mxu0 0
        %4033 = vmatpush.bf16.xpose.msra.mxu0 0
        %4034 = vmatpush.bf16.xpose.msra.mxu0 %v4025
        %4035 = vmatpush.bf16.xpose.msra.mxu0 %v4024
        %4036 = vmatpush.bf16.xpose.msra.mxu0 %v4023
        %4037 = vmatpush.bf16.xpose.msra.mxu0 %v4022
        %4038 = vmatmul.bf16.gmra.mxu0 %v4018
        %v4039 = vpop.f32.mrf.mxu0
        %v4040 = vadd.f32 0.0, %v4039
        %v4041 = vpop.f32.mrf.mxu0
        %v4042 = vadd.f32 0.0, %v4041
        %4043 = vmatmul.bf16.gmra.mxu0 %v4019
        %v4044 = vpop.f32.mrf.mxu0
        %v4045 = vadd.f32 0.0, %v4044
        %v4046 = vpop.f32.mrf.mxu0
        %v4047 = vadd.f32 0.0, %v4046
        %4048 = vmatmul.bf16.gmra.mxu0 %v4020
        %v4049 = vpop.f32.mrf.mxu0
        %v4050 = vadd.f32 0.0, %v4049
        %v4051 = vpop.f32.mrf.mxu0
        %v4052 = vadd.f32 0.0, %v4051
        %4053 = vmatmul.bf16.gmra.mxu0 %v4021
        %v4054 = vpop.f32.mrf.mxu0
        %v4055 = vadd.f32 0.0, %v4054
        %v4056 = vpop.f32.mrf.mxu0
        %v4057 = vadd.f32 0.0, %v4056
        %4058 = vdwg.mxu0
        %v4059 = vsel %vm3297, %v4040, -inf
        %4060 = vmax.xlane.f32.xlu0 %v4059
        %v4061 = vpop.xlane.xlu0 %4060
        %v4062 = vsel %vm3297, %v4042, -inf
        %4063 = vmax.xlane.f32.xlu0 %v4062
        %v4064 = vpop.xlane.xlu0 %4063
        %v4065 = vsel %vm3297, %v4045, -inf
        %4066 = vmax.xlane.f32.xlu0 %v4065
        %v4067 = vpop.xlane.xlu0 %4066
        %v4068 = vsel %vm3297, %v4047, -inf
        %4069 = vmax.xlane.f32.xlu0 %v4068
        %v4070 = vpop.xlane.xlu0 %4069
        %v4071 = vsel %vm3297, %v4050, -inf
        %4072 = vmax.xlane.f32.xlu0 %v4071
        %v4073 = vpop.xlane.xlu0 %4072
        %v4074 = vsel %vm3297, %v4052, -inf
        %4075 = vmax.xlane.f32.xlu0 %v4074
        %v4076 = vpop.xlane.xlu0 %4075
        %v4077 = vsel %vm3297, %v4055, -inf
        %4078 = vmax.xlane.f32.xlu0 %v4077
        %v4079 = vpop.xlane.xlu0 %4078
        %v4080 = vsel %vm3297, %v4057, -inf
        %4081 = vmax.xlane.f32.xlu0 %v4080
        %v4082 = vpop.xlane.xlu0 %4081
        %v4083 = vsub.f32 %v4040, %v4061
        %v4084 = vsub.f32 %v4042, %v4064
        %v4085 = vsub.f32 %v4045, %v4067
        %v4086 = vsub.f32 %v4047, %v4070
        %v4087 = vsub.f32 %v4050, %v4073
        %v4088 = vsub.f32 %v4052, %v4076
        %v4089 = vsub.f32 %v4055, %v4079
        %v4090 = vsub.f32 %v4057, %v4082
        %v4091 = vmul.f32 %v4083, 1.442695
        %v4092 = vpow.pop %v4091
        %v4093 = vmul.f32 %v4084, 1.442695
        %v4094 = vpow.pop %v4093
        %v4095 = vmul.f32 %v4085, 1.442695
        %v4096 = vpow.pop %v4095
        %v4097 = vmul.f32 %v4086, 1.442695
        %v4098 = vpow.pop %v4097
        %v4099 = vmul.f32 %v4087, 1.442695
        %v4100 = vpow.pop %v4099
        %v4101 = vmul.f32 %v4088, 1.442695
        %v4102 = vpow.pop %v4101
        %v4103 = vmul.f32 %v4089, 1.442695
        %v4104 = vpow.pop %v4103
        %v4105 = vmul.f32 %v4090, 1.442695
        %v4106 = vpow.pop %v4105
        %v4107 = vsel %vm3297, %v4092, 0.0
        %4108 = vadd.xlane.f32.xlu0 %v4107
        %v4109 = vpop.xlane.xlu0 %4108
        %v4110 = vsel %vm3297, %v4094, 0.0
        %4111 = vadd.xlane.f32.xlu0 %v4110
        %v4112 = vpop.xlane.xlu0 %4111
        %v4113 = vsel %vm3297, %v4096, 0.0
        %4114 = vadd.xlane.f32.xlu0 %v4113
        %v4115 = vpop.xlane.xlu0 %4114
        %v4116 = vsel %vm3297, %v4098, 0.0
        %4117 = vadd.xlane.f32.xlu0 %v4116
        %v4118 = vpop.xlane.xlu0 %4117
        %v4119 = vsel %vm3297, %v4100, 0.0
        %4120 = vadd.xlane.f32.xlu0 %v4119
        %v4121 = vpop.xlane.xlu0 %4120
        %v4122 = vsel %vm3297, %v4102, 0.0
        %4123 = vadd.xlane.f32.xlu0 %v4122
        %v4124 = vpop.xlane.xlu0 %4123
        %v4125 = vsel %vm3297, %v4104, 0.0
        %4126 = vadd.xlane.f32.xlu0 %v4125
        %v4127 = vpop.xlane.xlu0 %4126
        %v4128 = vsel %vm3297, %v4106, 0.0
        %4129 = vadd.xlane.f32.xlu0 %v4128
        %v4130 = vpop.xlane.xlu0 %4129
        %v4131 = vrcp.pop %v4109
        %v4132 = vrcp.pop %v4112
        %v4133 = vrcp.pop %v4115
        %v4134 = vrcp.pop %v4118
        %v4135 = vrcp.pop %v4121
        %v4136 = vrcp.pop %v4124
        %v4137 = vrcp.pop %v4127
        %v4138 = vrcp.pop %v4130
        %v4139 = vmul.f32 %v4092, %v4131
        %v4140 = vmul.f32 %v4094, %v4132
        %v4141 = vmul.f32 %v4096, %v4133
        %v4142 = vmul.f32 %v4098, %v4134
        %v4143 = vmul.f32 %v4100, %v4135
        %v4144 = vmul.f32 %v4102, %v4136
        %v4145 = vmul.f32 %v4104, %v4137
        %v4146 = vmul.f32 %v4106, %v4138
        %v4147 = vpack.c.bf16 %v4140, %v4139
        %v4148 = vpack.c.bf16 %v4142, %v4141
        %v4149 = vpack.c.bf16 %v4144, %v4143
        %v4150 = vpack.c.bf16 %v4146, %v4145
        %v4152 = vsel %vm3297, %v4147, 0
        %v4155 = vsel %vm3297, %v4148, 0
        %v4158 = vsel %vm3297, %v4149, 0
        %v4161 = vsel %vm3297, %v4150, 0
        %4163 = vmatpush.bf16.msra.mxu0 0
        %4164 = vmatpush.bf16.msra.mxu0 0
        %4165 = vmatpush.bf16.msra.mxu0 0
        %4166 = vmatpush.bf16.msra.mxu0 0
        %4167 = vmatpush.bf16.msra.mxu0 %v4029
        %4168 = vmatpush.bf16.msra.mxu0 %v4028
        %4169 = vmatpush.bf16.msra.mxu0 %v4027
        %4170 = vmatpush.bf16.msra.mxu0 %v4026
        %4171 = vmatmul.bf16.gmra.mxu0 %v4152
        %v4172 = vpop.f32.mrf.mxu0
        %v4173 = vadd.f32 0.0, %v4172
        %v4174 = vpop.f32.mrf.mxu0
        %v4175 = vadd.f32 0.0, %v4174
        %4176 = vmatmul.bf16.gmra.mxu0 %v4155
        %v4177 = vpop.f32.mrf.mxu0
        %v4178 = vadd.f32 0.0, %v4177
        %v4179 = vpop.f32.mrf.mxu0
        %v4180 = vadd.f32 0.0, %v4179
        %4181 = vmatmul.bf16.gmra.mxu0 %v4158
        %v4182 = vpop.f32.mrf.mxu0
        %v4183 = vadd.f32 0.0, %v4182
        %v4184 = vpop.f32.mrf.mxu0
        %v4185 = vadd.f32 0.0, %v4184
        %4186 = vmatmul.bf16.gmra.mxu0 %v4161
        %v4187 = vpop.f32.mrf.mxu0
        %v4188 = vadd.f32 0.0, %v4187
        %v4189 = vpop.f32.mrf.mxu0
        %v4190 = vadd.f32 0.0, %v4189
        %4191 = vdwg.mxu0
        %v4192 = vpack.c.bf16 %v4173, %v4173
        %v4193 = vpack.c.bf16 %v4175, %v4175
        %v4194 = vpack.c.bf16 %v4178, %v4178
        %v4195 = vpack.c.bf16 %v4180, %v4180
        %v4196 = vpack.c.bf16 %v4183, %v4183
        %v4197 = vpack.c.bf16 %v4185, %v4185
        %v4198 = vpack.c.bf16 %v4188, %v4188
        %v4199 = vpack.c.bf16 %v4190, %v4190
        %s4200 = scalar_lea.vmem [#allocation2], 128
        %4201 = vst [vmem:[%s4200] sm:$0xf] %v4192
        %4202 = vst [vmem:[%s4200 + $0x8] sm:$0xf] %v4193
        %4203 = vst [vmem:[%s4200 + $0x10] sm:$0xf] %v4194
        %4204 = vst [vmem:[%s4200 + $0x18] sm:$0xf] %v4195
        %4205 = vst [vmem:[%s4200 + $0x20] sm:$0xf] %v4196
        %4206 = vst [vmem:[%s4200 + $0x28] sm:$0xf] %v4197
        %4207 = vst [vmem:[%s4200 + $0x30] sm:$0xf] %v4198
        %4208 = vst [vmem:[%s4200 + $0x38] sm:$0xf] %v4199
        %v4209 = vpack.c.bf16 %v2715, %v2713
        %v4210 = vpack.c.bf16 %v2719, %v2717
        %v4211 = vpack.c.bf16 %v2723, %v2721
        %v4212 = vpack.c.bf16 %v2727, %v2725
        %v4213 = vpack.c.bf16 %v3227, %v3225
        %v4214 = vpack.c.bf16 %v3231, %v3229
        %v4215 = vpack.c.bf16 %v3235, %v3233
        %v4216 = vpack.c.bf16 %v3239, %v3237
        %v4217 = vpack.c.bf16 %v2144, %v2142
        %v4218 = vpack.c.bf16 %v2149, %v2147
        %v4219 = vpack.c.bf16 %v2154, %v2152
        %v4220 = vpack.c.bf16 %v2159, %v2157
        %4221 = vmatpush.bf16.xpose.msra.mxu0 0
        %4222 = vmatpush.bf16.xpose.msra.mxu0 0
        %4223 = vmatpush.bf16.xpose.msra.mxu0 0
        %4224 = vmatpush.bf16.xpose.msra.mxu0 0
        %4225 = vmatpush.bf16.xpose.msra.mxu0 %v4216
        %4226 = vmatpush.bf16.xpose.msra.mxu0 %v4215
        %4227 = vmatpush.bf16.xpose.msra.mxu0 %v4214
        %4228 = vmatpush.bf16.xpose.msra.mxu0 %v4213
        %4229 = vmatmul.bf16.gmra.mxu0 %v4209
        %v4230 = vpop.f32.mrf.mxu0
        %v4231 = vadd.f32 0.0, %v4230
        %v4232 = vpop.f32.mrf.mxu0
        %v4233 = vadd.f32 0.0, %v4232
        %4234 = vmatmul.bf16.gmra.mxu0 %v4210
        %v4235 = vpop.f32.mrf.mxu0
        %v4236 = vadd.f32 0.0, %v4235
        %v4237 = vpop.f32.mrf.mxu0
        %v4238 = vadd.f32 0.0, %v4237
        %4239 = vmatmul.bf16.gmra.mxu0 %v4211
        %v4240 = vpop.f32.mrf.mxu0
        %v4241 = vadd.f32 0.0, %v4240
        %v4242 = vpop.f32.mrf.mxu0
        %v4243 = vadd.f32 0.0, %v4242
        %4244 = vmatmul.bf16.gmra.mxu0 %v4212
        %v4245 = vpop.f32.mrf.mxu0
        %v4246 = vadd.f32 0.0, %v4245
        %v4247 = vpop.f32.mrf.mxu0
        %v4248 = vadd.f32 0.0, %v4247
        %4249 = vdwg.mxu0
        %v4250 = vsel %vm3297, %v4231, -inf
        %4251 = vmax.xlane.f32.xlu0 %v4250
        %v4252 = vpop.xlane.xlu0 %4251
        %v4253 = vsel %vm3297, %v4233, -inf
        %4254 = vmax.xlane.f32.xlu0 %v4253
        %v4255 = vpop.xlane.xlu0 %4254
        %v4256 = vsel %vm3297, %v4236, -inf
        %4257 = vmax.xlane.f32.xlu0 %v4256
        %v4258 = vpop.xlane.xlu0 %4257
        %v4259 = vsel %vm3297, %v4238, -inf
        %4260 = vmax.xlane.f32.xlu0 %v4259
        %v4261 = vpop.xlane.xlu0 %4260
        %v4262 = vsel %vm3297, %v4241, -inf
        %4263 = vmax.xlane.f32.xlu0 %v4262
        %v4264 = vpop.xlane.xlu0 %4263
        %v4265 = vsel %vm3297, %v4243, -inf
        %4266 = vmax.xlane.f32.xlu0 %v4265
        %v4267 = vpop.xlane.xlu0 %4266
        %v4268 = vsel %vm3297, %v4246, -inf
        %4269 = vmax.xlane.f32.xlu0 %v4268
        %v4270 = vpop.xlane.xlu0 %4269
        %v4271 = vsel %vm3297, %v4248, -inf
        %4272 = vmax.xlane.f32.xlu0 %v4271
        %v4273 = vpop.xlane.xlu0 %4272
        %v4274 = vsub.f32 %v4231, %v4252
        %v4275 = vsub.f32 %v4233, %v4255
        %v4276 = vsub.f32 %v4236, %v4258
        %v4277 = vsub.f32 %v4238, %v4261
        %v4278 = vsub.f32 %v4241, %v4264
        %v4279 = vsub.f32 %v4243, %v4267
        %v4280 = vsub.f32 %v4246, %v4270
        %v4281 = vsub.f32 %v4248, %v4273
        %v4282 = vmul.f32 %v4274, 1.442695
        %v4283 = vpow.pop %v4282
        %v4284 = vmul.f32 %v4275, 1.442695
        %v4285 = vpow.pop %v4284
        %v4286 = vmul.f32 %v4276, 1.442695
        %v4287 = vpow.pop %v4286
        %v4288 = vmul.f32 %v4277, 1.442695
        %v4289 = vpow.pop %v4288
        %v4290 = vmul.f32 %v4278, 1.442695
        %v4291 = vpow.pop %v4290
        %v4292 = vmul.f32 %v4279, 1.442695
        %v4293 = vpow.pop %v4292
        %v4294 = vmul.f32 %v4280, 1.442695
        %v4295 = vpow.pop %v4294
        %v4296 = vmul.f32 %v4281, 1.442695
        %v4297 = vpow.pop %v4296
        %v4298 = vsel %vm3297, %v4283, 0.0
        %4299 = vadd.xlane.f32.xlu0 %v4298
        %v4300 = vpop.xlane.xlu0 %4299
        %v4301 = vsel %vm3297, %v4285, 0.0
        %4302 = vadd.xlane.f32.xlu0 %v4301
        %v4303 = vpop.xlane.xlu0 %4302
        %v4304 = vsel %vm3297, %v4287, 0.0
        %4305 = vadd.xlane.f32.xlu0 %v4304
        %v4306 = vpop.xlane.xlu0 %4305
        %v4307 = vsel %vm3297, %v4289, 0.0
        %4308 = vadd.xlane.f32.xlu0 %v4307
        %v4309 = vpop.xlane.xlu0 %4308
        %v4310 = vsel %vm3297, %v4291, 0.0
        %4311 = vadd.xlane.f32.xlu0 %v4310
        %v4312 = vpop.xlane.xlu0 %4311
        %v4313 = vsel %vm3297, %v4293, 0.0
        %4314 = vadd.xlane.f32.xlu0 %v4313
        %v4315 = vpop.xlane.xlu0 %4314
        %v4316 = vsel %vm3297, %v4295, 0.0
        %4317 = vadd.xlane.f32.xlu0 %v4316
        %v4318 = vpop.xlane.xlu0 %4317
        %v4319 = vsel %vm3297, %v4297, 0.0
        %4320 = vadd.xlane.f32.xlu0 %v4319
        %v4321 = vpop.xlane.xlu0 %4320
        %v4322 = vrcp.pop %v4300
        %v4323 = vrcp.pop %v4303
        %v4324 = vrcp.pop %v4306
        %v4325 = vrcp.pop %v4309
        %v4326 = vrcp.pop %v4312
        %v4327 = vrcp.pop %v4315
        %v4328 = vrcp.pop %v4318
        %v4329 = vrcp.pop %v4321
        %v4330 = vmul.f32 %v4283, %v4322
        %v4331 = vmul.f32 %v4285, %v4323
        %v4332 = vmul.f32 %v4287, %v4324
        %v4333 = vmul.f32 %v4289, %v4325
        %v4334 = vmul.f32 %v4291, %v4326
        %v4335 = vmul.f32 %v4293, %v4327
        %v4336 = vmul.f32 %v4295, %v4328
        %v4337 = vmul.f32 %v4297, %v4329
        %v4338 = vpack.c.bf16 %v4331, %v4330
        %v4339 = vpack.c.bf16 %v4333, %v4332
        %v4340 = vpack.c.bf16 %v4335, %v4334
        %v4341 = vpack.c.bf16 %v4337, %v4336
        %v4343 = vsel %vm3297, %v4338, 0
        %v4346 = vsel %vm3297, %v4339, 0
        %v4349 = vsel %vm3297, %v4340, 0
        %v4352 = vsel %vm3297, %v4341, 0
        %4354 = vmatpush.bf16.msra.mxu0 0
        %4355 = vmatpush.bf16.msra.mxu0 0
        %4356 = vmatpush.bf16.msra.mxu0 0
        %4357 = vmatpush.bf16.msra.mxu0 0
        %4358 = vmatpush.bf16.msra.mxu0 %v4220
        %4359 = vmatpush.bf16.msra.mxu0 %v4219
        %4360 = vmatpush.bf16.msra.mxu0 %v4218
        %4361 = vmatpush.bf16.msra.mxu0 %v4217
        %4362 = vmatmul.bf16.gmra.mxu0 %v4343
        %v4363 = vpop.f32.mrf.mxu0
        %v4364 = vadd.f32 0.0, %v4363
        %v4365 = vpop.f32.mrf.mxu0
        %v4366 = vadd.f32 0.0, %v4365
        %4367 = vmatmul.bf16.gmra.mxu0 %v4346
        %v4368 = vpop.f32.mrf.mxu0
        %v4369 = vadd.f32 0.0, %v4368
        %v4370 = vpop.f32.mrf.mxu0
        %v4371 = vadd.f32 0.0, %v4370
        %4372 = vmatmul.bf16.gmra.mxu0 %v4349
        %v4373 = vpop.f32.mrf.mxu0
        %v4374 = vadd.f32 0.0, %v4373
        %v4375 = vpop.f32.mrf.mxu0
        %v4376 = vadd.f32 0.0, %v4375
        %4377 = vmatmul.bf16.gmra.mxu0 %v4352
        %v4378 = vpop.f32.mrf.mxu0
        %v4379 = vadd.f32 0.0, %v4378
        %v4380 = vpop.f32.mrf.mxu0
        %v4381 = vadd.f32 0.0, %v4380
        %4382 = vdwg.mxu0
        %v4383 = vpack.c.bf16 %v4364, %v4364
        %v4384 = vpack.c.bf16 %v4366, %v4366
        %v4385 = vpack.c.bf16 %v4369, %v4369
        %v4386 = vpack.c.bf16 %v4371, %v4371
        %v4387 = vpack.c.bf16 %v4374, %v4374
        %v4388 = vpack.c.bf16 %v4376, %v4376
        %v4389 = vpack.c.bf16 %v4379, %v4379
        %v4390 = vpack.c.bf16 %v4381, %v4381
        %4391 = vst [vmem:[%s4200 + $0x4] sm:$0xf] %v4383
        %4392 = vst [vmem:[%s4200 + $0xc] sm:$0xf] %v4384
        %4393 = vst [vmem:[%s4200 + $0x14] sm:$0xf] %v4385
        %4394 = vst [vmem:[%s4200 + $0x1c] sm:$0xf] %v4386
        %4395 = vst [vmem:[%s4200 + $0x24] sm:$0xf] %v4387
        %4396 = vst [vmem:[%s4200 + $0x2c] sm:$0xf] %v4388
        %4397 = vst [vmem:[%s4200 + $0x34] sm:$0xf] %v4389
        %4398 = vst [vmem:[%s4200 + $0x3c] sm:$0xf] %v4390
        %v4399 = vpack.c.bf16 %v2730, %v2728
        %v4400 = vpack.c.bf16 %v2734, %v2732
        %v4401 = vpack.c.bf16 %v2738, %v2736
        %v4402 = vpack.c.bf16 %v2742, %v2740
        %v4403 = vpack.c.bf16 %v3242, %v3240
        %v4404 = vpack.c.bf16 %v3246, %v3244
        %v4405 = vpack.c.bf16 %v3250, %v3248
        %v4406 = vpack.c.bf16 %v3254, %v3252
        %v4407 = vpack.c.bf16 %v1986, %v1984
        %v4408 = vpack.c.bf16 %v1991, %v1989
        %v4409 = vpack.c.bf16 %v1996, %v1994
        %v4410 = vpack.c.bf16 %v2001, %v1999
        %4411 = vmatpush.bf16.xpose.msra.mxu0 0
        %4412 = vmatpush.bf16.xpose.msra.mxu0 0
        %4413 = vmatpush.bf16.xpose.msra.mxu0 0
        %4414 = vmatpush.bf16.xpose.msra.mxu0 0
        %4415 = vmatpush.bf16.xpose.msra.mxu0 %v4406
        %4416 = vmatpush.bf16.xpose.msra.mxu0 %v4405
        %4417 = vmatpush.bf16.xpose.msra.mxu0 %v4404
        %4418 = vmatpush.bf16.xpose.msra.mxu0 %v4403
        %4419 = vmatmul.bf16.gmra.mxu0 %v4399
        %v4420 = vpop.f32.mrf.mxu0
        %v4421 = vadd.f32 0.0, %v4420
        %v4422 = vpop.f32.mrf.mxu0
        %v4423 = vadd.f32 0.0, %v4422
        %4424 = vmatmul.bf16.gmra.mxu0 %v4400
        %v4425 = vpop.f32.mrf.mxu0
        %v4426 = vadd.f32 0.0, %v4425
        %v4427 = vpop.f32.mrf.mxu0
        %v4428 = vadd.f32 0.0, %v4427
        %4429 = vmatmul.bf16.gmra.mxu0 %v4401
        %v4430 = vpop.f32.mrf.mxu0
        %v4431 = vadd.f32 0.0, %v4430
        %v4432 = vpop.f32.mrf.mxu0
        %v4433 = vadd.f32 0.0, %v4432
        %4434 = vmatmul.bf16.gmra.mxu0 %v4402
        %v4435 = vpop.f32.mrf.mxu0
        %v4436 = vadd.f32 0.0, %v4435
        %v4437 = vpop.f32.mrf.mxu0
        %v4438 = vadd.f32 0.0, %v4437
        %4439 = vdwg.mxu0
        %v4440 = vsel %vm3297, %v4421, -inf
        %4441 = vmax.xlane.f32.xlu0 %v4440
        %v4442 = vpop.xlane.xlu0 %4441
        %v4443 = vsel %vm3297, %v4423, -inf
        %4444 = vmax.xlane.f32.xlu0 %v4443
        %v4445 = vpop.xlane.xlu0 %4444
        %v4446 = vsel %vm3297, %v4426, -inf
        %4447 = vmax.xlane.f32.xlu0 %v4446
        %v4448 = vpop.xlane.xlu0 %4447
        %v4449 = vsel %vm3297, %v4428, -inf
        %4450 = vmax.xlane.f32.xlu0 %v4449
        %v4451 = vpop.xlane.xlu0 %4450
        %v4452 = vsel %vm3297, %v4431, -inf
        %4453 = vmax.xlane.f32.xlu0 %v4452
        %v4454 = vpop.xlane.xlu0 %4453
        %v4455 = vsel %vm3297, %v4433, -inf
        %4456 = vmax.xlane.f32.xlu0 %v4455
        %v4457 = vpop.xlane.xlu0 %4456
        %v4458 = vsel %vm3297, %v4436, -inf
        %4459 = vmax.xlane.f32.xlu0 %v4458
        %v4460 = vpop.xlane.xlu0 %4459
        %v4461 = vsel %vm3297, %v4438, -inf
        %4462 = vmax.xlane.f32.xlu0 %v4461
        %v4463 = vpop.xlane.xlu0 %4462
        %v4464 = vsub.f32 %v4421, %v4442
        %v4465 = vsub.f32 %v4423, %v4445
        %v4466 = vsub.f32 %v4426, %v4448
        %v4467 = vsub.f32 %v4428, %v4451
        %v4468 = vsub.f32 %v4431, %v4454
        %v4469 = vsub.f32 %v4433, %v4457
        %v4470 = vsub.f32 %v4436, %v4460
        %v4471 = vsub.f32 %v4438, %v4463
        %v4472 = vmul.f32 %v4464, 1.442695
        %v4473 = vpow.pop %v4472
        %v4474 = vmul.f32 %v4465, 1.442695
        %v4475 = vpow.pop %v4474
        %v4476 = vmul.f32 %v4466, 1.442695
        %v4477 = vpow.pop %v4476
        %v4478 = vmul.f32 %v4467, 1.442695
        %v4479 = vpow.pop %v4478
        %v4480 = vmul.f32 %v4468, 1.442695
        %v4481 = vpow.pop %v4480
        %v4482 = vmul.f32 %v4469, 1.442695
        %v4483 = vpow.pop %v4482
        %v4484 = vmul.f32 %v4470, 1.442695
        %v4485 = vpow.pop %v4484
        %v4486 = vmul.f32 %v4471, 1.442695
        %v4487 = vpow.pop %v4486
        %v4488 = vsel %vm3297, %v4473, 0.0
        %4489 = vadd.xlane.f32.xlu0 %v4488
        %v4490 = vpop.xlane.xlu0 %4489
        %v4491 = vsel %vm3297, %v4475, 0.0
        %4492 = vadd.xlane.f32.xlu0 %v4491
        %v4493 = vpop.xlane.xlu0 %4492
        %v4494 = vsel %vm3297, %v4477, 0.0
        %4495 = vadd.xlane.f32.xlu0 %v4494
        %v4496 = vpop.xlane.xlu0 %4495
        %v4497 = vsel %vm3297, %v4479, 0.0
        %4498 = vadd.xlane.f32.xlu0 %v4497
        %v4499 = vpop.xlane.xlu0 %4498
        %v4500 = vsel %vm3297, %v4481, 0.0
        %4501 = vadd.xlane.f32.xlu0 %v4500
        %v4502 = vpop.xlane.xlu0 %4501
        %v4503 = vsel %vm3297, %v4483, 0.0
        %4504 = vadd.xlane.f32.xlu0 %v4503
        %v4505 = vpop.xlane.xlu0 %4504
        %v4506 = vsel %vm3297, %v4485, 0.0
        %4507 = vadd.xlane.f32.xlu0 %v4506
        %v4508 = vpop.xlane.xlu0 %4507
        %v4509 = vsel %vm3297, %v4487, 0.0
        %4510 = vadd.xlane.f32.xlu0 %v4509
        %v4511 = vpop.xlane.xlu0 %4510
        %v4512 = vrcp.pop %v4490
        %v4513 = vrcp.pop %v4493
        %v4514 = vrcp.pop %v4496
        %v4515 = vrcp.pop %v4499
        %v4516 = vrcp.pop %v4502
        %v4517 = vrcp.pop %v4505
        %v4518 = vrcp.pop %v4508
        %v4519 = vrcp.pop %v4511
        %v4520 = vmul.f32 %v4473, %v4512
        %v4521 = vmul.f32 %v4475, %v4513
        %v4522 = vmul.f32 %v4477, %v4514
        %v4523 = vmul.f32 %v4479, %v4515
        %v4524 = vmul.f32 %v4481, %v4516
        %v4525 = vmul.f32 %v4483, %v4517
        %v4526 = vmul.f32 %v4485, %v4518
        %v4527 = vmul.f32 %v4487, %v4519
        %v4528 = vpack.c.bf16 %v4521, %v4520
        %v4529 = vpack.c.bf16 %v4523, %v4522
        %v4530 = vpack.c.bf16 %v4525, %v4524
        %v4531 = vpack.c.bf16 %v4527, %v4526
        %v4533 = vsel %vm3297, %v4528, 0
        %v4536 = vsel %vm3297, %v4529, 0
        %v4539 = vsel %vm3297, %v4530, 0
        %v4542 = vsel %vm3297, %v4531, 0
        %4544 = vmatpush.bf16.msra.mxu0 0
        %4545 = vmatpush.bf16.msra.mxu0 0
        %4546 = vmatpush.bf16.msra.mxu0 0
        %4547 = vmatpush.bf16.msra.mxu0 0
        %4548 = vmatpush.bf16.msra.mxu0 %v4410
        %4549 = vmatpush.bf16.msra.mxu0 %v4409
        %4550 = vmatpush.bf16.msra.mxu0 %v4408
        %4551 = vmatpush.bf16.msra.mxu0 %v4407
        %4552 = vmatmul.bf16.gmra.mxu0 %v4533
        %v4553 = vpop.f32.mrf.mxu0
        %v4554 = vadd.f32 0.0, %v4553
        %v4555 = vpop.f32.mrf.mxu0
        %v4556 = vadd.f32 0.0, %v4555
        %4557 = vmatmul.bf16.gmra.mxu0 %v4536
        %v4558 = vpop.f32.mrf.mxu0
        %v4559 = vadd.f32 0.0, %v4558
        %v4560 = vpop.f32.mrf.mxu0
        %v4561 = vadd.f32 0.0, %v4560
        %4562 = vmatmul.bf16.gmra.mxu0 %v4539
        %v4563 = vpop.f32.mrf.mxu0
        %v4564 = vadd.f32 0.0, %v4563
        %v4565 = vpop.f32.mrf.mxu0
        %v4566 = vadd.f32 0.0, %v4565
        %4567 = vmatmul.bf16.gmra.mxu0 %v4542
        %v4568 = vpop.f32.mrf.mxu0
        %v4569 = vadd.f32 0.0, %v4568
        %v4570 = vpop.f32.mrf.mxu0
        %v4571 = vadd.f32 0.0, %v4570
        %4572 = vdwg.mxu0
        %v4573 = vpack.c.bf16 %v4554, %v4554
        %v4574 = vpack.c.bf16 %v4556, %v4556
        %v4575 = vpack.c.bf16 %v4559, %v4559
        %v4576 = vpack.c.bf16 %v4561, %v4561
        %v4577 = vpack.c.bf16 %v4564, %v4564
        %v4578 = vpack.c.bf16 %v4566, %v4566
        %v4579 = vpack.c.bf16 %v4569, %v4569
        %v4580 = vpack.c.bf16 %v4571, %v4571
        %s4581 = scalar_lea.vmem [#allocation2], 192
        %4582 = vst [vmem:[%s4581] sm:$0xf] %v4573
        %4583 = vst [vmem:[%s4581 + $0x8] sm:$0xf] %v4574
        %4584 = vst [vmem:[%s4581 + $0x10] sm:$0xf] %v4575
        %4585 = vst [vmem:[%s4581 + $0x18] sm:$0xf] %v4576
        %4586 = vst [vmem:[%s4581 + $0x20] sm:$0xf] %v4577
        %4587 = vst [vmem:[%s4581 + $0x28] sm:$0xf] %v4578
        %4588 = vst [vmem:[%s4581 + $0x30] sm:$0xf] %v4579
        %4589 = vst [vmem:[%s4581 + $0x38] sm:$0xf] %v4580
        %v4590 = vpack.c.bf16 %v2731, %v2729
        %v4591 = vpack.c.bf16 %v2735, %v2733
        %v4592 = vpack.c.bf16 %v2739, %v2737
        %v4593 = vpack.c.bf16 %v2743, %v2741
        %v4594 = vpack.c.bf16 %v3243, %v3241
        %v4595 = vpack.c.bf16 %v3247, %v3245
        %v4596 = vpack.c.bf16 %v3251, %v3249
        %v4597 = vpack.c.bf16 %v3255, %v3253
        %v4598 = vpack.c.bf16 %v2164, %v2162
        %v4599 = vpack.c.bf16 %v2169, %v2167
        %v4600 = vpack.c.bf16 %v2174, %v2172
        %v4601 = vpack.c.bf16 %v2179, %v2177
        %4602 = vmatpush.bf16.xpose.msra.mxu0 0
        %4603 = vmatpush.bf16.xpose.msra.mxu0 0
        %4604 = vmatpush.bf16.xpose.msra.mxu0 0
        %4605 = vmatpush.bf16.xpose.msra.mxu0 0
        %4606 = vmatpush.bf16.xpose.msra.mxu0 %v4597
        %4607 = vmatpush.bf16.xpose.msra.mxu0 %v4596
        %4608 = vmatpush.bf16.xpose.msra.mxu0 %v4595
        %4609 = vmatpush.bf16.xpose.msra.mxu0 %v4594
        %4610 = vmatmul.bf16.gmra.mxu0 %v4590
        %v4611 = vpop.f32.mrf.mxu0
        %v4612 = vadd.f32 0.0, %v4611
        %v4613 = vpop.f32.mrf.mxu0
        %v4614 = vadd.f32 0.0, %v4613
        %4615 = vmatmul.bf16.gmra.mxu0 %v4591
        %v4616 = vpop.f32.mrf.mxu0
        %v4617 = vadd.f32 0.0, %v4616
        %v4618 = vpop.f32.mrf.mxu0
        %v4619 = vadd.f32 0.0, %v4618
        %4620 = vmatmul.bf16.gmra.mxu0 %v4592
        %v4621 = vpop.f32.mrf.mxu0
        %v4622 = vadd.f32 0.0, %v4621
        %v4623 = vpop.f32.mrf.mxu0
        %v4624 = vadd.f32 0.0, %v4623
        %4625 = vmatmul.bf16.gmra.mxu0 %v4593
        %v4626 = vpop.f32.mrf.mxu0
        %v4627 = vadd.f32 0.0, %v4626
        %v4628 = vpop.f32.mrf.mxu0
        %v4629 = vadd.f32 0.0, %v4628
        %4630 = vdwg.mxu0
        %v4631 = vsel %vm3297, %v4612, -inf
        %4632 = vmax.xlane.f32.xlu0 %v4631
        %v4633 = vpop.xlane.xlu0 %4632
        %v4634 = vsel %vm3297, %v4614, -inf
        %4635 = vmax.xlane.f32.xlu0 %v4634
        %v4636 = vpop.xlane.xlu0 %4635
        %v4637 = vsel %vm3297, %v4617, -inf
        %4638 = vmax.xlane.f32.xlu0 %v4637
        %v4639 = vpop.xlane.xlu0 %4638
        %v4640 = vsel %vm3297, %v4619, -inf
        %4641 = vmax.xlane.f32.xlu0 %v4640
        %v4642 = vpop.xlane.xlu0 %4641
        %v4643 = vsel %vm3297, %v4622, -inf
        %4644 = vmax.xlane.f32.xlu0 %v4643
        %v4645 = vpop.xlane.xlu0 %4644
        %v4646 = vsel %vm3297, %v4624, -inf
        %4647 = vmax.xlane.f32.xlu0 %v4646
        %v4648 = vpop.xlane.xlu0 %4647
        %v4649 = vsel %vm3297, %v4627, -inf
        %4650 = vmax.xlane.f32.xlu0 %v4649
        %v4651 = vpop.xlane.xlu0 %4650
        %v4652 = vsel %vm3297, %v4629, -inf
        %4653 = vmax.xlane.f32.xlu0 %v4652
        %v4654 = vpop.xlane.xlu0 %4653
        %v4655 = vsub.f32 %v4612, %v4633
        %v4656 = vsub.f32 %v4614, %v4636
        %v4657 = vsub.f32 %v4617, %v4639
        %v4658 = vsub.f32 %v4619, %v4642
        %v4659 = vsub.f32 %v4622, %v4645
        %v4660 = vsub.f32 %v4624, %v4648
        %v4661 = vsub.f32 %v4627, %v4651
        %v4662 = vsub.f32 %v4629, %v4654
        %v4663 = vmul.f32 %v4655, 1.442695
        %v4664 = vpow.pop %v4663
        %v4665 = vmul.f32 %v4656, 1.442695
        %v4666 = vpow.pop %v4665
        %v4667 = vmul.f32 %v4657, 1.442695
        %v4668 = vpow.pop %v4667
        %v4669 = vmul.f32 %v4658, 1.442695
        %v4670 = vpow.pop %v4669
        %v4671 = vmul.f32 %v4659, 1.442695
        %v4672 = vpow.pop %v4671
        %v4673 = vmul.f32 %v4660, 1.442695
        %v4674 = vpow.pop %v4673
        %v4675 = vmul.f32 %v4661, 1.442695
        %v4676 = vpow.pop %v4675
        %v4677 = vmul.f32 %v4662, 1.442695
        %v4678 = vpow.pop %v4677
        %v4679 = vsel %vm3297, %v4664, 0.0
        %4680 = vadd.xlane.f32.xlu0 %v4679
        %v4681 = vpop.xlane.xlu0 %4680
        %v4682 = vsel %vm3297, %v4666, 0.0
        %4683 = vadd.xlane.f32.xlu0 %v4682
        %v4684 = vpop.xlane.xlu0 %4683
        %v4685 = vsel %vm3297, %v4668, 0.0
        %4686 = vadd.xlane.f32.xlu0 %v4685
        %v4687 = vpop.xlane.xlu0 %4686
        %v4688 = vsel %vm3297, %v4670, 0.0
        %4689 = vadd.xlane.f32.xlu0 %v4688
        %v4690 = vpop.xlane.xlu0 %4689
        %v4691 = vsel %vm3297, %v4672, 0.0
        %4692 = vadd.xlane.f32.xlu0 %v4691
        %v4693 = vpop.xlane.xlu0 %4692
        %v4694 = vsel %vm3297, %v4674, 0.0
        %4695 = vadd.xlane.f32.xlu0 %v4694
        %v4696 = vpop.xlane.xlu0 %4695
        %v4697 = vsel %vm3297, %v4676, 0.0
        %4698 = vadd.xlane.f32.xlu0 %v4697
        %v4699 = vpop.xlane.xlu0 %4698
        %v4700 = vsel %vm3297, %v4678, 0.0
        %4701 = vadd.xlane.f32.xlu0 %v4700
        %v4702 = vpop.xlane.xlu0 %4701
        %v4703 = vrcp.pop %v4681
        %v4704 = vrcp.pop %v4684
        %v4705 = vrcp.pop %v4687
        %v4706 = vrcp.pop %v4690
        %v4707 = vrcp.pop %v4693
        %v4708 = vrcp.pop %v4696
        %v4709 = vrcp.pop %v4699
        %v4710 = vrcp.pop %v4702
        %v4711 = vmul.f32 %v4664, %v4703
        %v4712 = vmul.f32 %v4666, %v4704
        %v4713 = vmul.f32 %v4668, %v4705
        %v4714 = vmul.f32 %v4670, %v4706
        %v4715 = vmul.f32 %v4672, %v4707
        %v4716 = vmul.f32 %v4674, %v4708
        %v4717 = vmul.f32 %v4676, %v4709
        %v4718 = vmul.f32 %v4678, %v4710
        %v4719 = vpack.c.bf16 %v4712, %v4711
        %v4720 = vpack.c.bf16 %v4714, %v4713
        %v4721 = vpack.c.bf16 %v4716, %v4715
        %v4722 = vpack.c.bf16 %v4718, %v4717
        %v4724 = vsel %vm3297, %v4719, 0
        %v4727 = vsel %vm3297, %v4720, 0
        %v4730 = vsel %vm3297, %v4721, 0
        %v4733 = vsel %vm3297, %v4722, 0
        %4735 = vmatpush.bf16.msra.mxu0 0
        %4736 = vmatpush.bf16.msra.mxu0 0
        %4737 = vmatpush.bf16.msra.mxu0 0
        %4738 = vmatpush.bf16.msra.mxu0 0
        %4739 = vmatpush.bf16.msra.mxu0 %v4601
        %4740 = vmatpush.bf16.msra.mxu0 %v4600
        %4741 = vmatpush.bf16.msra.mxu0 %v4599
        %4742 = vmatpush.bf16.msra.mxu0 %v4598
        %4743 = vmatmul.bf16.gmra.mxu0 %v4724
        %v4744 = vpop.f32.mrf.mxu0
        %v4745 = vadd.f32 0.0, %v4744
        %v4746 = vpop.f32.mrf.mxu0
        %v4747 = vadd.f32 0.0, %v4746
        %4748 = vmatmul.bf16.gmra.mxu0 %v4727
        %v4749 = vpop.f32.mrf.mxu0
        %v4750 = vadd.f32 0.0, %v4749
        %v4751 = vpop.f32.mrf.mxu0
        %v4752 = vadd.f32 0.0, %v4751
        %4753 = vmatmul.bf16.gmra.mxu0 %v4730
        %v4754 = vpop.f32.mrf.mxu0
        %v4755 = vadd.f32 0.0, %v4754
        %v4756 = vpop.f32.mrf.mxu0
        %v4757 = vadd.f32 0.0, %v4756
        %4758 = vmatmul.bf16.gmra.mxu0 %v4733
        %v4759 = vpop.f32.mrf.mxu0
        %v4760 = vadd.f32 0.0, %v4759
        %v4761 = vpop.f32.mrf.mxu0
        %v4762 = vadd.f32 0.0, %v4761
        %4763 = vdwg.mxu0
        %v4764 = vpack.c.bf16 %v4745, %v4745
        %v4765 = vpack.c.bf16 %v4747, %v4747
        %v4766 = vpack.c.bf16 %v4750, %v4750
        %v4767 = vpack.c.bf16 %v4752, %v4752
        %v4768 = vpack.c.bf16 %v4755, %v4755
        %v4769 = vpack.c.bf16 %v4757, %v4757
        %v4770 = vpack.c.bf16 %v4760, %v4760
        %v4771 = vpack.c.bf16 %v4762, %v4762
        %4772 = vst [vmem:[%s4581 + $0x4] sm:$0xf] %v4764
        %4773 = vst [vmem:[%s4581 + $0xc] sm:$0xf] %v4765
        %4774 = vst [vmem:[%s4581 + $0x14] sm:$0xf] %v4766
        %4775 = vst [vmem:[%s4581 + $0x1c] sm:$0xf] %v4767
        %4776 = vst [vmem:[%s4581 + $0x24] sm:$0xf] %v4768
        %4777 = vst [vmem:[%s4581 + $0x2c] sm:$0xf] %v4769
        %4778 = vst [vmem:[%s4581 + $0x34] sm:$0xf] %v4770
        %4779 = vst [vmem:[%s4581 + $0x3c] sm:$0xf] %v4771
        %v4780 = vld [vmem:[#allocation2] sm:$0xff]
        %v4781 = vld [vmem:[#allocation2 + $0x8] sm:$0xff]
        %v4782 = vld [vmem:[#allocation2 + $0x10] sm:$0xff]
        %v4783 = vld [vmem:[#allocation2 + $0x18] sm:$0xff]
        %v4784 = vld [vmem:[#allocation2 + $0x20] sm:$0xff]
        %v4785 = vld [vmem:[#allocation2 + $0x28] sm:$0xff]
        %v4786 = vld [vmem:[#allocation2 + $0x30] sm:$0xff]
        %v4787 = vld [vmem:[#allocation2 + $0x38] sm:$0xff]
        %v4788 = vld [vmem:[#allocation2 + $0x40] sm:$0xff]
        %v4789 = vld [vmem:[#allocation2 + $0x48] sm:$0xff]
        %v4790 = vld [vmem:[#allocation2 + $0x50] sm:$0xff]
        %v4791 = vld [vmem:[#allocation2 + $0x58] sm:$0xff]
        %v4792 = vld [vmem:[#allocation2 + $0x60] sm:$0xff]
        %v4793 = vld [vmem:[#allocation2 + $0x68] sm:$0xff]
        %v4794 = vld [vmem:[#allocation2 + $0x70] sm:$0xff]
        %v4795 = vld [vmem:[#allocation2 + $0x78] sm:$0xff]
        %v4796 = vld [vmem:[#allocation2 + $0x80] sm:$0xff]
        %v4797 = vld [vmem:[#allocation2 + $0x88] sm:$0xff]
        %v4798 = vld [vmem:[#allocation2 + $0x90] sm:$0xff]
        %v4799 = vld [vmem:[#allocation2 + $0x98] sm:$0xff]
        %v4800 = vld [vmem:[#allocation2 + $0xa0] sm:$0xff]
        %v4801 = vld [vmem:[#allocation2 + $0xa8] sm:$0xff]
        %v4802 = vld [vmem:[#allocation2 + $0xb0] sm:$0xff]
        %v4803 = vld [vmem:[#allocation2 + $0xb8] sm:$0xff]
        %v4804 = vld [vmem:[#allocation2 + $0xc0] sm:$0xff]
        %v4805 = vld [vmem:[#allocation2 + $0xc8] sm:$0xff]
        %v4806 = vld [vmem:[#allocation2 + $0xd0] sm:$0xff]
        %v4807 = vld [vmem:[#allocation2 + $0xd8] sm:$0xff]
        %v4808 = vld [vmem:[#allocation2 + $0xe0] sm:$0xff]
        %v4809 = vld [vmem:[#allocation2 + $0xe8] sm:$0xff]
        %v4810 = vld [vmem:[#allocation2 + $0xf0] sm:$0xff]
        %v4811 = vld [vmem:[#allocation2 + $0xf8] sm:$0xff]
        %v4812 = vld [vmem:[#allocation9] sm:$0xff]
        %v4813 = vld [vmem:[#allocation9 + $0x8] sm:$0xff]
        %v4814 = vld [vmem:[#allocation9 + $0x10] sm:$0xff]
        %v4815 = vld [vmem:[#allocation9 + $0x18] sm:$0xff]
        %v4816 = vld [vmem:[#allocation9 + $0x20] sm:$0xff]
        %v4817 = vld [vmem:[#allocation9 + $0x28] sm:$0xff]
        %v4818 = vld [vmem:[#allocation9 + $0x30] sm:$0xff]
        %v4819 = vld [vmem:[#allocation9 + $0x38] sm:$0xff]
        %v4820 = vld [vmem:[#allocation9 + $0x40] sm:$0xff]
        %v4821 = vld [vmem:[#allocation9 + $0x48] sm:$0xff]
        %v4822 = vld [vmem:[#allocation9 + $0x50] sm:$0xff]
        %v4823 = vld [vmem:[#allocation9 + $0x58] sm:$0xff]
        %v4824 = vld [vmem:[#allocation9 + $0x60] sm:$0xff]
        %v4825 = vld [vmem:[#allocation9 + $0x68] sm:$0xff]
        %v4826 = vld [vmem:[#allocation9 + $0x70] sm:$0xff]
        %v4827 = vld [vmem:[#allocation9 + $0x78] sm:$0xff]
        %v4828 = vld [vmem:[#allocation9 + $0x80] sm:$0xff]
        %v4829 = vld [vmem:[#allocation9 + $0x88] sm:$0xff]
        %v4830 = vld [vmem:[#allocation9 + $0x90] sm:$0xff]
        %v4831 = vld [vmem:[#allocation9 + $0x98] sm:$0xff]
        %v4832 = vld [vmem:[#allocation9 + $0xa0] sm:$0xff]
        %v4833 = vld [vmem:[#allocation9 + $0xa8] sm:$0xff]
        %v4834 = vld [vmem:[#allocation9 + $0xb0] sm:$0xff]
        %v4835 = vld [vmem:[#allocation9 + $0xb8] sm:$0xff]
        %v4836 = vld [vmem:[#allocation9 + $0xc0] sm:$0xff]
        %v4837 = vld [vmem:[#allocation9 + $0xc8] sm:$0xff]
        %v4838 = vld [vmem:[#allocation9 + $0xd0] sm:$0xff]
        %v4839 = vld [vmem:[#allocation9 + $0xd8] sm:$0xff]
        %v4840 = vld [vmem:[#allocation9 + $0xe0] sm:$0xff]
        %v4841 = vld [vmem:[#allocation9 + $0xe8] sm:$0xff]
        %v4842 = vld [vmem:[#allocation9 + $0xf0] sm:$0xff]
        %v4843 = vld [vmem:[#allocation9 + $0xf8] sm:$0xff]
        %v4844 = vld [vmem:[%s4] sm:$0x3]
        %v4846 = vperm.slane %v4844, 0
        %v4847 = vperm.slane %v4844, 1
        %v4882 = vunpack.c.l.b16 %v4780
        %v4883 = vunpack.c.h.b16 %v4780
        %v4884 = vunpack.c.l.b16 %v4781
        %v4885 = vunpack.c.h.b16 %v4781
        %v4886 = vunpack.c.l.b16 %v4782
        %v4887 = vunpack.c.h.b16 %v4782
        %v4888 = vunpack.c.l.b16 %v4783
        %v4889 = vunpack.c.h.b16 %v4783
        %v4890 = vunpack.c.l.b16 %v4784
        %v4891 = vunpack.c.h.b16 %v4784
        %v4892 = vunpack.c.l.b16 %v4785
        %v4893 = vunpack.c.h.b16 %v4785
        %v4894 = vunpack.c.l.b16 %v4786
        %v4895 = vunpack.c.h.b16 %v4786
        %v4896 = vunpack.c.l.b16 %v4787
        %v4897 = vunpack.c.h.b16 %v4787
        %v4898 = vunpack.c.l.b16 %v4788
        %v4899 = vunpack.c.h.b16 %v4788
        %v4900 = vunpack.c.l.b16 %v4789
        %v4901 = vunpack.c.h.b16 %v4789
        %v4902 = vunpack.c.l.b16 %v4790
        %v4903 = vunpack.c.h.b16 %v4790
        %v4904 = vunpack.c.l.b16 %v4791
        %v4905 = vunpack.c.h.b16 %v4791
        %v4906 = vunpack.c.l.b16 %v4792
        %v4907 = vunpack.c.h.b16 %v4792
        %v4908 = vunpack.c.l.b16 %v4793
        %v4909 = vunpack.c.h.b16 %v4793
        %v4910 = vunpack.c.l.b16 %v4794
        %v4911 = vunpack.c.h.b16 %v4794
        %v4912 = vunpack.c.l.b16 %v4795
        %v4913 = vunpack.c.h.b16 %v4795
        %v4914 = vunpack.c.l.b16 %v4796
        %v4915 = vunpack.c.h.b16 %v4796
        %v4916 = vunpack.c.l.b16 %v4797
        %v4917 = vunpack.c.h.b16 %v4797
        %v4918 = vunpack.c.l.b16 %v4798
        %v4919 = vunpack.c.h.b16 %v4798
        %v4920 = vunpack.c.l.b16 %v4799
        %v4921 = vunpack.c.h.b16 %v4799
        %v4922 = vunpack.c.l.b16 %v4800
        %v4923 = vunpack.c.h.b16 %v4800
        %v4924 = vunpack.c.l.b16 %v4801
        %v4925 = vunpack.c.h.b16 %v4801
        %v4926 = vunpack.c.l.b16 %v4802
        %v4927 = vunpack.c.h.b16 %v4802
        %v4928 = vunpack.c.l.b16 %v4803
        %v4929 = vunpack.c.h.b16 %v4803
        %v4930 = vunpack.c.l.b16 %v4804
        %v4931 = vunpack.c.h.b16 %v4804
        %v4932 = vunpack.c.l.b16 %v4805
        %v4933 = vunpack.c.h.b16 %v4805
        %v4934 = vunpack.c.l.b16 %v4806
        %v4935 = vunpack.c.h.b16 %v4806
        %v4936 = vunpack.c.l.b16 %v4807
        %v4937 = vunpack.c.h.b16 %v4807
        %v4938 = vunpack.c.l.b16 %v4808
        %v4939 = vunpack.c.h.b16 %v4808
        %v4940 = vunpack.c.l.b16 %v4809
        %v4941 = vunpack.c.h.b16 %v4809
        %v4942 = vunpack.c.l.b16 %v4810
        %v4943 = vunpack.c.h.b16 %v4810
        %v4944 = vunpack.c.l.b16 %v4811
        %v4945 = vunpack.c.h.b16 %v4811
        %v4946 = vpack.c.b16 %v4884, %v4882
        %v4947 = vpack.c.b16 %v4885, %v4883
        %v4948 = vpack.c.b16 %v4888, %v4886
        %v4949 = vpack.c.b16 %v4889, %v4887
        %v4950 = vpack.c.b16 %v4892, %v4890
        %v4951 = vpack.c.b16 %v4893, %v4891
        %v4952 = vpack.c.b16 %v4896, %v4894
        %v4953 = vpack.c.b16 %v4897, %v4895
        %v4954 = vpack.c.b16 %v4900, %v4898
        %v4955 = vpack.c.b16 %v4901, %v4899
        %v4956 = vpack.c.b16 %v4904, %v4902
        %v4957 = vpack.c.b16 %v4905, %v4903
        %v4958 = vpack.c.b16 %v4908, %v4906
        %v4959 = vpack.c.b16 %v4909, %v4907
        %v4960 = vpack.c.b16 %v4912, %v4910
        %v4961 = vpack.c.b16 %v4913, %v4911
        %v4962 = vpack.c.b16 %v4916, %v4914
        %v4963 = vpack.c.b16 %v4917, %v4915
        %v4964 = vpack.c.b16 %v4920, %v4918
        %v4965 = vpack.c.b16 %v4921, %v4919
        %v4966 = vpack.c.b16 %v4924, %v4922
        %v4967 = vpack.c.b16 %v4925, %v4923
        %v4968 = vpack.c.b16 %v4928, %v4926
        %v4969 = vpack.c.b16 %v4929, %v4927
        %v4970 = vpack.c.b16 %v4932, %v4930
        %v4971 = vpack.c.b16 %v4933, %v4931
        %v4972 = vpack.c.b16 %v4936, %v4934
        %v4973 = vpack.c.b16 %v4937, %v4935
        %v4974 = vpack.c.b16 %v4940, %v4938
        %v4975 = vpack.c.b16 %v4941, %v4939
        %v4976 = vpack.c.b16 %v4944, %v4942
        %v4977 = vpack.c.b16 %v4945, %v4943
        %v5042 = vunpack.c.l.b16 %v4812
        %v5043 = vunpack.c.h.b16 %v4812
        %v5044 = vunpack.c.l.b16 %v4813
        %v5045 = vunpack.c.h.b16 %v4813
        %v5046 = vunpack.c.l.b16 %v4814
        %v5047 = vunpack.c.h.b16 %v4814
        %v5048 = vunpack.c.l.b16 %v4815
        %v5049 = vunpack.c.h.b16 %v4815
        %v5050 = vunpack.c.l.b16 %v4816
        %v5051 = vunpack.c.h.b16 %v4816
        %v5052 = vunpack.c.l.b16 %v4817
        %v5053 = vunpack.c.h.b16 %v4817
        %v5054 = vunpack.c.l.b16 %v4818
        %v5055 = vunpack.c.h.b16 %v4818
        %v5056 = vunpack.c.l.b16 %v4819
        %v5057 = vunpack.c.h.b16 %v4819
        %v5058 = vunpack.c.l.b16 %v4820
        %v5059 = vunpack.c.h.b16 %v4820
        %v5060 = vunpack.c.l.b16 %v4821
        %v5061 = vunpack.c.h.b16 %v4821
        %v5062 = vunpack.c.l.b16 %v4822
        %v5063 = vunpack.c.h.b16 %v4822
        %v5064 = vunpack.c.l.b16 %v4823
        %v5065 = vunpack.c.h.b16 %v4823
        %v5066 = vunpack.c.l.b16 %v4824
        %v5067 = vunpack.c.h.b16 %v4824
        %v5068 = vunpack.c.l.b16 %v4825
        %v5069 = vunpack.c.h.b16 %v4825
        %v5070 = vunpack.c.l.b16 %v4826
        %v5071 = vunpack.c.h.b16 %v4826
        %v5072 = vunpack.c.l.b16 %v4827
        %v5073 = vunpack.c.h.b16 %v4827
        %v5074 = vunpack.c.l.b16 %v4828
        %v5075 = vunpack.c.h.b16 %v4828
        %v5076 = vunpack.c.l.b16 %v4829
        %v5077 = vunpack.c.h.b16 %v4829
        %v5078 = vunpack.c.l.b16 %v4830
        %v5079 = vunpack.c.h.b16 %v4830
        %v5080 = vunpack.c.l.b16 %v4831
        %v5081 = vunpack.c.h.b16 %v4831
        %v5082 = vunpack.c.l.b16 %v4832
        %v5083 = vunpack.c.h.b16 %v4832
        %v5084 = vunpack.c.l.b16 %v4833
        %v5085 = vunpack.c.h.b16 %v4833
        %v5086 = vunpack.c.l.b16 %v4834
        %v5087 = vunpack.c.h.b16 %v4834
        %v5088 = vunpack.c.l.b16 %v4835
        %v5089 = vunpack.c.h.b16 %v4835
        %v5090 = vunpack.c.l.b16 %v4836
        %v5091 = vunpack.c.h.b16 %v4836
        %v5092 = vunpack.c.l.b16 %v4837
        %v5093 = vunpack.c.h.b16 %v4837
        %v5094 = vunpack.c.l.b16 %v4838
        %v5095 = vunpack.c.h.b16 %v4838
        %v5096 = vunpack.c.l.b16 %v4839
        %v5097 = vunpack.c.h.b16 %v4839
        %v5098 = vunpack.c.l.b16 %v4840
        %v5099 = vunpack.c.h.b16 %v4840
        %v5100 = vunpack.c.l.b16 %v4841
        %v5101 = vunpack.c.h.b16 %v4841
        %v5102 = vunpack.c.l.b16 %v4842
        %v5103 = vunpack.c.h.b16 %v4842
        %v5104 = vunpack.c.l.b16 %v4843
        %v5105 = vunpack.c.h.b16 %v4843
        %v5106 = vpack.c.b16 %v5044, %v5042
        %v5107 = vpack.c.b16 %v5045, %v5043
        %v5108 = vpack.c.b16 %v5048, %v5046
        %v5109 = vpack.c.b16 %v5049, %v5047
        %v5110 = vpack.c.b16 %v5052, %v5050
        %v5111 = vpack.c.b16 %v5053, %v5051
        %v5112 = vpack.c.b16 %v5056, %v5054
        %v5113 = vpack.c.b16 %v5057, %v5055
        %v5114 = vpack.c.b16 %v5060, %v5058
        %v5115 = vpack.c.b16 %v5061, %v5059
        %v5116 = vpack.c.b16 %v5064, %v5062
        %v5117 = vpack.c.b16 %v5065, %v5063
        %v5118 = vpack.c.b16 %v5068, %v5066
        %v5119 = vpack.c.b16 %v5069, %v5067
        %v5120 = vpack.c.b16 %v5072, %v5070
        %v5121 = vpack.c.b16 %v5073, %v5071
        %v5122 = vpack.c.b16 %v5076, %v5074
        %v5123 = vpack.c.b16 %v5077, %v5075
        %v5124 = vpack.c.b16 %v5080, %v5078
        %v5125 = vpack.c.b16 %v5081, %v5079
        %v5126 = vpack.c.b16 %v5084, %v5082
        %v5127 = vpack.c.b16 %v5085, %v5083
        %v5128 = vpack.c.b16 %v5088, %v5086
        %v5129 = vpack.c.b16 %v5089, %v5087
        %v5130 = vpack.c.b16 %v5092, %v5090
        %v5131 = vpack.c.b16 %v5093, %v5091
        %v5132 = vpack.c.b16 %v5096, %v5094
        %v5133 = vpack.c.b16 %v5097, %v5095
        %v5134 = vpack.c.b16 %v5100, %v5098
        %v5135 = vpack.c.b16 %v5101, %v5099
        %v5136 = vpack.c.b16 %v5104, %v5102
        %v5137 = vpack.c.b16 %v5105, %v5103
        %5170 = vmatpush.bf16.msra.mxu0 %v5120
        %5171 = vmatpush.bf16.msra.mxu0 %v5118
        %5172 = vmatpush.bf16.msra.mxu0 %v5116
        %5173 = vmatpush.bf16.msra.mxu0 %v5114
        %5174 = vmatpush.bf16.msra.mxu0 %v5112
        %5175 = vmatpush.bf16.msra.mxu0 %v5110
        %5176 = vmatpush.bf16.msra.mxu0 %v5108
        %5177 = vmatpush.bf16.msra.mxu0 %v5106
        %5178 = vmatmul.bf16.gmra.mxu0 %v4946
        %v5179 = vpop.f32.mrf.mxu0
        %v5180 = vadd.f32 %v4846, %v5179
        %v5181 = vpop.f32.mrf.mxu0
        %v5182 = vadd.f32 %v4846, %v5181
        %5183 = vmatmul.bf16.gmra.mxu0 %v4948
        %v5184 = vpop.f32.mrf.mxu0
        %v5185 = vadd.f32 %v4846, %v5184
        %v5186 = vpop.f32.mrf.mxu0
        %v5187 = vadd.f32 %v4846, %v5186
        %5188 = vmatmul.bf16.gmra.mxu0 %v4950
        %v5189 = vpop.f32.mrf.mxu0
        %v5190 = vadd.f32 %v4846, %v5189
        %v5191 = vpop.f32.mrf.mxu0
        %v5192 = vadd.f32 %v4846, %v5191
        %5193 = vmatmul.bf16.gmra.mxu0 %v4952
        %v5194 = vpop.f32.mrf.mxu0
        %v5195 = vadd.f32 %v4846, %v5194
        %v5196 = vpop.f32.mrf.mxu0
        %v5197 = vadd.f32 %v4846, %v5196
        %5198 = vmatmul.bf16.gmra.mxu0 %v4954
        %v5199 = vpop.f32.mrf.mxu0
        %v5200 = vadd.f32 %v4846, %v5199
        %v5201 = vpop.f32.mrf.mxu0
        %v5202 = vadd.f32 %v4846, %v5201
        %5203 = vmatmul.bf16.gmra.mxu0 %v4956
        %v5204 = vpop.f32.mrf.mxu0
        %v5205 = vadd.f32 %v4846, %v5204
        %v5206 = vpop.f32.mrf.mxu0
        %v5207 = vadd.f32 %v4846, %v5206
        %5208 = vmatmul.bf16.gmra.mxu0 %v4958
        %v5209 = vpop.f32.mrf.mxu0
        %v5210 = vadd.f32 %v4846, %v5209
        %v5211 = vpop.f32.mrf.mxu0
        %v5212 = vadd.f32 %v4846, %v5211
        %5213 = vmatmul.bf16.gmra.mxu0 %v4960
        %v5214 = vpop.f32.mrf.mxu0
        %v5215 = vadd.f32 %v4846, %v5214
        %v5216 = vpop.f32.mrf.mxu0
        %v5217 = vadd.f32 %v4846, %v5216
        %5218 = vmatmul.bf16.gmra.mxu0 %v4962
        %v5219 = vpop.f32.mrf.mxu0
        %v5220 = vadd.f32 %v4846, %v5219
        %v5221 = vpop.f32.mrf.mxu0
        %v5222 = vadd.f32 %v4846, %v5221
        %5223 = vmatmul.bf16.gmra.mxu0 %v4964
        %v5224 = vpop.f32.mrf.mxu0
        %v5225 = vadd.f32 %v4846, %v5224
        %v5226 = vpop.f32.mrf.mxu0
        %v5227 = vadd.f32 %v4846, %v5226
        %5228 = vmatmul.bf16.gmra.mxu0 %v4966
        %v5229 = vpop.f32.mrf.mxu0
        %v5230 = vadd.f32 %v4846, %v5229
        %v5231 = vpop.f32.mrf.mxu0
        %v5232 = vadd.f32 %v4846, %v5231
        %5233 = vmatmul.bf16.gmra.mxu0 %v4968
        %v5234 = vpop.f32.mrf.mxu0
        %v5235 = vadd.f32 %v4846, %v5234
        %v5236 = vpop.f32.mrf.mxu0
        %v5237 = vadd.f32 %v4846, %v5236
        %5238 = vmatmul.bf16.gmra.mxu0 %v4970
        %v5239 = vpop.f32.mrf.mxu0
        %v5240 = vadd.f32 %v4846, %v5239
        %v5241 = vpop.f32.mrf.mxu0
        %v5242 = vadd.f32 %v4846, %v5241
        %5243 = vmatmul.bf16.gmra.mxu0 %v4972
        %v5244 = vpop.f32.mrf.mxu0
        %v5245 = vadd.f32 %v4846, %v5244
        %v5246 = vpop.f32.mrf.mxu0
        %v5247 = vadd.f32 %v4846, %v5246
        %5248 = vmatmul.bf16.gmra.mxu0 %v4974
        %v5249 = vpop.f32.mrf.mxu0
        %v5250 = vadd.f32 %v4846, %v5249
        %v5251 = vpop.f32.mrf.mxu0
        %v5252 = vadd.f32 %v4846, %v5251
        %5253 = vmatmul.bf16.gmra.mxu0 %v4976
        %v5254 = vpop.f32.mrf.mxu0
        %v5255 = vadd.f32 %v4846, %v5254
        %v5256 = vpop.f32.mrf.mxu0
        %v5257 = vadd.f32 %v4846, %v5256
        %5258 = vdwg.mxu0
        %5259 = vmatpush.bf16.msra.mxu0 %v5136
        %5260 = vmatpush.bf16.msra.mxu0 %v5134
        %5261 = vmatpush.bf16.msra.mxu0 %v5132
        %5262 = vmatpush.bf16.msra.mxu0 %v5130
        %5263 = vmatpush.bf16.msra.mxu0 %v5128
        %5264 = vmatpush.bf16.msra.mxu0 %v5126
        %5265 = vmatpush.bf16.msra.mxu0 %v5124
        %5266 = vmatpush.bf16.msra.mxu0 %v5122
        %5267 = vmatmul.bf16.gmra.mxu0 %v4947
        %v5268 = vpop.f32.mrf.mxu0
        %v5269 = vadd.f32 %v5180, %v5268
        %v5270 = vpop.f32.mrf.mxu0
        %v5271 = vadd.f32 %v5182, %v5270
        %5272 = vmatmul.bf16.gmra.mxu0 %v4949
        %v5273 = vpop.f32.mrf.mxu0
        %v5274 = vadd.f32 %v5185, %v5273
        %v5275 = vpop.f32.mrf.mxu0
        %v5276 = vadd.f32 %v5187, %v5275
        %5277 = vmatmul.bf16.gmra.mxu0 %v4951
        %v5278 = vpop.f32.mrf.mxu0
        %v5279 = vadd.f32 %v5190, %v5278
        %v5280 = vpop.f32.mrf.mxu0
        %v5281 = vadd.f32 %v5192, %v5280
        %5282 = vmatmul.bf16.gmra.mxu0 %v4953
        %v5283 = vpop.f32.mrf.mxu0
        %v5284 = vadd.f32 %v5195, %v5283
        %v5285 = vpop.f32.mrf.mxu0
        %v5286 = vadd.f32 %v5197, %v5285
        %5287 = vmatmul.bf16.gmra.mxu0 %v4955
        %v5288 = vpop.f32.mrf.mxu0
        %v5289 = vadd.f32 %v5200, %v5288
        %v5290 = vpop.f32.mrf.mxu0
        %v5291 = vadd.f32 %v5202, %v5290
        %5292 = vmatmul.bf16.gmra.mxu0 %v4957
        %v5293 = vpop.f32.mrf.mxu0
        %v5294 = vadd.f32 %v5205, %v5293
        %v5295 = vpop.f32.mrf.mxu0
        %v5296 = vadd.f32 %v5207, %v5295
        %5297 = vmatmul.bf16.gmra.mxu0 %v4959
        %v5298 = vpop.f32.mrf.mxu0
        %v5299 = vadd.f32 %v5210, %v5298
        %v5300 = vpop.f32.mrf.mxu0
        %v5301 = vadd.f32 %v5212, %v5300
        %5302 = vmatmul.bf16.gmra.mxu0 %v4961
        %v5303 = vpop.f32.mrf.mxu0
        %v5304 = vadd.f32 %v5215, %v5303
        %v5305 = vpop.f32.mrf.mxu0
        %v5306 = vadd.f32 %v5217, %v5305
        %5307 = vmatmul.bf16.gmra.mxu0 %v4963
        %v5308 = vpop.f32.mrf.mxu0
        %v5309 = vadd.f32 %v5220, %v5308
        %v5310 = vpop.f32.mrf.mxu0
        %v5311 = vadd.f32 %v5222, %v5310
        %5312 = vmatmul.bf16.gmra.mxu0 %v4965
        %v5313 = vpop.f32.mrf.mxu0
        %v5314 = vadd.f32 %v5225, %v5313
        %v5315 = vpop.f32.mrf.mxu0
        %v5316 = vadd.f32 %v5227, %v5315
        %5317 = vmatmul.bf16.gmra.mxu0 %v4967
        %v5318 = vpop.f32.mrf.mxu0
        %v5319 = vadd.f32 %v5230, %v5318
        %v5320 = vpop.f32.mrf.mxu0
        %v5321 = vadd.f32 %v5232, %v5320
        %5322 = vmatmul.bf16.gmra.mxu0 %v4969
        %v5323 = vpop.f32.mrf.mxu0
        %v5324 = vadd.f32 %v5235, %v5323
        %v5325 = vpop.f32.mrf.mxu0
        %v5326 = vadd.f32 %v5237, %v5325
        %5327 = vmatmul.bf16.gmra.mxu0 %v4971
        %v5328 = vpop.f32.mrf.mxu0
        %v5329 = vadd.f32 %v5240, %v5328
        %v5330 = vpop.f32.mrf.mxu0
        %v5331 = vadd.f32 %v5242, %v5330
        %5332 = vmatmul.bf16.gmra.mxu0 %v4973
        %v5333 = vpop.f32.mrf.mxu0
        %v5334 = vadd.f32 %v5245, %v5333
        %v5335 = vpop.f32.mrf.mxu0
        %v5336 = vadd.f32 %v5247, %v5335
        %5337 = vmatmul.bf16.gmra.mxu0 %v4975
        %v5338 = vpop.f32.mrf.mxu0
        %v5339 = vadd.f32 %v5250, %v5338
        %v5340 = vpop.f32.mrf.mxu0
        %v5341 = vadd.f32 %v5252, %v5340
        %5342 = vmatmul.bf16.gmra.mxu0 %v4977
        %v5343 = vpop.f32.mrf.mxu0
        %v5344 = vadd.f32 %v5255, %v5343
        %v5345 = vpop.f32.mrf.mxu0
        %v5346 = vadd.f32 %v5257, %v5345
        %5347 = vdwg.mxu0
        %5348 = vmatpush.bf16.msra.mxu0 %v5121
        %5349 = vmatpush.bf16.msra.mxu0 %v5119
        %5350 = vmatpush.bf16.msra.mxu0 %v5117
        %5351 = vmatpush.bf16.msra.mxu0 %v5115
        %5352 = vmatpush.bf16.msra.mxu0 %v5113
        %5353 = vmatpush.bf16.msra.mxu0 %v5111
        %5354 = vmatpush.bf16.msra.mxu0 %v5109
        %5355 = vmatpush.bf16.msra.mxu0 %v5107
        %5356 = vmatmul.bf16.gmra.mxu0 %v4946
        %v5357 = vpop.f32.mrf.mxu0
        %v5358 = vadd.f32 %v4847, %v5357
        %v5359 = vpop.f32.mrf.mxu0
        %v5360 = vadd.f32 %v4847, %v5359
        %5361 = vmatmul.bf16.gmra.mxu0 %v4948
        %v5362 = vpop.f32.mrf.mxu0
        %v5363 = vadd.f32 %v4847, %v5362
        %v5364 = vpop.f32.mrf.mxu0
        %v5365 = vadd.f32 %v4847, %v5364
        %5366 = vmatmul.bf16.gmra.mxu0 %v4950
        %v5367 = vpop.f32.mrf.mxu0
        %v5368 = vadd.f32 %v4847, %v5367
        %v5369 = vpop.f32.mrf.mxu0
        %v5370 = vadd.f32 %v4847, %v5369
        %5371 = vmatmul.bf16.gmra.mxu0 %v4952
        %v5372 = vpop.f32.mrf.mxu0
        %v5373 = vadd.f32 %v4847, %v5372
        %v5374 = vpop.f32.mrf.mxu0
        %v5375 = vadd.f32 %v4847, %v5374
        %5376 = vmatmul.bf16.gmra.mxu0 %v4954
        %v5377 = vpop.f32.mrf.mxu0
        %v5378 = vadd.f32 %v4847, %v5377
        %v5379 = vpop.f32.mrf.mxu0
        %v5380 = vadd.f32 %v4847, %v5379
        %5381 = vmatmul.bf16.gmra.mxu0 %v4956
        %v5382 = vpop.f32.mrf.mxu0
        %v5383 = vadd.f32 %v4847, %v5382
        %v5384 = vpop.f32.mrf.mxu0
        %v5385 = vadd.f32 %v4847, %v5384
        %5386 = vmatmul.bf16.gmra.mxu0 %v4958
        %v5387 = vpop.f32.mrf.mxu0
        %v5388 = vadd.f32 %v4847, %v5387
        %v5389 = vpop.f32.mrf.mxu0
        %v5390 = vadd.f32 %v4847, %v5389
        %5391 = vmatmul.bf16.gmra.mxu0 %v4960
        %v5392 = vpop.f32.mrf.mxu0
        %v5393 = vadd.f32 %v4847, %v5392
        %v5394 = vpop.f32.mrf.mxu0
        %v5395 = vadd.f32 %v4847, %v5394
        %5396 = vmatmul.bf16.gmra.mxu0 %v4962
        %v5397 = vpop.f32.mrf.mxu0
        %v5398 = vadd.f32 %v4847, %v5397
        %v5399 = vpop.f32.mrf.mxu0
        %v5400 = vadd.f32 %v4847, %v5399
        %5401 = vmatmul.bf16.gmra.mxu0 %v4964
        %v5402 = vpop.f32.mrf.mxu0
        %v5403 = vadd.f32 %v4847, %v5402
        %v5404 = vpop.f32.mrf.mxu0
        %v5405 = vadd.f32 %v4847, %v5404
        %5406 = vmatmul.bf16.gmra.mxu0 %v4966
        %v5407 = vpop.f32.mrf.mxu0
        %v5408 = vadd.f32 %v4847, %v5407
        %v5409 = vpop.f32.mrf.mxu0
        %v5410 = vadd.f32 %v4847, %v5409
        %5411 = vmatmul.bf16.gmra.mxu0 %v4968
        %v5412 = vpop.f32.mrf.mxu0
        %v5413 = vadd.f32 %v4847, %v5412
        %v5414 = vpop.f32.mrf.mxu0
        %v5415 = vadd.f32 %v4847, %v5414
        %5416 = vmatmul.bf16.gmra.mxu0 %v4970
        %v5417 = vpop.f32.mrf.mxu0
        %v5418 = vadd.f32 %v4847, %v5417
        %v5419 = vpop.f32.mrf.mxu0
        %v5420 = vadd.f32 %v4847, %v5419
        %5421 = vmatmul.bf16.gmra.mxu0 %v4972
        %v5422 = vpop.f32.mrf.mxu0
        %v5423 = vadd.f32 %v4847, %v5422
        %v5424 = vpop.f32.mrf.mxu0
        %v5425 = vadd.f32 %v4847, %v5424
        %5426 = vmatmul.bf16.gmra.mxu0 %v4974
        %v5427 = vpop.f32.mrf.mxu0
        %v5428 = vadd.f32 %v4847, %v5427
        %v5429 = vpop.f32.mrf.mxu0
        %v5430 = vadd.f32 %v4847, %v5429
        %5431 = vmatmul.bf16.gmra.mxu0 %v4976
        %v5432 = vpop.f32.mrf.mxu0
        %v5433 = vadd.f32 %v4847, %v5432
        %v5434 = vpop.f32.mrf.mxu0
        %v5435 = vadd.f32 %v4847, %v5434
        %5436 = vdwg.mxu0
        %5437 = vmatpush.bf16.msra.mxu0 %v5137
        %5438 = vmatpush.bf16.msra.mxu0 %v5135
        %5439 = vmatpush.bf16.msra.mxu0 %v5133
        %5440 = vmatpush.bf16.msra.mxu0 %v5131
        %5441 = vmatpush.bf16.msra.mxu0 %v5129
        %5442 = vmatpush.bf16.msra.mxu0 %v5127
        %5443 = vmatpush.bf16.msra.mxu0 %v5125
        %5444 = vmatpush.bf16.msra.mxu0 %v5123
        %5445 = vmatmul.bf16.gmra.mxu0 %v4947
        %v5446 = vpop.f32.mrf.mxu0
        %v5447 = vadd.f32 %v5358, %v5446
        %v5448 = vpop.f32.mrf.mxu0
        %v5449 = vadd.f32 %v5360, %v5448
        %5450 = vmatmul.bf16.gmra.mxu0 %v4949
        %v5451 = vpop.f32.mrf.mxu0
        %v5452 = vadd.f32 %v5363, %v5451
        %v5453 = vpop.f32.mrf.mxu0
        %v5454 = vadd.f32 %v5365, %v5453
        %5455 = vmatmul.bf16.gmra.mxu0 %v4951
        %v5456 = vpop.f32.mrf.mxu0
        %v5457 = vadd.f32 %v5368, %v5456
        %v5458 = vpop.f32.mrf.mxu0
        %v5459 = vadd.f32 %v5370, %v5458
        %5460 = vmatmul.bf16.gmra.mxu0 %v4953
        %v5461 = vpop.f32.mrf.mxu0
        %v5462 = vadd.f32 %v5373, %v5461
        %v5463 = vpop.f32.mrf.mxu0
        %v5464 = vadd.f32 %v5375, %v5463
        %5465 = vmatmul.bf16.gmra.mxu0 %v4955
        %v5466 = vpop.f32.mrf.mxu0
        %v5467 = vadd.f32 %v5378, %v5466
        %v5468 = vpop.f32.mrf.mxu0
        %v5469 = vadd.f32 %v5380, %v5468
        %5470 = vmatmul.bf16.gmra.mxu0 %v4957
        %v5471 = vpop.f32.mrf.mxu0
        %v5472 = vadd.f32 %v5383, %v5471
        %v5473 = vpop.f32.mrf.mxu0
        %v5474 = vadd.f32 %v5385, %v5473
        %5475 = vmatmul.bf16.gmra.mxu0 %v4959
        %v5476 = vpop.f32.mrf.mxu0
        %v5477 = vadd.f32 %v5388, %v5476
        %v5478 = vpop.f32.mrf.mxu0
        %v5479 = vadd.f32 %v5390, %v5478
        %5480 = vmatmul.bf16.gmra.mxu0 %v4961
        %v5481 = vpop.f32.mrf.mxu0
        %v5482 = vadd.f32 %v5393, %v5481
        %v5483 = vpop.f32.mrf.mxu0
        %v5484 = vadd.f32 %v5395, %v5483
        %5485 = vmatmul.bf16.gmra.mxu0 %v4963
        %v5486 = vpop.f32.mrf.mxu0
        %v5487 = vadd.f32 %v5398, %v5486
        %v5488 = vpop.f32.mrf.mxu0
        %v5489 = vadd.f32 %v5400, %v5488
        %5490 = vmatmul.bf16.gmra.mxu0 %v4965
        %v5491 = vpop.f32.mrf.mxu0
        %v5492 = vadd.f32 %v5403, %v5491
        %v5493 = vpop.f32.mrf.mxu0
        %v5494 = vadd.f32 %v5405, %v5493
        %5495 = vmatmul.bf16.gmra.mxu0 %v4967
        %v5496 = vpop.f32.mrf.mxu0
        %v5497 = vadd.f32 %v5408, %v5496
        %v5498 = vpop.f32.mrf.mxu0
        %v5499 = vadd.f32 %v5410, %v5498
        %5500 = vmatmul.bf16.gmra.mxu0 %v4969
        %v5501 = vpop.f32.mrf.mxu0
        %v5502 = vadd.f32 %v5413, %v5501
        %v5503 = vpop.f32.mrf.mxu0
        %v5504 = vadd.f32 %v5415, %v5503
        %5505 = vmatmul.bf16.gmra.mxu0 %v4971
        %v5506 = vpop.f32.mrf.mxu0
        %v5507 = vadd.f32 %v5418, %v5506
        %v5508 = vpop.f32.mrf.mxu0
        %v5509 = vadd.f32 %v5420, %v5508
        %5510 = vmatmul.bf16.gmra.mxu0 %v4973
        %v5511 = vpop.f32.mrf.mxu0
        %v5512 = vadd.f32 %v5423, %v5511
        %v5513 = vpop.f32.mrf.mxu0
        %v5514 = vadd.f32 %v5425, %v5513
        %5515 = vmatmul.bf16.gmra.mxu0 %v4975
        %v5516 = vpop.f32.mrf.mxu0
        %v5517 = vadd.f32 %v5428, %v5516
        %v5518 = vpop.f32.mrf.mxu0
        %v5519 = vadd.f32 %v5430, %v5518
        %5520 = vmatmul.bf16.gmra.mxu0 %v4977
        %v5521 = vpop.f32.mrf.mxu0
        %v5522 = vadd.f32 %v5433, %v5521
        %v5523 = vpop.f32.mrf.mxu0
        %v5524 = vadd.f32 %v5435, %v5523
        %5525 = vdwg.mxu0
        %5526 = vst [vmem:[%s423] sm:$0xff] %v5269
        %5527 = vst [vmem:[%s423 + $0x8] sm:$0xff] %v5447
        %5528 = vst [vmem:[%s423 + $0x10] sm:$0xff] %v5271
        %5529 = vst [vmem:[%s423 + $0x18] sm:$0xff] %v5449
        %5530 = vst [vmem:[%s423 + $0x20] sm:$0xff] %v5274
        %5531 = vst [vmem:[%s423 + $0x28] sm:$0xff] %v5452
        %5532 = vst [vmem:[%s423 + $0x30] sm:$0xff] %v5276
        %5533 = vst [vmem:[%s423 + $0x38] sm:$0xff] %v5454
        %5534 = vst [vmem:[%s423 + $0x40] sm:$0xff] %v5279
        %5535 = vst [vmem:[%s423 + $0x48] sm:$0xff] %v5457
        %5536 = vst [vmem:[%s423 + $0x50] sm:$0xff] %v5281
        %5537 = vst [vmem:[%s423 + $0x58] sm:$0xff] %v5459
        %5538 = vst [vmem:[%s423 + $0x60] sm:$0xff] %v5284
        %5539 = vst [vmem:[%s423 + $0x68] sm:$0xff] %v5462
        %5540 = vst [vmem:[%s423 + $0x70] sm:$0xff] %v5286
        %5541 = vst [vmem:[%s423 + $0x78] sm:$0xff] %v5464
        %5542 = vst [vmem:[%s423 + $0x80] sm:$0xff] %v5289
        %5543 = vst [vmem:[%s423 + $0x88] sm:$0xff] %v5467
        %5544 = vst [vmem:[%s423 + $0x90] sm:$0xff] %v5291
        %5545 = vst [vmem:[%s423 + $0x98] sm:$0xff] %v5469
        %5546 = vst [vmem:[%s423 + $0xa0] sm:$0xff] %v5294
        %5547 = vst [vmem:[%s423 + $0xa8] sm:$0xff] %v5472
        %5548 = vst [vmem:[%s423 + $0xb0] sm:$0xff] %v5296
        %5549 = vst [vmem:[%s423 + $0xb8] sm:$0xff] %v5474
        %5550 = vst [vmem:[%s423 + $0xc0] sm:$0xff] %v5299
        %5551 = vst [vmem:[%s423 + $0xc8] sm:$0xff] %v5477
        %5552 = vst [vmem:[%s423 + $0xd0] sm:$0xff] %v5301
        %5553 = vst [vmem:[%s423 + $0xd8] sm:$0xff] %v5479
        %5554 = vst [vmem:[%s423 + $0xe0] sm:$0xff] %v5304
        %5555 = vst [vmem:[%s423 + $0xe8] sm:$0xff] %v5482
        %5556 = vst [vmem:[%s423 + $0xf0] sm:$0xff] %v5306
        %5557 = vst [vmem:[%s423 + $0xf8] sm:$0xff] %v5484
        %5558 = vst [vmem:[%s423 + $0x100] sm:$0xff] %v5309
        %5559 = vst [vmem:[%s423 + $0x108] sm:$0xff] %v5487
        %5560 = vst [vmem:[%s423 + $0x110] sm:$0xff] %v5311
        %5561 = vst [vmem:[%s423 + $0x118] sm:$0xff] %v5489
        %5562 = vst [vmem:[%s423 + $0x120] sm:$0xff] %v5314
        %5563 = vst [vmem:[%s423 + $0x128] sm:$0xff] %v5492
        %5564 = vst [vmem:[%s423 + $0x130] sm:$0xff] %v5316
        %5565 = vst [vmem:[%s423 + $0x138] sm:$0xff] %v5494
        %5566 = vst [vmem:[%s423 + $0x140] sm:$0xff] %v5319
        %5567 = vst [vmem:[%s423 + $0x148] sm:$0xff] %v5497
        %5568 = vst [vmem:[%s423 + $0x150] sm:$0xff] %v5321
        %5569 = vst [vmem:[%s423 + $0x158] sm:$0xff] %v5499
        %5570 = vst [vmem:[%s423 + $0x160] sm:$0xff] %v5324
        %5571 = vst [vmem:[%s423 + $0x168] sm:$0xff] %v5502
        %5572 = vst [vmem:[%s423 + $0x170] sm:$0xff] %v5326
        %5573 = vst [vmem:[%s423 + $0x178] sm:$0xff] %v5504
        %5574 = vst [vmem:[%s423 + $0x180] sm:$0xff] %v5329
        %5575 = vst [vmem:[%s423 + $0x188] sm:$0xff] %v5507
        %5576 = vst [vmem:[%s423 + $0x190] sm:$0xff] %v5331
        %5577 = vst [vmem:[%s423 + $0x198] sm:$0xff] %v5509
        %5578 = vst [vmem:[%s423 + $0x1a0] sm:$0xff] %v5334
        %5579 = vst [vmem:[%s423 + $0x1a8] sm:$0xff] %v5512
        %5580 = vst [vmem:[%s423 + $0x1b0] sm:$0xff] %v5336
        %5581 = vst [vmem:[%s423 + $0x1b8] sm:$0xff] %v5514
        %5582 = vst [vmem:[%s423 + $0x1c0] sm:$0xff] %v5339
        %5583 = vst [vmem:[%s423 + $0x1c8] sm:$0xff] %v5517
        %5584 = vst [vmem:[%s423 + $0x1d0] sm:$0xff] %v5341
        %5585 = vst [vmem:[%s423 + $0x1d8] sm:$0xff] %v5519
        %5586 = vst [vmem:[%s423 + $0x1e0] sm:$0xff] %v5344
        %5587 = vst [vmem:[%s423 + $0x1e8] sm:$0xff] %v5522
        %5588 = vst [vmem:[%s423 + $0x1f0] sm:$0xff] %v5346
        %5589 = vst [vmem:[%s423 + $0x1f8] sm:$0xff] %v5524
        %s5590 = sand.u32 %s209, 1
        %s5591 = scalar_lea.sflag [#allocation5], %s5590
        %s5592 = sand.u32 %s209, 1
        %s5593 = smul.addr %s5592, 512
        %s5594 = scalar_lea.vmem [#allocation15], %s5593
        // Predicated region
        $region81: #{tpu_custom_call.1} parent=51 // pred_check
          %p5595 = pneg %p219
        $region82: #{tpu_custom_call.1} parent=51 // pred_check_branch
          %5597 = sbr.rel (%p5595) target = $region84
        $region83: #{tpu_custom_call.1} parent=51 // pred_region
          %s5598 = smul.u32 4, %s28
          %5600 = vsyncadd %s5591, 0
          %s5601 = smul.addr %s5598, 16
          %s5602 = smul.addr %s5601, 8
          %s5603 = scalar_lea.hbm %s8, %s5602
          %s5604 = sshll.u32 %s5594, 4
          %s5605 = int_to_ptr.vmem [resolvable:$true] %s5604
          %s5606 = sshll.u32 %s5603, 4
          %s5607 = int_to_ptr.hbm [resolvable:$true] %s5606
          %5612 = dma.vmem_to_hbm [thread:$0]  %s5605, 8192, %s5607, %s5591, 256, 256, 16
        $region84: #{tpu_custom_call.1} parent=51 // pred_fallthru
          _
      $region52: #{tpu_custom_call.1} parent=5 // pred_fallthru
        _
      %p5613 = scmp.le.s32.totalorder 2, %s23
      // Predicated region
      $region85: #{tpu_custom_call.1} parent=5 // pred_check
        %p5614 = pneg %p5613
      $region86: #{tpu_custom_call.1} parent=5 // pred_check_branch
        %5616 = sbr.rel (%p5614) target = $region88
      $region87: #{tpu_custom_call.1} parent=5 // pred_region
        %s5617 = ssub.s32 %s23, 2
        // Predicated region
        $region89: #{tpu_custom_call.1} parent=87 // pred_check
          %p5618 = pneg %p225
        $region90: #{tpu_custom_call.1} parent=87 // pred_check_branch
          %5620 = sbr.rel (%p5618) target = $region92
        $region91: #{tpu_custom_call.1} parent=87 // pred_region
          %s5621 = sand.u32 %s210, 1
          %s5622 = scalar_lea.sflag [#allocation5], %s5621
          %s5623 = sand.u32 %s210, 1
          %s5624 = smul.addr %s5623, 512
          %s5625 = scalar_lea.vmem [#allocation15], %s5624
          %5627 = dma.done %s5622, 8192
        $region92: #{tpu_custom_call.1} parent=87 // pred_fallthru
          _
      $region88: #{tpu_custom_call.1} parent=5 // pred_fallthru
        _
    $region6: #{tpu_custom_call.1} parent=1 // loop_footer
      %s27 = sadd.s32 1, %s23
    $region7: #{tpu_custom_call.1} parent=1 // loop_footer_branch
      %22 = sbr.rel target = $region3
    $region8: #{tpu_custom_call.1} parent=1 // loop_exit
      _
    %5628 = vsyncpa [#allocation4], 1
    %s5629 = scalar_lea.sflag [#allocation4], 1
    %5630 = vsyncpa %s5629, 1
    %5631 = vsyncpa [#allocation7], 1
    %5632 = vsyncpa [#allocation10], 1
    %5633 = vsyncpa [#allocation13], 1
    %5634 = vsyncpa [#allocation5], 1
    %s5635 = scalar_lea.sflag [#allocation5], 1
    %5636 = vsyncpa %s5635, 1

</llo_original>
